<compile_context>
chip_gen: v7x
topology: tpu7x:2x2x1
jax: 0.10.0
libtpu: 0.0.40
codegen_flags: <defaults>
</compile_context>

<pallas_src>
import functools
import numpy as np
import jax
import jax.numpy as jnp
from jax import lax
from jax.experimental import pallas as pl
from jax.experimental.pallas import tpu as pltpu

EPS = 1e-3        # BatchNorm eps from the module
_LANE = 128       # lane width / channel padding granularity
_VMEM_LIMIT = 32 * 1024 * 1024


def _round_up(n, m):
    return ((n + m - 1) // m) * m


# ----------------------------------------------------------------------------
# Kernel A: tiled matmul + bias + ReLU  (1x1 conv, BN scale folded into W)
#   Weights fully resident (tn = npad), grid over M tiles only.
# ----------------------------------------------------------------------------
def _matmul_bias_relu_kernel(x_ref, w_ref, b_ref, o_ref):
    acc = lax.dot_general(
        x_ref[...], w_ref[...],
        dimension_numbers=(((1,), (0,)), ((), ())),
        preferred_element_type=jnp.float32)
    o_ref[...] = jnp.maximum(acc + b_ref[...], 0.0)


def matmul_bias_relu(x2d_bf16, w_bf16, bias_f32, *, tm=512):
    """x2d [M,K] bf16 @ w [K,Npad] bf16 (+bias, ReLU) -> [M,Npad] f32, tiled over M."""
    M, K = x2d_bf16.shape
    K2, npad = w_bf16.shape
    assert K == K2 and npad % _LANE == 0
    tm = min(tm, M)                       # full-dim block when small (always legal)
    grid = (pl.cdiv(M, tm),)
    return pl.pallas_call(
        _matmul_bias_relu_kernel,
        out_shape=jax.ShapeDtypeStruct((M, npad), jnp.float32),
        grid=grid,
        in_specs=[
            pl.BlockSpec((tm, K), lambda i: (i, 0)),      # x tile, streamed once
            pl.BlockSpec((K, npad), lambda i: (0, 0)),    # weights, resident
            pl.BlockSpec((1, npad), lambda i: (0, 0)),
        ],
        out_specs=pl.BlockSpec((tm, npad), lambda i: (i, 0)),
        compiler_params=pltpu.CompilerParams(
            dimension_semantics=("parallel",),
            vmem_limit_bytes=_VMEM_LIMIT),
    )(x2d_bf16, w_bf16, bias_f32)


# ----------------------------------------------------------------------------
# Kernel B: 7-tap separable conv (along the leading spatial axis) + bias + ReLU
#   Input is the zero-padded activation flattened per batch to ((R+6)*Wp, C) so
#   each tap is a sublane-aligned row-shifted slice of the same VMEM block.
# ----------------------------------------------------------------------------
def _sep7_bias_relu_kernel(x_ref, w_ref, b_ref, o_ref, *, rows, width):
    hw = rows * width
    acc = lax.dot_general(
        x_ref[0:hw, :], w_ref[0],
        dimension_numbers=(((1,), (0,)), ((), ())),
        preferred_element_type=jnp.float32)
    for k in range(1, 7):                 # static unroll; slices are 8-aligned views
        acc = acc + lax.dot_general(
            x_ref[k * width:k * width + hw, :], w_ref[k],
            dimension_numbers=(((1,), (0,)), ((), ())),
            preferred_element_type=jnp.float32)
    o_ref[...] = jnp.maximum(acc + b_ref[...], 0.0).astype(o_ref.dtype)


def sep7_conv_bias_relu(x_nhwc, w7, bias, *, conv_axis, out_dtype, n_out=None):
    """7x1 ('H') or 1x7 ('W') conv, padding 3, BN folded into w7, bias+ReLU fused.

    Input/intermediates are bf16; output dtype selectable (bf16 for chain
    intermediates, f32 for final branch outputs). Channel dim stays lane-padded.
    """
    if conv_axis == 'W':
        x_nhwc = jnp.transpose(x_nhwc, (0, 2, 1, 3))      # conv axis -> axis 1 (bf16)
    B, R, Wd, C = x_nhwc.shape
    Wp = _round_up(Wd, 8)                                 # sublane-aligned row pitch
    xp = jnp.pad(x_nhwc.astype(jnp.bfloat16),
                 ((0, 0), (3, 3), (0, Wp - Wd), (0, 0)))
    xp = xp.reshape(B, (R + 6) * Wp, C)
    npad = w7.shape[-1]
    out = pl.pallas_call(
        functools.partial(_sep7_bias_relu_kernel, rows=R, width=Wp),
        out_shape=jax.ShapeDtypeStruct((B, R * Wp, npad), out_dtype),
        grid=(B,),
        in_specs=[
            pl.BlockSpec((None, (R + 6) * Wp, C), lambda b: (b, 0, 0)),
            pl.BlockSpec((7, C, npad), lambda b: (0, 0, 0)),   # full-N resident weights
            pl.BlockSpec((1, npad), lambda b: (0, 0)),
        ],
        out_specs=pl.BlockSpec((None, R * Wp, npad), lambda b: (b, 0, 0)),
        compiler_params=pltpu.CompilerParams(
            dimension_semantics=("parallel",),
            vmem_limit_bytes=_VMEM_LIMIT),
    )(xp, w7, bias)
    out = out.reshape(B, R, Wp, npad)
    if Wp != Wd:
        out = out[:, :, :Wd, :]
    if n_out is not None:
        out = out[..., :n_out]
    if conv_axis == 'W':
        out = jnp.transpose(out, (0, 2, 1, 3))
    return out


# ----------------------------------------------------------------------------
# Kernel C: fused separable avg_pool 3x3 (stride 1, pad 1, count_include_pad)
#           + 1x1 conv + bias + ReLU
# ----------------------------------------------------------------------------
def _pool_conv_bias_relu_kernel(x_ref, w_ref, b_ref, o_ref, *, H, W):
    x = x_ref[...].astype(jnp.float32)                    # (H+2, W+2, C)
    C = x.shape[-1]
    # separable 3x3 sum: 1x3 along W (sublane shifts), then 3x1 along H (free slices)
    row = x[:, 0:W, :] + x[:, 1:W + 1, :] + x[:, 2:W + 2, :]   # (H+2, W, C)
    col = row[0:H] + row[1:H + 1] + row[2:H + 2]               # (H, W, C)
    pooled = (col * (1.0 / 9.0)).astype(jnp.bfloat16).reshape(H * W, C)
    r = lax.dot_general(pooled, w_ref[...],
                        dimension_numbers=(((1,), (0,)), ((), ())),
                        preferred_element_type=jnp.float32)
    o_ref[...] = jnp.maximum(r + b_ref[...], 0.0)


def avgpool3x3_conv1x1_bias_relu(x_nhwc_bf16, w, bias, *, n_out):
    B, H, Wd, C = x_nhwc_bf16.shape
    xp = jnp.pad(x_nhwc_bf16.astype(jnp.bfloat16), ((0, 0), (1, 1), (1, 1), (0, 0)))
    npad = w.shape[-1]
    out = pl.pallas_call(
        functools.partial(_pool_conv_bias_relu_kernel, H=H, W=Wd),
        out_shape=jax.ShapeDtypeStruct((B, H * Wd, npad), jnp.float32),
        grid=(B,),
        in_specs=[
            pl.BlockSpec((None, H + 2, Wd + 2, C), lambda b: (b, 0, 0, 0)),
            pl.BlockSpec((C, npad), lambda b: (0, 0)),
            pl.BlockSpec((1, npad), lambda b: (0, 0)),
        ],
        out_specs=pl.BlockSpec((None, H * Wd, npad), lambda b: (b, 0, 0)),
        compiler_params=pltpu.CompilerParams(
            dimension_semantics=("parallel",),
            vmem_limit_bytes=_VMEM_LIMIT),
    )(xp, w, bias)
    return out[:, :, :n_out].reshape(B, H, Wd, n_out)


# ----------------------------------------------------------------------------
# Weight preparation (BN fold, bf16 cast, lane padding) -- runs ONCE at setup.
# ----------------------------------------------------------------------------
def _fold_scale_bias(p):
    scale = p['gamma'] / jnp.sqrt(p['var'] + EPS)
    bias = p['beta'] - p['mean'] * scale
    return scale, bias


def _prep_1x1_weights_fused(plist, pads):
    """Fold BN into 1x1 weights; each segment lane-padded, then concatenated along N."""
    ws, bs = [], []
    for p, npad in zip(plist, pads):
        scale, bias = _fold_scale_bias(p)
        w = (p['w'][:, :, 0, 0] * scale[:, None]).T        # (Cin, Cout)
        n = w.shape[1]
        ws.append(jnp.pad(w, ((0, 0), (0, npad - n))))
        bs.append(jnp.pad(bias, (0, npad - n)))
    w = jnp.concatenate(ws, axis=1).astype(jnp.bfloat16)
    b = jnp.concatenate(bs).reshape(1, -1).astype(jnp.float32)
    return w, b


def _prep_sep7_weights(p, conv_axis, k_pad):
    """Fold BN into a 7-tap weight stack; pad K rows to k_pad (chain channel padding)."""
    scale, bias = _fold_scale_bias(p)
    w4 = p['w']                                            # (O, I, kh, kw)
    if conv_axis == 'H':
        taps = [w4[:, :, k, 0] for k in range(7)]
    else:
        taps = [w4[:, :, 0, k] for k in range(7)]
    w = jnp.stack([(t * scale[:, None]).T for t in taps], axis=0)   # (7, I, O)
    i_dim, o_dim = w.shape[1], w.shape[2]
    npad = _round_up(o_dim, _LANE)
    w = jnp.pad(w, ((0, 0), (0, k_pad - i_dim), (0, npad - o_dim))).astype(jnp.bfloat16)
    b = jnp.pad(bias, (0, npad - o_dim)).reshape(1, npad).astype(jnp.float32)
    return w, b


def prepare_inception_c(params):
    """One-time BN fold / pad / cast of all weights (hoisted out of the forward)."""
    c7 = params['branch7x7_1']['w'].shape[0]
    c7p = _round_up(c7, _LANE)
    s0 = _round_up(192, _LANE)
    prepped = {
        'fused': _prep_1x1_weights_fused(
            [params['branch1x1_1'], params['branch7x7_1'], params['branch7x7dbl_1']],
            [s0, c7p, c7p]),
        'pool': _prep_1x1_weights_fused([params['branch_pool']], [s0]),
    }
    for name, axis in [('branch7x7_2', 'W'), ('branch7x7_3', 'H'),
                       ('branch7x7dbl_2', 'H'), ('branch7x7dbl_3', 'W'),
                       ('branch7x7dbl_4', 'H'), ('branch7x7dbl_5', 'W')]:
        prepped[name] = _prep_sep7_weights(params[name], axis, c7p)
    return prepped


# ----------------------------------------------------------------------------
# _InceptionC forward
# ----------------------------------------------------------------------------
def inception_c_forward(x_nchw, prepped):
    x_bf = jnp.transpose(x_nchw.astype(jnp.bfloat16), (0, 2, 3, 1))   # bf16 NHWC, cast once
    B, H, W, Cin = x_bf.shape
    c7p = prepped['branch7x7_2'][0].shape[1]       # padded channel width of the 7x7 chains
    s0 = _round_up(192, _LANE)                     # branch1x1 segment pad (lane-aligned splits)

    # Fused 1x1 convs over x: [branch1x1_1 | branch7x7_1 | branch7x7dbl_1] -> one matmul.
    wf, bf_ = prepped['fused']
    y = matmul_bias_relu(x_bf.reshape(B * H * W, Cin), wf, bf_).reshape(B, H, W, -1)
    branch1x1 = y[..., :192]                                          # f32 branch output
    t7 = y[..., s0:s0 + c7p].astype(jnp.bfloat16)                     # bf16, lane-aligned
    td = y[..., s0 + c7p:s0 + 2 * c7p].astype(jnp.bfloat16)

    # branch7x7: 1x7 (along W) then 7x1 (along H); intermediates bf16, channels stay padded
    t7 = sep7_conv_bias_relu(t7, *prepped['branch7x7_2'],
                             conv_axis='W', out_dtype=jnp.bfloat16)
    branch7x7 = sep7_conv_bias_relu(t7, *prepped['branch7x7_3'],
                                    conv_axis='H', out_dtype=jnp.float32, n_out=192)

    # branch7x7dbl: 7x1, 1x7, 7x1, 1x7
    td = sep7_conv_bias_relu(td, *prepped['branch7x7dbl_2'],
                             conv_axis='H', out_dtype=jnp.bfloat16)
    td = sep7_conv_bias_relu(td, *prepped['branch7x7dbl_3'],
                             conv_axis='W', out_dtype=jnp.bfloat16)
    td = sep7_conv_bias_relu(td, *prepped['branch7x7dbl_4'],
                             conv_axis='H', out_dtype=jnp.bfloat16)
    branch7x7dbl = sep7_conv_bias_relu(td, *prepped['branch7x7dbl_5'],
                                       conv_axis='W', out_dtype=jnp.float32, n_out=192)

    # pool branch: fused separable avgpool3x3 + 1x1 conv (same bf16 x, no extra cast)
    wp, bp_ = prepped['pool']
    branch_pool = avgpool3x3_conv1x1_bias_relu(x_bf, wp, bp_, n_out=192)

    out = jnp.concatenate([branch1x1, branch7x7, branch7x7dbl, branch_pool], axis=-1)
    return jnp.transpose(out, (0, 3, 1, 2))                  # NHWC -> NCHW (torch.cat dim=1)


# ----------------------------------------------------------------------------
# Deterministic parameter init (shapes from the module __init__)
# ----------------------------------------------------------------------------
def init_basic_conv(key, in_c, out_c, kh, kw):
    kw_, kg, kb, km, kv = jax.random.split(key, 5)
    fan_in = in_c * kh * kw
    return dict(
        w=jax.random.normal(kw_, (out_c, in_c, kh, kw), jnp.float32) / np.sqrt(fan_in),
        gamma=jax.random.uniform(kg, (out_c,), jnp.float32, 0.5, 1.5),
        beta=0.1 * jax.random.normal(kb, (out_c,), jnp.float32),
        mean=0.1 * jax.random.normal(km, (out_c,), jnp.float32),
        var=jax.random.uniform(kv, (out_c,), jnp.float32, 0.5, 1.5),
    )


def init_inception_c_params(key, in_channels, c7):
    specs = {
        'branch1x1_1':    (in_channels, 192, 1, 1),
        'branch7x7_1':    (in_channels, c7, 1, 1),
        'branch7x7_2':    (c7, c7, 1, 7),
        'branch7x7_3':    (c7, 192, 7, 1),
        'branch7x7dbl_1': (in_channels, c7, 1, 1),
        'branch7x7dbl_2': (c7, c7, 7, 1),
        'branch7x7dbl_3': (c7, c7, 1, 7),
        'branch7x7dbl_4': (c7, c7, 7, 1),
        'branch7x7dbl_5': (c7, 192, 1, 7),
        'branch_pool':    (in_channels, 192, 1, 1),
    }
    keys = jax.random.split(key, len(specs))
    return {name: init_basic_conv(k, *spec) for k, (name, spec) in zip(keys, specs.items())}


# ----------------------------------------------------------------------------
# Pure-JAX reference mirroring the kernel numerics (bf16 inputs / folded weights,
# f32 accumulation + epilogue; identical bf16 rounding points) -- correctness check.
# ----------------------------------------------------------------------------
def _ref_basic_conv_q(x, p, pad):
    scale = p['gamma'] / jnp.sqrt(p['var'] + EPS)
    wq = (p['w'] * scale[:, None, None, None]).astype(jnp.bfloat16).astype(jnp.float32)
    xq = x.astype(jnp.bfloat16).astype(jnp.float32)
    y = lax.conv_general_dilated(xq, wq, (1, 1), pad,
                                 dimension_numbers=('NCHW', 'OIHW', 'NCHW'),
                                 precision=lax.Precision.HIGHEST)
    bias = (p['beta'] - p['mean'] * scale).reshape(1, -1, 1, 1)
    return jnp.maximum(y + bias, 0.0)


def _ref_forward_q(x, params):
    b1 = _ref_basic_conv_q(x, params['branch1x1_1'], [(0, 0), (0, 0)])

    b7 = _ref_basic_conv_q(x, params['branch7x7_1'], [(0, 0), (0, 0)])
    b7 = _ref_basic_conv_q(b7, params['branch7x7_2'], [(0, 0), (3, 3)])
    b7 = _ref_basic_conv_q(b7, params['branch7x7_3'], [(3, 3), (0, 0)])

    bd = _ref_basic_conv_q(x, params['branch7x7dbl_1'], [(0, 0), (0, 0)])
    bd = _ref_basic_conv_q(bd, params['branch7x7dbl_2'], [(3, 3), (0, 0)])
    bd = _ref_basic_conv_q(bd, params['branch7x7dbl_3'], [(0, 0), (3, 3)])
    bd = _ref_basic_conv_q(bd, params['branch7x7dbl_4'], [(3, 3), (0, 0)])
    bd = _ref_basic_conv_q(bd, params['branch7x7dbl_5'], [(0, 0), (3, 3)])

    H, W = x.shape[2], x.shape[3]
    xq = x.astype(jnp.bfloat16).astype(jnp.float32)
    xp = jnp.pad(xq, ((0, 0), (0, 0), (1, 1), (1, 1)))
    bp = sum(xp[:, :, dh:dh + H, dw:dw + W]
             for dh in range(3) for dw in range(3)) * (1.0 / 9.0)
    bp = _ref_basic_conv_q(bp, params['branch_pool'], [(0, 0), (0, 0)])

    return jnp.concatenate([b1, b7, bd, bp], axis=1)


# ----------------------------------------------------------------------------
if __name__ == "__main__":
    key = jax.random.PRNGKey(0)
    k_params, k_x = jax.random.split(key)

    batch, in_channels, c7, H, W = 2, 16, 8, 8, 8
    params = init_inception_c_params(k_params, in_channels, c7)
    x = jax.random.normal(k_x, (batch, in_channels, H, W), jnp.float32)

    prepped = prepare_inception_c(params)           # weight prep hoisted out of forward
    fwd = jax.jit(inception_c_forward)
    out = jax.block_until_ready(fwd(x, prepped))
    assert out.shape == (batch, 4 * 192, H, W), out.shape

    ref = jax.block_until_ready(_ref_forward_q(x, params))
    # Reference mirrors the kernels' bf16-input / f32-accumulate contract; bf16
    # intermediate stores round at the same points as the reference's per-stage
    # bf16 input casts, so tolerance only covers f32 accumulation-order differences.
    np.testing.assert_allclose(np.asarray(out), np.asarray(ref), rtol=5e-3, atol=5e-3)

    print("KERNEL_OK")
</pallas_src>

<mosaic_0001>
module attributes {stable_mosaic.version = 11 : i64} {
  func.func @_pool_conv_bias_relu_kernel(%arg0: i32, %arg1: memref<1x10x10x16xbf16, #tpu.memory_space<vmem>>, %arg2: memref<16x256xbf16, #tpu.memory_space<vmem>>, %arg3: memref<1x256xf32, #tpu.memory_space<vmem>>, %arg4: memref<1x64x256xf32, #tpu.memory_space<vmem>>) attributes {dimension_semantics = [#tpu.dimension_semantics<parallel>], iteration_bounds = array<i64: 2>, scalar_prefetch = 0 : i64, scratch_operands = 0 : i64, tpu.core_type = #tpu.core_type<tc>, window_params = [{transform_indices = @transform_0, window_bounds = array<i64: 1, 10, 10, 16>}, {pipeline_mode = #tpu.pipeline_mode<synchronous>, transform_indices = @transform_1, window_bounds = array<i64: 16, 256>}, {pipeline_mode = #tpu.pipeline_mode<synchronous>, transform_indices = @transform_2, window_bounds = array<i64: 1, 256>}, {transform_indices = @transform_3, window_bounds = array<i64: 1, 64, 256>}]} {
    %c0 = arith.constant 0 : index
    %c0_0 = arith.constant 0 : index
    %c0_1 = arith.constant 0 : index
    %c0_2 = arith.constant 0 : index
    %0 = vector.load %arg1[%c0, %c0_0, %c0_1, %c0_2] : memref<1x10x10x16xbf16, #tpu.memory_space<vmem>>, vector<1x10x10x16xbf16>
    %1 = vector.shape_cast %0 : vector<1x10x10x16xbf16> to vector<10x10x16xbf16>
    %2 = arith.extf %1 : vector<10x10x16xbf16> to vector<10x10x16xf32>
    %3 = vector.extract_strided_slice %2 {offsets = [0, 0, 0], sizes = [10, 8, 16], strides = [1, 1, 1]} : vector<10x10x16xf32> to vector<10x8x16xf32>
    %4 = vector.extract_strided_slice %2 {offsets = [0, 1, 0], sizes = [10, 8, 16], strides = [1, 1, 1]} : vector<10x10x16xf32> to vector<10x8x16xf32>
    %5 = arith.addf %3, %4 : vector<10x8x16xf32>
    %6 = vector.extract_strided_slice %2 {offsets = [0, 2, 0], sizes = [10, 8, 16], strides = [1, 1, 1]} : vector<10x10x16xf32> to vector<10x8x16xf32>
    %7 = arith.addf %5, %6 : vector<10x8x16xf32>
    %8 = vector.extract_strided_slice %7 {offsets = [0, 0, 0], sizes = [8, 8, 16], strides = [1, 1, 1]} : vector<10x8x16xf32> to vector<8x8x16xf32>
    %9 = vector.extract_strided_slice %7 {offsets = [1, 0, 0], sizes = [8, 8, 16], strides = [1, 1, 1]} : vector<10x8x16xf32> to vector<8x8x16xf32>
    %10 = arith.addf %8, %9 : vector<8x8x16xf32>
    %11 = vector.extract_strided_slice %7 {offsets = [2, 0, 0], sizes = [8, 8, 16], strides = [1, 1, 1]} : vector<10x8x16xf32> to vector<8x8x16xf32>
    %12 = arith.addf %10, %11 : vector<8x8x16xf32>
    %cst = arith.constant 0.111111112 : f32
    %13 = vector.broadcast %cst : f32 to vector<8x8x16xf32>
    %14 = arith.mulf %12, %13 : vector<8x8x16xf32>
    %15 = arith.truncf %14 : vector<8x8x16xf32> to vector<8x8x16xbf16>
    %16 = vector.shape_cast %15 : vector<8x8x16xbf16> to vector<64x16xbf16>
    %c0_3 = arith.constant 0 : index
    %c0_4 = arith.constant 0 : index
    %17 = vector.load %arg2[%c0_3, %c0_4] : memref<16x256xbf16, #tpu.memory_space<vmem>>, vector<16x256xbf16>
    %cst_5 = arith.constant dense<0.000000e+00> : vector<64x256xf32>
    %18 = tpu.matmul %16, %17, %cst_5 {dimension_numbers = #tpu.dot_dimension_numbers<[1], [0], [0], [1], [0, 0, 1, 1], [], []>} : vector<64x16xbf16>, vector<16x256xbf16>, vector<64x256xf32> -> vector<64x256xf32>
    %c0_6 = arith.constant 0 : index
    %c0_7 = arith.constant 0 : index
    %19 = vector.load %arg3[%c0_6, %c0_7] : memref<1x256xf32, #tpu.memory_space<vmem>>, vector<1x256xf32>
    %20 = vector.broadcast %19 : vector<1x256xf32> to vector<64x256xf32>
    %21 = arith.addf %18, %20 : vector<64x256xf32>
    %cst_8 = arith.constant 0.000000e+00 : f32
    %22 = vector.broadcast %cst_8 : f32 to vector<64x256xf32>
    %23 = arith.maximumf %21, %22 : vector<64x256xf32>
    %c0_9 = arith.constant 0 : index
    %c0_10 = arith.constant 0 : index
    %c0_11 = arith.constant 0 : index
    %24 = vector.load %arg4[%c0_9, %c0_10, %c0_11] : memref<1x64x256xf32, #tpu.memory_space<vmem>>, vector<1x64x256xf32>
    %25 = vector.shape_cast %24 : vector<1x64x256xf32> to vector<64x256xf32>
    %26 = vector.shape_cast %23 : vector<64x256xf32> to vector<1x64x256xf32>
    tpu.vector_store %arg4[%c0_9, %c0_10, %c0_11], %26 {strides = array<i32>} : memref<1x64x256xf32, #tpu.memory_space<vmem>>, vector<1x64x256xf32>,
    return
  }
  func.func @transform_0(%arg0: i32) -> (i32, i32, i32, i32) {
    %c0_i32 = arith.constant 0 : i32
    %c0_i32_0 = arith.constant 0 : i32
    %c0_i32_1 = arith.constant 0 : i32
    %c0_i32_2 = arith.constant 0 : i32
    return %arg0, %c0_i32, %c0_i32_0, %c0_i32_1 : i32, i32, i32, i32
  }
  func.func @transform_1(%arg0: i32) -> (i32, i32) {
    %c0_i32 = arith.constant 0 : i32
    %c0_i32_0 = arith.constant 0 : i32
    %c0_i32_1 = arith.constant 0 : i32
    return %c0_i32, %c0_i32_0 : i32, i32
  }
  func.func @transform_2(%arg0: i32) -> (i32, i32) {
    %c0_i32 = arith.constant 0 : i32
    %c0_i32_0 = arith.constant 0 : i32
    %c0_i32_1 = arith.constant 0 : i32
    return %c0_i32, %c0_i32_0 : i32, i32
  }
  func.func @transform_3(%arg0: i32) -> (i32, i32, i32) {
    %c0_i32 = arith.constant 0 : i32
    %c0_i32_0 = arith.constant 0 : i32
    %c0_i32_1 = arith.constant 0 : i32
    return %arg0, %c0_i32, %c0_i32_0 : i32, i32, i32
  }
}

module attributes {stable_mosaic.version = 11 : i64} {
  func.func @_matmul_bias_relu_kernel(%arg0: i32, %arg1: memref<128x16xbf16, #tpu.memory_space<vmem>>, %arg2: memref<16x512xbf16, #tpu.memory_space<vmem>>, %arg3: memref<1x512xf32, #tpu.memory_space<vmem>>, %arg4: memref<128x512xf32, #tpu.memory_space<vmem>>) attributes {dimension_semantics = [#tpu.dimension_semantics<parallel>], iteration_bounds = array<i64: 1>, scalar_prefetch = 0 : i64, scratch_operands = 0 : i64, tpu.core_type = #tpu.core_type<tc>, window_params = [{transform_indices = @transform_0, window_bounds = array<i64: 128, 16>}, {pipeline_mode = #tpu.pipeline_mode<synchronous>, transform_indices = @transform_1, window_bounds = array<i64: 16, 512>}, {pipeline_mode = #tpu.pipeline_mode<synchronous>, transform_indices = @transform_2, window_bounds = array<i64: 1, 512>}, {transform_indices = @transform_3, window_bounds = array<i64: 128, 512>}]} {
    %c0 = arith.constant 0 : index
    %c0_0 = arith.constant 0 : index
    %0 = vector.load %arg1[%c0, %c0_0] : memref<128x16xbf16, #tpu.memory_space<vmem>>, vector<128x16xbf16>
    %c0_1 = arith.constant 0 : index
    %c0_2 = arith.constant 0 : index
    %1 = vector.load %arg2[%c0_1, %c0_2] : memref<16x512xbf16, #tpu.memory_space<vmem>>, vector<16x512xbf16>
    %cst = arith.constant dense<0.000000e+00> : vector<128x512xf32>
    %2 = tpu.matmul %0, %1, %cst {dimension_numbers = #tpu.dot_dimension_numbers<[1], [0], [0], [1], [0, 0, 1, 1], [], []>} : vector<128x16xbf16>, vector<16x512xbf16>, vector<128x512xf32> -> vector<128x512xf32>
    %c0_3 = arith.constant 0 : index
    %c0_4 = arith.constant 0 : index
    %3 = vector.load %arg3[%c0_3, %c0_4] : memref<1x512xf32, #tpu.memory_space<vmem>>, vector<1x512xf32>
    %4 = vector.broadcast %3 : vector<1x512xf32> to vector<128x512xf32>
    %5 = arith.addf %2, %4 : vector<128x512xf32>
    %cst_5 = arith.constant 0.000000e+00 : f32
    %6 = vector.broadcast %cst_5 : f32 to vector<128x512xf32>
    %7 = arith.maximumf %5, %6 : vector<128x512xf32>
    %c0_6 = arith.constant 0 : index
    %c0_7 = arith.constant 0 : index
    %8 = vector.load %arg4[%c0_6, %c0_7] : memref<128x512xf32, #tpu.memory_space<vmem>>, vector<128x512xf32>
    tpu.vector_store %arg4[%c0_6, %c0_7], %7 {strides = array<i32>} : memref<128x512xf32, #tpu.memory_space<vmem>>, vector<128x512xf32>,
    return
  }
  func.func @transform_0(%arg0: i32) -> (i32, i32) {
    %c0_i32 = arith.constant 0 : i32
    %c0_i32_0 = arith.constant 0 : i32
    return %arg0, %c0_i32 : i32, i32
  }
  func.func @transform_1(%arg0: i32) -> (i32, i32) {
    %c0_i32 = arith.constant 0 : i32
    %c0_i32_0 = arith.constant 0 : i32
    %c0_i32_1 = arith.constant 0 : i32
    return %c0_i32, %c0_i32_0 : i32, i32
  }
  func.func @transform_2(%arg0: i32) -> (i32, i32) {
    %c0_i32 = arith.constant 0 : i32
    %c0_i32_0 = arith.constant 0 : i32
    %c0_i32_1 = arith.constant 0 : i32
    return %c0_i32, %c0_i32_0 : i32, i32
  }
  func.func @transform_3(%arg0: i32) -> (i32, i32) {
    %c0_i32 = arith.constant 0 : i32
    %c0_i32_0 = arith.constant 0 : i32
    return %arg0, %c0_i32 : i32, i32
  }
}

module attributes {stable_mosaic.version = 11 : i64} {
  func.func @_sep7_bias_relu_kernel(%arg0: i32, %arg1: memref<1x112x128xbf16, #tpu.memory_space<vmem>>, %arg2: memref<7x128x128xbf16, #tpu.memory_space<vmem>>, %arg3: memref<1x128xf32, #tpu.memory_space<vmem>>, %arg4: memref<1x64x128xbf16, #tpu.memory_space<vmem>>) attributes {dimension_semantics = [#tpu.dimension_semantics<parallel>], iteration_bounds = array<i64: 2>, scalar_prefetch = 0 : i64, scratch_operands = 0 : i64, tpu.core_type = #tpu.core_type<tc>, window_params = [{transform_indices = @transform_0, window_bounds = array<i64: 1, 112, 128>}, {pipeline_mode = #tpu.pipeline_mode<synchronous>, transform_indices = @transform_1, window_bounds = array<i64: 7, 128, 128>}, {pipeline_mode = #tpu.pipeline_mode<synchronous>, transform_indices = @transform_2, window_bounds = array<i64: 1, 128>}, {transform_indices = @transform_3, window_bounds = array<i64: 1, 64, 128>}]} {
    %c0 = arith.constant 0 : index
    %c0_0 = arith.constant 0 : index
    %c0_1 = arith.constant 0 : index
    %0 = vector.load %arg1[%c0, %c0_0, %c0_1] : memref<1x112x128xbf16, #tpu.memory_space<vmem>>, vector<1x64x128xbf16>
    %1 = vector.shape_cast %0 : vector<1x64x128xbf16> to vector<64x128xbf16>
    %c0_2 = arith.constant 0 : index
    %c0_3 = arith.constant 0 : index
    %c0_4 = arith.constant 0 : index
    %2 = vector.load %arg2[%c0_2, %c0_3, %c0_4] : memref<7x128x128xbf16, #tpu.memory_space<vmem>>, vector<1x128x128xbf16>
    %3 = vector.shape_cast %2 : vector<1x128x128xbf16> to vector<128x128xbf16>
    %cst = arith.constant dense<0.000000e+00> : vector<64x128xf32>
    %4 = tpu.matmul %1, %3, %cst {dimension_numbers = #tpu.dot_dimension_numbers<[1], [0], [0], [1], [0, 0, 1, 1], [], []>} : vector<64x128xbf16>, vector<128x128xbf16>, vector<64x128xf32> -> vector<64x128xf32>
    %c0_5 = arith.constant 0 : index
    %c8 = arith.constant 8 : index
    %c0_6 = arith.constant 0 : index
    %5 = vector.load %arg1[%c0_5, %c8, %c0_6] : memref<1x112x128xbf16, #tpu.memory_space<vmem>>, vector<1x64x128xbf16>
    %6 = vector.shape_cast %5 : vector<1x64x128xbf16> to vector<64x128xbf16>
    %c1 = arith.constant 1 : index
    %c0_7 = arith.constant 0 : index
    %c0_8 = arith.constant 0 : index
    %7 = vector.load %arg2[%c1, %c0_7, %c0_8] : memref<7x128x128xbf16, #tpu.memory_space<vmem>>, vector<1x128x128xbf16>
    %8 = vector.shape_cast %7 : vector<1x128x128xbf16> to vector<128x128xbf16>
    %cst_9 = arith.constant dense<0.000000e+00> : vector<64x128xf32>
    %9 = tpu.matmul %6, %8, %cst_9 {dimension_numbers = #tpu.dot_dimension_numbers<[1], [0], [0], [1], [0, 0, 1, 1], [], []>} : vector<64x128xbf16>, vector<128x128xbf16>, vector<64x128xf32> -> vector<64x128xf32>
    %10 = arith.addf %4, %9 : vector<64x128xf32>
    %c0_10 = arith.constant 0 : index
    %c16 = arith.constant 16 : index
    %c0_11 = arith.constant 0 : index
    %11 = vector.load %arg1[%c0_10, %c16, %c0_11] : memref<1x112x128xbf16, #tpu.memory_space<vmem>>, vector<1x64x128xbf16>
    %12 = vector.shape_cast %11 : vector<1x64x128xbf16> to vector<64x128xbf16>
    %c2 = arith.constant 2 : index
    %c0_12 = arith.constant 0 : index
    %c0_13 = arith.constant 0 : index
    %13 = vector.load %arg2[%c2, %c0_12, %c0_13] : memref<7x128x128xbf16, #tpu.memory_space<vmem>>, vector<1x128x128xbf16>
    %14 = vector.shape_cast %13 : vector<1x128x128xbf16> to vector<128x128xbf16>
    %cst_14 = arith.constant dense<0.000000e+00> : vector<64x128xf32>
    %15 = tpu.matmul %12, %14, %cst_14 {dimension_numbers = #tpu.dot_dimension_numbers<[1], [0], [0], [1], [0, 0, 1, 1], [], []>} : vector<64x128xbf16>, vector<128x128xbf16>, vector<64x128xf32> -> vector<64x128xf32>
    %16 = arith.addf %10, %15 : vector<64x128xf32>
    %c0_15 = arith.constant 0 : index
    %c24 = arith.constant 24 : index
    %c0_16 = arith.constant 0 : index
    %17 = vector.load %arg1[%c0_15, %c24, %c0_16] : memref<1x112x128xbf16, #tpu.memory_space<vmem>>, vector<1x64x128xbf16>
    %18 = vector.shape_cast %17 : vector<1x64x128xbf16> to vector<64x128xbf16>
    %c3 = arith.constant 3 : index
    %c0_17 = arith.constant 0 : index
    %c0_18 = arith.constant 0 : index
    %19 = vector.load %arg2[%c3, %c0_17, %c0_18] : memref<7x128x128xbf16, #tpu.memory_space<vmem>>, vector<1x128x128xbf16>
    %20 = vector.shape_cast %19 : vector<1x128x128xbf16> to vector<128x128xbf16>
    %cst_19 = arith.constant dense<0.000000e+00> : vector<64x128xf32>
    %21 = tpu.matmul %18, %20, %cst_19 {dimension_numbers = #tpu.dot_dimension_numbers<[1], [0], [0], [1], [0, 0, 1, 1], [], []>} : vector<64x128xbf16>, vector<128x128xbf16>, vector<64x128xf32> -> vector<64x128xf32>
    %22 = arith.addf %16, %21 : vector<64x128xf32>
    %c0_20 = arith.constant 0 : index
    %c32 = arith.constant 32 : index
    %c0_21 = arith.constant 0 : index
    %23 = vector.load %arg1[%c0_20, %c32, %c0_21] : memref<1x112x128xbf16, #tpu.memory_space<vmem>>, vector<1x64x128xbf16>
    %24 = vector.shape_cast %23 : vector<1x64x128xbf16> to vector<64x128xbf16>
    %c4 = arith.constant 4 : index
    %c0_22 = arith.constant 0 : index
    %c0_23 = arith.constant 0 : index
    %25 = vector.load %arg2[%c4, %c0_22, %c0_23] : memref<7x128x128xbf16, #tpu.memory_space<vmem>>, vector<1x128x128xbf16>
    %26 = vector.shape_cast %25 : vector<1x128x128xbf16> to vector<128x128xbf16>
    %cst_24 = arith.constant dense<0.000000e+00> : vector<64x128xf32>
    %27 = tpu.matmul %24, %26, %cst_24 {dimension_numbers = #tpu.dot_dimension_numbers<[1], [0], [0], [1], [0, 0, 1, 1], [], []>} : vector<64x128xbf16>, vector<128x128xbf16>, vector<64x128xf32> -> vector<64x128xf32>
    %28 = arith.addf %22, %27 : vector<64x128xf32>
    %c0_25 = arith.constant 0 : index
    %c40 = arith.constant 40 : index
    %c0_26 = arith.constant 0 : index
    %29 = vector.load %arg1[%c0_25, %c40, %c0_26] : memref<1x112x128xbf16, #tpu.memory_space<vmem>>, vector<1x64x128xbf16>
    %30 = vector.shape_cast %29 : vector<1x64x128xbf16> to vector<64x128xbf16>
    %c5 = arith.constant 5 : index
    %c0_27 = arith.constant 0 : index
    %c0_28 = arith.constant 0 : index
    %31 = vector.load %arg2[%c5, %c0_27, %c0_28] : memref<7x128x128xbf16, #tpu.memory_space<vmem>>, vector<1x128x128xbf16>
    %32 = vector.shape_cast %31 : vector<1x128x128xbf16> to vector<128x128xbf16>
    %cst_29 = arith.constant dense<0.000000e+00> : vector<64x128xf32>
    %33 = tpu.matmul %30, %32, %cst_29 {dimension_numbers = #tpu.dot_dimension_numbers<[1], [0], [0], [1], [0, 0, 1, 1], [], []>} : vector<64x128xbf16>, vector<128x128xbf16>, vector<64x128xf32> -> vector<64x128xf32>
    %34 = arith.addf %28, %33 : vector<64x128xf32>
    %c0_30 = arith.constant 0 : index
    %c48 = arith.constant 48 : index
    %c0_31 = arith.constant 0 : index
    %35 = vector.load %arg1[%c0_30, %c48, %c0_31] : memref<1x112x128xbf16, #tpu.memory_space<vmem>>, vector<1x64x128xbf16>
    %36 = vector.shape_cast %35 : vector<1x64x128xbf16> to vector<64x128xbf16>
    %c6 = arith.constant 6 : index
    %c0_32 = arith.constant 0 : index
    %c0_33 = arith.constant 0 : index
    %37 = vector.load %arg2[%c6, %c0_32, %c0_33] : memref<7x128x128xbf16, #tpu.memory_space<vmem>>, vector<1x128x128xbf16>
    %38 = vector.shape_cast %37 : vector<1x128x128xbf16> to vector<128x128xbf16>
    %cst_34 = arith.constant dense<0.000000e+00> : vector<64x128xf32>
    %39 = tpu.matmul %36, %38, %cst_34 {dimension_numbers = #tpu.dot_dimension_numbers<[1], [0], [0], [1], [0, 0, 1, 1], [], []>} : vector<64x128xbf16>, vector<128x128xbf16>, vector<64x128xf32> -> vector<64x128xf32>
    %40 = arith.addf %34, %39 : vector<64x128xf32>
    %c0_35 = arith.constant 0 : index
    %c0_36 = arith.constant 0 : index
    %41 = vector.load %arg3[%c0_35, %c0_36] : memref<1x128xf32, #tpu.memory_space<vmem>>, vector<1x128xf32>
    %42 = vector.broadcast %41 : vector<1x128xf32> to vector<64x128xf32>
    %43 = arith.addf %40, %42 : vector<64x128xf32>
    %cst_37 = arith.constant 0.000000e+00 : f32
    %44 = vector.broadcast %cst_37 : f32 to vector<64x128xf32>
    %45 = arith.maximumf %43, %44 : vector<64x128xf32>
    %46 = arith.truncf %45 : vector<64x128xf32> to vector<64x128xbf16>
    %c0_38 = arith.constant 0 : index
    %c0_39 = arith.constant 0 : index
    %c0_40 = arith.constant 0 : index
    %47 = vector.load %arg4[%c0_38, %c0_39, %c0_40] : memref<1x64x128xbf16, #tpu.memory_space<vmem>>, vector<1x64x128xbf16>
    %48 = vector.shape_cast %47 : vector<1x64x128xbf16> to vector<64x128xbf16>
    %49 = vector.shape_cast %46 : vector<64x128xbf16> to vector<1x64x128xbf16>
    tpu.vector_store %arg4[%c0_38, %c0_39, %c0_40], %49 {strides = array<i32>} : memref<1x64x128xbf16, #tpu.memory_space<vmem>>, vector<1x64x128xbf16>,
    return
  }
  func.func @transform_0(%arg0: i32) -> (i32, i32, i32) {
    %c0_i32 = arith.constant 0 : i32
    %c0_i32_0 = arith.constant 0 : i32
    %c0_i32_1 = arith.constant 0 : i32
    return %arg0, %c0_i32, %c0_i32_0 : i32, i32, i32
  }
  func.func @transform_1(%arg0: i32) -> (i32, i32, i32) {
    %c0_i32 = arith.constant 0 : i32
    %c0_i32_0 = arith.constant 0 : i32
    %c0_i32_1 = arith.constant 0 : i32
    %c0_i32_2 = arith.constant 0 : i32
    return %c0_i32, %c0_i32_0, %c0_i32_1 : i32, i32, i32
  }
  func.func @transform_2(%arg0: i32) -> (i32, i32) {
    %c0_i32 = arith.constant 0 : i32
    %c0_i32_0 = arith.constant 0 : i32
    %c0_i32_1 = arith.constant 0 : i32
    return %c0_i32, %c0_i32_0 : i32, i32
  }
  func.func @transform_3(%arg0: i32) -> (i32, i32, i32) {
    %c0_i32 = arith.constant 0 : i32
    %c0_i32_0 = arith.constant 0 : i32
    %c0_i32_1 = arith.constant 0 : i32
    return %arg0, %c0_i32, %c0_i32_0 : i32, i32, i32
  }
}

module attributes {stable_mosaic.version = 11 : i64} {
  func.func @_sep7_bias_relu_kernel(%arg0: i32, %arg1: memref<1x112x128xbf16, #tpu.memory_space<vmem>>, %arg2: memref<7x128x256xbf16, #tpu.memory_space<vmem>>, %arg3: memref<1x256xf32, #tpu.memory_space<vmem>>, %arg4: memref<1x64x256xf32, #tpu.memory_space<vmem>>) attributes {dimension_semantics = [#tpu.dimension_semantics<parallel>], iteration_bounds = array<i64: 2>, scalar_prefetch = 0 : i64, scratch_operands = 0 : i64, tpu.core_type = #tpu.core_type<tc>, window_params = [{transform_indices = @transform_0, window_bounds = array<i64: 1, 112, 128>}, {pipeline_mode = #tpu.pipeline_mode<synchronous>, transform_indices = @transform_1, window_bounds = array<i64: 7, 128, 256>}, {pipeline_mode = #tpu.pipeline_mode<synchronous>, transform_indices = @transform_2, window_bounds = array<i64: 1, 256>}, {transform_indices = @transform_3, window_bounds = array<i64: 1, 64, 256>}]} {
    %c0 = arith.constant 0 : index
    %c0_0 = arith.constant 0 : index
    %c0_1 = arith.constant 0 : index
    %0 = vector.load %arg1[%c0, %c0_0, %c0_1] : memref<1x112x128xbf16, #tpu.memory_space<vmem>>, vector<1x64x128xbf16>
    %1 = vector.shape_cast %0 : vector<1x64x128xbf16> to vector<64x128xbf16>
    %c0_2 = arith.constant 0 : index
    %c0_3 = arith.constant 0 : index
    %c0_4 = arith.constant 0 : index
    %2 = vector.load %arg2[%c0_2, %c0_3, %c0_4] : memref<7x128x256xbf16, #tpu.memory_space<vmem>>, vector<1x128x256xbf16>
    %3 = vector.shape_cast %2 : vector<1x128x256xbf16> to vector<128x256xbf16>
    %cst = arith.constant dense<0.000000e+00> : vector<64x256xf32>
    %4 = tpu.matmul %1, %3, %cst {dimension_numbers = #tpu.dot_dimension_numbers<[1], [0], [0], [1], [0, 0, 1, 1], [], []>} : vector<64x128xbf16>, vector<128x256xbf16>, vector<64x256xf32> -> vector<64x256xf32>
    %c0_5 = arith.constant 0 : index
    %c8 = arith.constant 8 : index
    %c0_6 = arith.constant 0 : index
    %5 = vector.load %arg1[%c0_5, %c8, %c0_6] : memref<1x112x128xbf16, #tpu.memory_space<vmem>>, vector<1x64x128xbf16>
    %6 = vector.shape_cast %5 : vector<1x64x128xbf16> to vector<64x128xbf16>
    %c1 = arith.constant 1 : index
    %c0_7 = arith.constant 0 : index
    %c0_8 = arith.constant 0 : index
    %7 = vector.load %arg2[%c1, %c0_7, %c0_8] : memref<7x128x256xbf16, #tpu.memory_space<vmem>>, vector<1x128x256xbf16>
    %8 = vector.shape_cast %7 : vector<1x128x256xbf16> to vector<128x256xbf16>
    %cst_9 = arith.constant dense<0.000000e+00> : vector<64x256xf32>
    %9 = tpu.matmul %6, %8, %cst_9 {dimension_numbers = #tpu.dot_dimension_numbers<[1], [0], [0], [1], [0, 0, 1, 1], [], []>} : vector<64x128xbf16>, vector<128x256xbf16>, vector<64x256xf32> -> vector<64x256xf32>
    %10 = arith.addf %4, %9 : vector<64x256xf32>
    %c0_10 = arith.constant 0 : index
    %c16 = arith.constant 16 : index
    %c0_11 = arith.constant 0 : index
    %11 = vector.load %arg1[%c0_10, %c16, %c0_11] : memref<1x112x128xbf16, #tpu.memory_space<vmem>>, vector<1x64x128xbf16>
    %12 = vector.shape_cast %11 : vector<1x64x128xbf16> to vector<64x128xbf16>
    %c2 = arith.constant 2 : index
    %c0_12 = arith.constant 0 : index
    %c0_13 = arith.constant 0 : index
    %13 = vector.load %arg2[%c2, %c0_12, %c0_13] : memref<7x128x256xbf16, #tpu.memory_space<vmem>>, vector<1x128x256xbf16>
    %14 = vector.shape_cast %13 : vector<1x128x256xbf16> to vector<128x256xbf16>
    %cst_14 = arith.constant dense<0.000000e+00> : vector<64x256xf32>
    %15 = tpu.matmul %12, %14, %cst_14 {dimension_numbers = #tpu.dot_dimension_numbers<[1], [0], [0], [1], [0, 0, 1, 1], [], []>} : vector<64x128xbf16>, vector<128x256xbf16>, vector<64x256xf32> -> vector<64x256xf32>
    %16 = arith.addf %10, %15 : vector<64x256xf32>
    %c0_15 = arith.constant 0 : index
    %c24 = arith.constant 24 : index
    %c0_16 = arith.constant 0 : index
    %17 = vector.load %arg1[%c0_15, %c24, %c0_16] : memref<1x112x128xbf16, #tpu.memory_space<vmem>>, vector<1x64x128xbf16>
    %18 = vector.shape_cast %17 : vector<1x64x128xbf16> to vector<64x128xbf16>
    %c3 = arith.constant 3 : index
    %c0_17 = arith.constant 0 : index
    %c0_18 = arith.constant 0 : index
    %19 = vector.load %arg2[%c3, %c0_17, %c0_18] : memref<7x128x256xbf16, #tpu.memory_space<vmem>>, vector<1x128x256xbf16>
    %20 = vector.shape_cast %19 : vector<1x128x256xbf16> to vector<128x256xbf16>
    %cst_19 = arith.constant dense<0.000000e+00> : vector<64x256xf32>
    %21 = tpu.matmul %18, %20, %cst_19 {dimension_numbers = #tpu.dot_dimension_numbers<[1], [0], [0], [1], [0, 0, 1, 1], [], []>} : vector<64x128xbf16>, vector<128x256xbf16>, vector<64x256xf32> -> vector<64x256xf32>
    %22 = arith.addf %16, %21 : vector<64x256xf32>
    %c0_20 = arith.constant 0 : index
    %c32 = arith.constant 32 : index
    %c0_21 = arith.constant 0 : index
    %23 = vector.load %arg1[%c0_20, %c32, %c0_21] : memref<1x112x128xbf16, #tpu.memory_space<vmem>>, vector<1x64x128xbf16>
    %24 = vector.shape_cast %23 : vector<1x64x128xbf16> to vector<64x128xbf16>
    %c4 = arith.constant 4 : index
    %c0_22 = arith.constant 0 : index
    %c0_23 = arith.constant 0 : index
    %25 = vector.load %arg2[%c4, %c0_22, %c0_23] : memref<7x128x256xbf16, #tpu.memory_space<vmem>>, vector<1x128x256xbf16>
    %26 = vector.shape_cast %25 : vector<1x128x256xbf16> to vector<128x256xbf16>
    %cst_24 = arith.constant dense<0.000000e+00> : vector<64x256xf32>
    %27 = tpu.matmul %24, %26, %cst_24 {dimension_numbers = #tpu.dot_dimension_numbers<[1], [0], [0], [1], [0, 0, 1, 1], [], []>} : vector<64x128xbf16>, vector<128x256xbf16>, vector<64x256xf32> -> vector<64x256xf32>
    %28 = arith.addf %22, %27 : vector<64x256xf32>
    %c0_25 = arith.constant 0 : index
    %c40 = arith.constant 40 : index
    %c0_26 = arith.constant 0 : index
    %29 = vector.load %arg1[%c0_25, %c40, %c0_26] : memref<1x112x128xbf16, #tpu.memory_space<vmem>>, vector<1x64x128xbf16>
    %30 = vector.shape_cast %29 : vector<1x64x128xbf16> to vector<64x128xbf16>
    %c5 = arith.constant 5 : index
    %c0_27 = arith.constant 0 : index
    %c0_28 = arith.constant 0 : index
    %31 = vector.load %arg2[%c5, %c0_27, %c0_28] : memref<7x128x256xbf16, #tpu.memory_space<vmem>>, vector<1x128x256xbf16>
    %32 = vector.shape_cast %31 : vector<1x128x256xbf16> to vector<128x256xbf16>
    %cst_29 = arith.constant dense<0.000000e+00> : vector<64x256xf32>
    %33 = tpu.matmul %30, %32, %cst_29 {dimension_numbers = #tpu.dot_dimension_numbers<[1], [0], [0], [1], [0, 0, 1, 1], [], []>} : vector<64x128xbf16>, vector<128x256xbf16>, vector<64x256xf32> -> vector<64x256xf32>
    %34 = arith.addf %28, %33 : vector<64x256xf32>
    %c0_30 = arith.constant 0 : index
    %c48 = arith.constant 48 : index
    %c0_31 = arith.constant 0 : index
    %35 = vector.load %arg1[%c0_30, %c48, %c0_31] : memref<1x112x128xbf16, #tpu.memory_space<vmem>>, vector<1x64x128xbf16>
    %36 = vector.shape_cast %35 : vector<1x64x128xbf16> to vector<64x128xbf16>
    %c6 = arith.constant 6 : index
    %c0_32 = arith.constant 0 : index
    %c0_33 = arith.constant 0 : index
    %37 = vector.load %arg2[%c6, %c0_32, %c0_33] : memref<7x128x256xbf16, #tpu.memory_space<vmem>>, vector<1x128x256xbf16>
    %38 = vector.shape_cast %37 : vector<1x128x256xbf16> to vector<128x256xbf16>
    %cst_34 = arith.constant dense<0.000000e+00> : vector<64x256xf32>
    %39 = tpu.matmul %36, %38, %cst_34 {dimension_numbers = #tpu.dot_dimension_numbers<[1], [0], [0], [1], [0, 0, 1, 1], [], []>} : vector<64x128xbf16>, vector<128x256xbf16>, vector<64x256xf32> -> vector<64x256xf32>
    %40 = arith.addf %34, %39 : vector<64x256xf32>
    %c0_35 = arith.constant 0 : index
    %c0_36 = arith.constant 0 : index
    %41 = vector.load %arg3[%c0_35, %c0_36] : memref<1x256xf32, #tpu.memory_space<vmem>>, vector<1x256xf32>
    %42 = vector.broadcast %41 : vector<1x256xf32> to vector<64x256xf32>
    %43 = arith.addf %40, %42 : vector<64x256xf32>
    %cst_37 = arith.constant 0.000000e+00 : f32
    %44 = vector.broadcast %cst_37 : f32 to vector<64x256xf32>
    %45 = arith.maximumf %43, %44 : vector<64x256xf32>
    %c0_38 = arith.constant 0 : index
    %c0_39 = arith.constant 0 : index
    %c0_40 = arith.constant 0 : index
    %46 = vector.load %arg4[%c0_38, %c0_39, %c0_40] : memref<1x64x256xf32, #tpu.memory_space<vmem>>, vector<1x64x256xf32>
    %47 = vector.shape_cast %46 : vector<1x64x256xf32> to vector<64x256xf32>
    %48 = vector.shape_cast %45 : vector<64x256xf32> to vector<1x64x256xf32>
    tpu.vector_store %arg4[%c0_38, %c0_39, %c0_40], %48 {strides = array<i32>} : memref<1x64x256xf32, #tpu.memory_space<vmem>>, vector<1x64x256xf32>,
    return
  }
  func.func @transform_0(%arg0: i32) -> (i32, i32, i32) {
    %c0_i32 = arith.constant 0 : i32
    %c0_i32_0 = arith.constant 0 : i32
    %c0_i32_1 = arith.constant 0 : i32
    return %arg0, %c0_i32, %c0_i32_0 : i32, i32, i32
  }
  func.func @transform_1(%arg0: i32) -> (i32, i32, i32) {
    %c0_i32 = arith.constant 0 : i32
    %c0_i32_0 = arith.constant 0 : i32
    %c0_i32_1 = arith.constant 0 : i32
    %c0_i32_2 = arith.constant 0 : i32
    return %c0_i32, %c0_i32_0, %c0_i32_1 : i32, i32, i32
  }
  func.func @transform_2(%arg0: i32) -> (i32, i32) {
    %c0_i32 = arith.constant 0 : i32
    %c0_i32_0 = arith.constant 0 : i32
    %c0_i32_1 = arith.constant 0 : i32
    return %c0_i32, %c0_i32_0 : i32, i32
  }
  func.func @transform_3(%arg0: i32) -> (i32, i32, i32) {
    %c0_i32 = arith.constant 0 : i32
    %c0_i32_0 = arith.constant 0 : i32
    %c0_i32_1 = arith.constant 0 : i32
    return %arg0, %c0_i32, %c0_i32_0 : i32, i32, i32
  }
}

</mosaic_0001>

<llo_original>
// kernel: inception_c_forward.8
$region0: #{inception_c_forward.8}
  #allocation0 [shape = 'u32[]', space=smem, size = 0x4, offset = 0x4, fixed_abs, tag = 'smem constant byte address 0x4 - core index']
  #allocation1 [shape = 'u32[144,128]{1,0:T(1,128)}', space=vmem, size = 0x12000, scoped, tag = 'internal scratch']
  %s0 = inlined_call_operand.vmem [shape: bf16[128,16], index: 0, kind: input, shape index: {}]
  %s1 = inlined_call_operand.vmem [shape: bf16[16,512], index: 1, kind: input, shape index: {}]
  %s2 = inlined_call_operand.vmem [shape: f32[1,512], index: 2, kind: input, shape index: {}]
  %s3 = inlined_call_operand.vmem [shape: f32[128,512], index: 3, kind: output, shape index: {}]
  %s4 = sld [smem:[#allocation0]]
  $region22: #{inception_c_forward.8} parent=0
    _
  %s6 = ssub.s32 1, %s4
  %s7 = scalar_select 0, %s6, %s4
  // Predicated region
  $region2: #{inception_c_forward.8} parent=0 // pred_check
    _
  $region3: #{inception_c_forward.8} parent=0 // pred_check_branch
    %9 = sbr.rel (0) target = $region5
  $region4: #{inception_c_forward.8} parent=0 // pred_region
    _
  $region5: #{inception_c_forward.8} parent=0 // pred_fallthru
    _
  // Predicated region
  $region6: #{inception_c_forward.8} parent=0 // pred_check
    _
  $region7: #{inception_c_forward.8} parent=0 // pred_check_branch
    %11 = sbr.rel (0) target = $region9
  $region8: #{inception_c_forward.8} parent=0 // pred_region
    _
  $region9: #{inception_c_forward.8} parent=0 // pred_fallthru
    _
  // Predicated region
  $region10: #{inception_c_forward.8} parent=0 // pred_check
    _
  $region11: #{inception_c_forward.8} parent=0 // pred_check_branch
    %13 = sbr.rel (0) target = $region13
  $region12: #{inception_c_forward.8} parent=0 // pred_region
    _
  $region13: #{inception_c_forward.8} parent=0 // pred_fallthru
    _
  %v15 = vld [vmem:[%s0] sm:$0xf]
  %v16 = vld [vmem:[%s0 + $0x4] sm:$0xf]
  %v17 = vld [vmem:[%s0 + $0x8] sm:$0xf]
  %v18 = vld [vmem:[%s0 + $0xc] sm:$0xf]
  %v19 = vld [vmem:[%s0 + $0x10] sm:$0xf]
  %v20 = vld [vmem:[%s0 + $0x14] sm:$0xf]
  %v21 = vld [vmem:[%s0 + $0x18] sm:$0xf]
  %v22 = vld [vmem:[%s0 + $0x1c] sm:$0xf]
  %v23 = vld [vmem:[%s0 + $0x20] sm:$0xf]
  %v24 = vld [vmem:[%s0 + $0x24] sm:$0xf]
  %v25 = vld [vmem:[%s0 + $0x28] sm:$0xf]
  %v26 = vld [vmem:[%s0 + $0x2c] sm:$0xf]
  %v27 = vld [vmem:[%s0 + $0x30] sm:$0xf]
  %v28 = vld [vmem:[%s0 + $0x34] sm:$0xf]
  %v29 = vld [vmem:[%s0 + $0x38] sm:$0xf]
  %v30 = vld [vmem:[%s0 + $0x3c] sm:$0xf]
  %v31 = vld [vmem:[%s1] sm:$0xff]
  %v32 = vld [vmem:[%s1 + $0x8] sm:$0xff]
  %v33 = vld [vmem:[%s1 + $0x10] sm:$0xff]
  %v34 = vld [vmem:[%s1 + $0x18] sm:$0xff]
  %v35 = vld [vmem:[%s2] sm:$0xf]
  %v37 = vlaneseq
  %v38 = vshrl.u32 %v37, 7
  %v39 = vsub.s32 0, %v38
  %v40 = vrot.slane %v35, %v39
  %v41 = vlaneseq
  %v42 = vshrl.u32 %v41, 7
  %v43 = vsub.s32 1, %v42
  %v44 = vrot.slane %v35, %v43
  %v45 = vlaneseq
  %v46 = vshrl.u32 %v45, 7
  %v47 = vsub.s32 2, %v46
  %v48 = vrot.slane %v35, %v47
  %v49 = vlaneseq
  %v50 = vshrl.u32 %v49, 7
  %v51 = vsub.s32 3, %v50
  %v52 = vrot.slane %v35, %v51
  %v73 = vunpack.c.l.b16 %v15
  %v74 = vunpack.c.l.b16 %v16
  %v75 = vunpack.c.l.b16 %v17
  %v76 = vunpack.c.l.b16 %v18
  %v77 = vunpack.c.l.b16 %v19
  %v78 = vunpack.c.l.b16 %v20
  %v79 = vunpack.c.l.b16 %v21
  %v80 = vunpack.c.l.b16 %v22
  %v81 = vunpack.c.l.b16 %v23
  %v82 = vunpack.c.l.b16 %v24
  %v83 = vunpack.c.l.b16 %v25
  %v84 = vunpack.c.l.b16 %v26
  %v85 = vunpack.c.l.b16 %v27
  %v86 = vunpack.c.l.b16 %v28
  %v87 = vunpack.c.l.b16 %v29
  %v88 = vunpack.c.l.b16 %v30
  %v89 = vpack.c.b16 %v74, %v73
  %v90 = vpack.c.b16 %v76, %v75
  %v91 = vpack.c.b16 %v78, %v77
  %v92 = vpack.c.b16 %v80, %v79
  %v93 = vpack.c.b16 %v82, %v81
  %v94 = vpack.c.b16 %v84, %v83
  %v95 = vpack.c.b16 %v86, %v85
  %v96 = vpack.c.b16 %v88, %v87
  %v101 = vunpack.c.l.b16 %v31
  %v102 = vunpack.c.h.b16 %v31
  %v103 = vunpack.c.l.b16 %v32
  %v104 = vunpack.c.h.b16 %v32
  %v105 = vunpack.c.l.b16 %v33
  %v106 = vunpack.c.h.b16 %v33
  %v107 = vunpack.c.l.b16 %v34
  %v108 = vunpack.c.h.b16 %v34
  %v109 = vpack.c.b16 %v105, %v101
  %v110 = vpack.c.b16 %v106, %v102
  %v111 = vpack.c.b16 %v107, %v103
  %v112 = vpack.c.b16 %v108, %v104
  %vm117 = vcmask 130048
  %v119 = vsel %vm117, %v89, 0
  %v122 = vsel %vm117, %v90, 0
  %v125 = vsel %vm117, %v91, 0
  %v128 = vsel %vm117, %v92, 0
  %v131 = vsel %vm117, %v93, 0
  %v134 = vsel %vm117, %v94, 0
  %v137 = vsel %vm117, %v95, 0
  %v140 = vsel %vm117, %v96, 0
  %142 = vmatprep.subr.bf16.mxu0 %v110
  %143 = vmatpush1.bf16.msra.mxu0 %v109
  %144 = vmatprep.subr.bf16.mxu0 0
  %145 = vmatpush1.bf16.msra.mxu0 0
  %146 = vmatprep.subr.bf16.mxu0 0
  %147 = vmatpush1.bf16.msra.mxu0 0
  %148 = vmatprep.subr.bf16.mxu0 0
  %149 = vmatpush1.bf16.msra.mxu0 0
  %150 = vmatprep.subr.bf16.mxu0 0
  %151 = vmatpush1.bf16.msra.mxu0 0
  %152 = vmatprep.subr.bf16.mxu0 0
  %153 = vmatpush1.bf16.msra.mxu0 0
  %154 = vmatprep.subr.bf16.mxu0 0
  %155 = vmatpush1.bf16.msra.mxu0 0
  %156 = vmatprep.subr.bf16.mxu0 0
  %157 = vmatpush1.bf16.msra.mxu0 0
  %158 = vmatprep.subr.bf16.mxu0 0
  %159 = vmatpush1.bf16.msra.mxu0 0
  %160 = vmatprep.subr.bf16.mxu0 0
  %161 = vmatpush1.bf16.msra.mxu0 0
  %162 = vmatprep.subr.bf16.mxu0 0
  %163 = vmatpush1.bf16.msra.mxu0 0
  %164 = vmatprep.subr.bf16.mxu0 0
  %165 = vmatpush1.bf16.msra.mxu0 0
  %166 = vmatprep.subr.bf16.mxu0 0
  %167 = vmatpush1.bf16.msra.mxu0 0
  %168 = vmatprep.subr.bf16.mxu0 0
  %169 = vmatpush1.bf16.msra.mxu0 0
  %170 = vmatprep.subr.bf16.mxu0 0
  %171 = vmatpush1.bf16.msra.mxu0 0
  %172 = vmatprep.subr.bf16.mxu0 0
  %173 = vmatpush1.bf16.msra.mxu0 0
  %174 = vmatprep.mubr.bf16.mxu0 0
  %175 = vmatmul.mubr.bf16.gmra.mrb[0].mxu0 %v119
  %v176 = vpop.f32.mrb[0].mxu0
  %v177 = vadd.f32 %v40, %v176
  %v178 = vpop.f32.mrb[0].mxu0
  %v179 = vadd.f32 %v44, %v178
  %v180 = vpop.f32.mrb[0].mxu0
  %v181 = vadd.f32 %v40, %v180
  %v182 = vpop.f32.mrb[0].mxu0
  %v183 = vadd.f32 %v44, %v182
  %184 = vmatprep.mubr.bf16.mxu0 0
  %185 = vmatmul.mubr.bf16.gmra.mrb[0].mxu0 %v122
  %v186 = vpop.f32.mrb[0].mxu0
  %v187 = vadd.f32 %v40, %v186
  %v188 = vpop.f32.mrb[0].mxu0
  %v189 = vadd.f32 %v44, %v188
  %v190 = vpop.f32.mrb[0].mxu0
  %v191 = vadd.f32 %v40, %v190
  %v192 = vpop.f32.mrb[0].mxu0
  %v193 = vadd.f32 %v44, %v192
  %194 = vmatprep.mubr.bf16.mxu0 0
  %195 = vmatmul.mubr.bf16.gmra.mrb[0].mxu0 %v125
  %v196 = vpop.f32.mrb[0].mxu0
  %v197 = vadd.f32 %v40, %v196
  %v198 = vpop.f32.mrb[0].mxu0
  %v199 = vadd.f32 %v44, %v198
  %v200 = vpop.f32.mrb[0].mxu0
  %v201 = vadd.f32 %v40, %v200
  %v202 = vpop.f32.mrb[0].mxu0
  %v203 = vadd.f32 %v44, %v202
  %204 = vmatprep.mubr.bf16.mxu0 0
  %205 = vmatmul.mubr.bf16.gmra.mrb[0].mxu0 %v128
  %v206 = vpop.f32.mrb[0].mxu0
  %v207 = vadd.f32 %v40, %v206
  %v208 = vpop.f32.mrb[0].mxu0
  %v209 = vadd.f32 %v44, %v208
  %v210 = vpop.f32.mrb[0].mxu0
  %v211 = vadd.f32 %v40, %v210
  %v212 = vpop.f32.mrb[0].mxu0
  %v213 = vadd.f32 %v44, %v212
  %214 = vmatprep.mubr.bf16.mxu0 0
  %215 = vmatmul.mubr.bf16.gmra.mrb[0].mxu0 %v131
  %v216 = vpop.f32.mrb[0].mxu0
  %v217 = vadd.f32 %v40, %v216
  %v218 = vpop.f32.mrb[0].mxu0
  %v219 = vadd.f32 %v44, %v218
  %v220 = vpop.f32.mrb[0].mxu0
  %v221 = vadd.f32 %v40, %v220
  %v222 = vpop.f32.mrb[0].mxu0
  %v223 = vadd.f32 %v44, %v222
  %224 = vmatprep.mubr.bf16.mxu0 0
  %225 = vmatmul.mubr.bf16.gmra.mrb[0].mxu0 %v134
  %v226 = vpop.f32.mrb[0].mxu0
  %v227 = vadd.f32 %v40, %v226
  %v228 = vpop.f32.mrb[0].mxu0
  %v229 = vadd.f32 %v44, %v228
  %v230 = vpop.f32.mrb[0].mxu0
  %v231 = vadd.f32 %v40, %v230
  %v232 = vpop.f32.mrb[0].mxu0
  %v233 = vadd.f32 %v44, %v232
  %234 = vmatprep.mubr.bf16.mxu0 0
  %235 = vmatmul.mubr.bf16.gmra.mrb[0].mxu0 %v137
  %v236 = vpop.f32.mrb[0].mxu0
  %v237 = vadd.f32 %v40, %v236
  %v238 = vpop.f32.mrb[0].mxu0
  %v239 = vadd.f32 %v44, %v238
  %v240 = vpop.f32.mrb[0].mxu0
  %v241 = vadd.f32 %v40, %v240
  %v242 = vpop.f32.mrb[0].mxu0
  %v243 = vadd.f32 %v44, %v242
  %244 = vmatprep.mubr.bf16.mxu0 0
  %245 = vmatmul.mubr.bf16.gmra.mrb[0].mxu0 %v140
  %v246 = vpop.f32.mrb[0].mxu0
  %v247 = vadd.f32 %v40, %v246
  %v248 = vpop.f32.mrb[0].mxu0
  %v249 = vadd.f32 %v44, %v248
  %v250 = vpop.f32.mrb[0].mxu0
  %v251 = vadd.f32 %v40, %v250
  %v252 = vpop.f32.mrb[0].mxu0
  %v253 = vadd.f32 %v44, %v252
  %254 = vdwg.mxu0
  %255 = vmatprep.subr.bf16.mxu0 %v112
  %256 = vmatpush1.bf16.msra.mxu0 %v111
  %257 = vmatprep.subr.bf16.mxu0 0
  %258 = vmatpush1.bf16.msra.mxu0 0
  %259 = vmatprep.subr.bf16.mxu0 0
  %260 = vmatpush1.bf16.msra.mxu0 0
  %261 = vmatprep.subr.bf16.mxu0 0
  %262 = vmatpush1.bf16.msra.mxu0 0
  %263 = vmatprep.subr.bf16.mxu0 0
  %264 = vmatpush1.bf16.msra.mxu0 0
  %265 = vmatprep.subr.bf16.mxu0 0
  %266 = vmatpush1.bf16.msra.mxu0 0
  %267 = vmatprep.subr.bf16.mxu0 0
  %268 = vmatpush1.bf16.msra.mxu0 0
  %269 = vmatprep.subr.bf16.mxu0 0
  %270 = vmatpush1.bf16.msra.mxu0 0
  %271 = vmatprep.subr.bf16.mxu0 0
  %272 = vmatpush1.bf16.msra.mxu0 0
  %273 = vmatprep.subr.bf16.mxu0 0
  %274 = vmatpush1.bf16.msra.mxu0 0
  %275 = vmatprep.subr.bf16.mxu0 0
  %276 = vmatpush1.bf16.msra.mxu0 0
  %277 = vmatprep.subr.bf16.mxu0 0
  %278 = vmatpush1.bf16.msra.mxu0 0
  %279 = vmatprep.subr.bf16.mxu0 0
  %280 = vmatpush1.bf16.msra.mxu0 0
  %281 = vmatprep.subr.bf16.mxu0 0
  %282 = vmatpush1.bf16.msra.mxu0 0
  %283 = vmatprep.subr.bf16.mxu0 0
  %284 = vmatpush1.bf16.msra.mxu0 0
  %285 = vmatprep.subr.bf16.mxu0 0
  %286 = vmatpush1.bf16.msra.mxu0 0
  %287 = vmatprep.mubr.bf16.mxu0 0
  %288 = vmatmul.mubr.bf16.gmra.mrb[0].mxu0 %v119
  %v289 = vpop.f32.mrb[0].mxu0
  %v290 = vadd.f32 %v48, %v289
  %v291 = vpop.f32.mrb[0].mxu0
  %v292 = vadd.f32 %v52, %v291
  %v293 = vpop.f32.mrb[0].mxu0
  %v294 = vadd.f32 %v48, %v293
  %v295 = vpop.f32.mrb[0].mxu0
  %v296 = vadd.f32 %v52, %v295
  %297 = vmatprep.mubr.bf16.mxu0 0
  %298 = vmatmul.mubr.bf16.gmra.mrb[0].mxu0 %v122
  %v299 = vpop.f32.mrb[0].mxu0
  %v300 = vadd.f32 %v48, %v299
  %v301 = vpop.f32.mrb[0].mxu0
  %v302 = vadd.f32 %v52, %v301
  %v303 = vpop.f32.mrb[0].mxu0
  %v304 = vadd.f32 %v48, %v303
  %v305 = vpop.f32.mrb[0].mxu0
  %v306 = vadd.f32 %v52, %v305
  %307 = vmatprep.mubr.bf16.mxu0 0
  %308 = vmatmul.mubr.bf16.gmra.mrb[0].mxu0 %v125
  %v309 = vpop.f32.mrb[0].mxu0
  %v310 = vadd.f32 %v48, %v309
  %v311 = vpop.f32.mrb[0].mxu0
  %v312 = vadd.f32 %v52, %v311
  %v313 = vpop.f32.mrb[0].mxu0
  %v314 = vadd.f32 %v48, %v313
  %v315 = vpop.f32.mrb[0].mxu0
  %v316 = vadd.f32 %v52, %v315
  %317 = vmatprep.mubr.bf16.mxu0 0
  %318 = vmatmul.mubr.bf16.gmra.mrb[0].mxu0 %v128
  %v319 = vpop.f32.mrb[0].mxu0
  %v320 = vadd.f32 %v48, %v319
  %v321 = vpop.f32.mrb[0].mxu0
  %v322 = vadd.f32 %v52, %v321
  %v323 = vpop.f32.mrb[0].mxu0
  %v324 = vadd.f32 %v48, %v323
  %v325 = vpop.f32.mrb[0].mxu0
  %v326 = vadd.f32 %v52, %v325
  %327 = vmatprep.mubr.bf16.mxu0 0
  %328 = vmatmul.mubr.bf16.gmra.mrb[0].mxu0 %v131
  %v329 = vpop.f32.mrb[0].mxu0
  %v330 = vadd.f32 %v48, %v329
  %v331 = vpop.f32.mrb[0].mxu0
  %v332 = vadd.f32 %v52, %v331
  %v333 = vpop.f32.mrb[0].mxu0
  %v334 = vadd.f32 %v48, %v333
  %v335 = vpop.f32.mrb[0].mxu0
  %v336 = vadd.f32 %v52, %v335
  %337 = vmatprep.mubr.bf16.mxu0 0
  %338 = vmatmul.mubr.bf16.gmra.mrb[0].mxu0 %v134
  %v339 = vpop.f32.mrb[0].mxu0
  %v340 = vadd.f32 %v48, %v339
  %v341 = vpop.f32.mrb[0].mxu0
  %v342 = vadd.f32 %v52, %v341
  %v343 = vpop.f32.mrb[0].mxu0
  %v344 = vadd.f32 %v48, %v343
  %v345 = vpop.f32.mrb[0].mxu0
  %v346 = vadd.f32 %v52, %v345
  %347 = vmatprep.mubr.bf16.mxu0 0
  %348 = vmatmul.mubr.bf16.gmra.mrb[0].mxu0 %v137
  %v349 = vpop.f32.mrb[0].mxu0
  %v350 = vadd.f32 %v48, %v349
  %v351 = vpop.f32.mrb[0].mxu0
  %v352 = vadd.f32 %v52, %v351
  %v353 = vpop.f32.mrb[0].mxu0
  %v354 = vadd.f32 %v48, %v353
  %v355 = vpop.f32.mrb[0].mxu0
  %v356 = vadd.f32 %v52, %v355
  %357 = vmatprep.mubr.bf16.mxu0 0
  %358 = vmatmul.mubr.bf16.gmra.mrb[0].mxu0 %v140
  %v359 = vpop.f32.mrb[0].mxu0
  %v360 = vadd.f32 %v48, %v359
  %v361 = vpop.f32.mrb[0].mxu0
  %v362 = vadd.f32 %v52, %v361
  %v363 = vpop.f32.mrb[0].mxu0
  %v364 = vadd.f32 %v48, %v363
  %v365 = vpop.f32.mrb[0].mxu0
  %v366 = vadd.f32 %v52, %v365
  %367 = vdwg.mxu0
  %v368 = vmax.f32 %v177, 0.0
  %v369 = vmax.f32 %v179, 0.0
  %v370 = vmax.f32 %v290, 0.0
  %v371 = vmax.f32 %v292, 0.0
  %v372 = vmax.f32 %v181, 0.0
  %v373 = vmax.f32 %v183, 0.0
  %v374 = vmax.f32 %v294, 0.0
  %v375 = vmax.f32 %v296, 0.0
  %v376 = vmax.f32 %v187, 0.0
  %v377 = vmax.f32 %v189, 0.0
  %v378 = vmax.f32 %v300, 0.0
  %v379 = vmax.f32 %v302, 0.0
  %v380 = vmax.f32 %v191, 0.0
  %v381 = vmax.f32 %v193, 0.0
  %v382 = vmax.f32 %v304, 0.0
  %v383 = vmax.f32 %v306, 0.0
  %v384 = vmax.f32 %v197, 0.0
  %v385 = vmax.f32 %v199, 0.0
  %v386 = vmax.f32 %v310, 0.0
  %v387 = vmax.f32 %v312, 0.0
  %v388 = vmax.f32 %v201, 0.0
  %v389 = vmax.f32 %v203, 0.0
  %v390 = vmax.f32 %v314, 0.0
  %v391 = vmax.f32 %v316, 0.0
  %v392 = vmax.f32 %v207, 0.0
  %v393 = vmax.f32 %v209, 0.0
  %v394 = vmax.f32 %v320, 0.0
  %v395 = vmax.f32 %v322, 0.0
  %v396 = vmax.f32 %v211, 0.0
  %v397 = vmax.f32 %v213, 0.0
  %v398 = vmax.f32 %v324, 0.0
  %v399 = vmax.f32 %v326, 0.0
  %v400 = vmax.f32 %v217, 0.0
  %v401 = vmax.f32 %v219, 0.0
  %v402 = vmax.f32 %v330, 0.0
  %v403 = vmax.f32 %v332, 0.0
  %v404 = vmax.f32 %v221, 0.0
  %v405 = vmax.f32 %v223, 0.0
  %v406 = vmax.f32 %v334, 0.0
  %v407 = vmax.f32 %v336, 0.0
  %v408 = vmax.f32 %v227, 0.0
  %v409 = vmax.f32 %v229, 0.0
  %v410 = vmax.f32 %v340, 0.0
  %v411 = vmax.f32 %v342, 0.0
  %v412 = vmax.f32 %v231, 0.0
  %v413 = vmax.f32 %v233, 0.0
  %v414 = vmax.f32 %v344, 0.0
  %v415 = vmax.f32 %v346, 0.0
  %v416 = vmax.f32 %v237, 0.0
  %v417 = vmax.f32 %v239, 0.0
  %v418 = vmax.f32 %v350, 0.0
  %v419 = vmax.f32 %v352, 0.0
  %v420 = vmax.f32 %v241, 0.0
  %v421 = vmax.f32 %v243, 0.0
  %v422 = vmax.f32 %v354, 0.0
  %v423 = vmax.f32 %v356, 0.0
  %v424 = vmax.f32 %v247, 0.0
  %v425 = vmax.f32 %v249, 0.0
  %v426 = vmax.f32 %v360, 0.0
  %v427 = vmax.f32 %v362, 0.0
  %v428 = vmax.f32 %v251, 0.0
  %v429 = vmax.f32 %v253, 0.0
  %v430 = vmax.f32 %v364, 0.0
  %v431 = vmax.f32 %v366, 0.0
  %432 = vst [vmem:[%s3] sm:$0xff] %v368
  %433 = vst [vmem:[%s3 + $0x8] sm:$0xff] %v369
  %434 = vst [vmem:[%s3 + $0x10] sm:$0xff] %v370
  %435 = vst [vmem:[%s3 + $0x18] sm:$0xff] %v371
  %436 = vst [vmem:[%s3 + $0x20] sm:$0xff] %v372
  %437 = vst [vmem:[%s3 + $0x28] sm:$0xff] %v373
  %438 = vst [vmem:[%s3 + $0x30] sm:$0xff] %v374
  %439 = vst [vmem:[%s3 + $0x38] sm:$0xff] %v375
  %440 = vst [vmem:[%s3 + $0x40] sm:$0xff] %v376
  %441 = vst [vmem:[%s3 + $0x48] sm:$0xff] %v377
  %442 = vst [vmem:[%s3 + $0x50] sm:$0xff] %v378
  %443 = vst [vmem:[%s3 + $0x58] sm:$0xff] %v379
  %444 = vst [vmem:[%s3 + $0x60] sm:$0xff] %v380
  %445 = vst [vmem:[%s3 + $0x68] sm:$0xff] %v381
  %446 = vst [vmem:[%s3 + $0x70] sm:$0xff] %v382
  %447 = vst [vmem:[%s3 + $0x78] sm:$0xff] %v383
  %448 = vst [vmem:[%s3 + $0x80] sm:$0xff] %v384
  %449 = vst [vmem:[%s3 + $0x88] sm:$0xff] %v385
  %450 = vst [vmem:[%s3 + $0x90] sm:$0xff] %v386
  %451 = vst [vmem:[%s3 + $0x98] sm:$0xff] %v387
  %452 = vst [vmem:[%s3 + $0xa0] sm:$0xff] %v388
  %453 = vst [vmem:[%s3 + $0xa8] sm:$0xff] %v389
  %454 = vst [vmem:[%s3 + $0xb0] sm:$0xff] %v390
  %455 = vst [vmem:[%s3 + $0xb8] sm:$0xff] %v391
  %456 = vst [vmem:[%s3 + $0xc0] sm:$0xff] %v392
  %457 = vst [vmem:[%s3 + $0xc8] sm:$0xff] %v393
  %458 = vst [vmem:[%s3 + $0xd0] sm:$0xff] %v394
  %459 = vst [vmem:[%s3 + $0xd8] sm:$0xff] %v395
  %460 = vst [vmem:[%s3 + $0xe0] sm:$0xff] %v396
  %461 = vst [vmem:[%s3 + $0xe8] sm:$0xff] %v397
  %462 = vst [vmem:[%s3 + $0xf0] sm:$0xff] %v398
  %463 = vst [vmem:[%s3 + $0xf8] sm:$0xff] %v399
  %464 = vst [vmem:[%s3 + $0x100] sm:$0xff] %v400
  %465 = vst [vmem:[%s3 + $0x108] sm:$0xff] %v401
  %466 = vst [vmem:[%s3 + $0x110] sm:$0xff] %v402
  %467 = vst [vmem:[%s3 + $0x118] sm:$0xff] %v403
  %468 = vst [vmem:[%s3 + $0x120] sm:$0xff] %v404
  %469 = vst [vmem:[%s3 + $0x128] sm:$0xff] %v405
  %470 = vst [vmem:[%s3 + $0x130] sm:$0xff] %v406
  %471 = vst [vmem:[%s3 + $0x138] sm:$0xff] %v407
  %472 = vst [vmem:[%s3 + $0x140] sm:$0xff] %v408
  %473 = vst [vmem:[%s3 + $0x148] sm:$0xff] %v409
  %474 = vst [vmem:[%s3 + $0x150] sm:$0xff] %v410
  %475 = vst [vmem:[%s3 + $0x158] sm:$0xff] %v411
  %476 = vst [vmem:[%s3 + $0x160] sm:$0xff] %v412
  %477 = vst [vmem:[%s3 + $0x168] sm:$0xff] %v413
  %478 = vst [vmem:[%s3 + $0x170] sm:$0xff] %v414
  %479 = vst [vmem:[%s3 + $0x178] sm:$0xff] %v415
  %480 = vst [vmem:[%s3 + $0x180] sm:$0xff] %v416
  %481 = vst [vmem:[%s3 + $0x188] sm:$0xff] %v417
  %482 = vst [vmem:[%s3 + $0x190] sm:$0xff] %v418
  %483 = vst [vmem:[%s3 + $0x198] sm:$0xff] %v419
  %484 = vst [vmem:[%s3 + $0x1a0] sm:$0xff] %v420
  %485 = vst [vmem:[%s3 + $0x1a8] sm:$0xff] %v421
  %486 = vst [vmem:[%s3 + $0x1b0] sm:$0xff] %v422
  %487 = vst [vmem:[%s3 + $0x1b8] sm:$0xff] %v423
  %488 = vst [vmem:[%s3 + $0x1c0] sm:$0xff] %v424
  %489 = vst [vmem:[%s3 + $0x1c8] sm:$0xff] %v425
  %490 = vst [vmem:[%s3 + $0x1d0] sm:$0xff] %v426
  %491 = vst [vmem:[%s3 + $0x1d8] sm:$0xff] %v427
  %492 = vst [vmem:[%s3 + $0x1e0] sm:$0xff] %v428
  %493 = vst [vmem:[%s3 + $0x1e8] sm:$0xff] %v429
  %494 = vst [vmem:[%s3 + $0x1f0] sm:$0xff] %v430
  %495 = vst [vmem:[%s3 + $0x1f8] sm:$0xff] %v431
  // Predicated region
  $region14: #{inception_c_forward.8} parent=0 // pred_check
    _
  $region15: #{inception_c_forward.8} parent=0 // pred_check_branch
    %497 = sbr.rel (0) target = $region17
  $region16: #{inception_c_forward.8} parent=0 // pred_region
    _
  $region17: #{inception_c_forward.8} parent=0 // pred_fallthru
    _
  // Predicated region
  $region18: #{inception_c_forward.8} parent=0 // pred_check
    _
  $region19: #{inception_c_forward.8} parent=0 // pred_check_branch
    %499 = sbr.rel (0) target = $region21
  $region20: #{inception_c_forward.8} parent=0 // pred_region
    _
  $region21: #{inception_c_forward.8} parent=0 // pred_fallthru
    _

// kernel: inception_c_forward.15
$region0: #{inception_c_forward.15}
  #allocation0 [shape = 'u32[]', space=smem, size = 0x4, offset = 0x4, fixed_abs, tag = 'smem constant byte address 0x4 - core index']
  #allocation1 [shape = 'u32[144,128]{1,0:T(1,128)}', space=vmem, size = 0x12000, scoped, tag = 'internal scratch']
  %s0 = inlined_call_operand.vmem [shape: bf16[2,10,10,16], index: 0, kind: input, shape index: {}]
  %s1 = inlined_call_operand.vmem [shape: bf16[16,256], index: 1, kind: input, shape index: {}]
  %s2 = inlined_call_operand.vmem [shape: f32[1,256], index: 2, kind: input, shape index: {}]
  %s3 = inlined_call_operand.vmem [shape: f32[2,64,256], index: 3, kind: output, shape index: {}]
  %s4 = sld [smem:[#allocation0]]
  $region45: #{inception_c_forward.15} parent=0
    _
  %s6 = ssub.s32 1, %s4
  %s7 = scalar_select 0, %s6, %s4
  loop: start=0, step=1, limit=4
  $region2: #{inception_c_forward.15} parent=0 // loop_pre_header
    _
  $region3: #{inception_c_forward.15} parent=0 // loop_header
    %s9 = sphi 0, %s13
    %p10 = scmp.ge.s32.totalorder %s9, 4
    %s19 = sphi 0, %s21
    %s22 = sphi 0, %s19
    %s23 = sphi 0, %s22
    %s39 = sphi 0, %s23
    %s43 = sphi 0, %s43
    %s45 = sphi 0, %s43
    %s46 = sphi 0, %s45
    %s60 = sphi 0, %s46
    %s64 = sphi 0, %s64
    %s66 = sphi 0, %s64
    %s67 = sphi 0, %s66
    %s81 = sphi 0, %s67
    %s87 = sphi 0, %s89
    %s90 = sphi 0, %s87
    %s91 = sphi 0, %s90
    %s107 = sphi 0, %s91
  $region4: #{inception_c_forward.15} parent=0 // loop_header_branch
    %12 = sbr.rel (%p10) target = $region8
  $region5: #{inception_c_forward.15} parent=0 // loop_body
    %s14 = ssub.s32 %s9, 1
    %s15 = ssub.s32 %s9, 2
    %s16 = sadd.s32 %s9, 1
    %s17 = ssub.s32 %s9, %s16
    %p18 = scmp.eq.s32.totalorder %s17, 0
    %s20 = sadd.s32 %s19, 1
    %s21 = scalar_select %p18, %s19, %s20
    %p24 = pneg %p18
    %p25 = scmp.eq.s32.totalorder %s9, 1
    %p26 = por %p24, %p25
    %p27 = scmp.ne.s32.totalorder %s19, %s22
    %p28 = scmp.eq.s32.totalorder %s9, 0
    %p29 = por %p27, %p28
    %p30 = scmp.ne.s32.totalorder %s19, %s22
    %p31 = scmp.eq.s32.totalorder %s14, 1
    %p32 = por %p30, %p31
    %p33 = scmp.ne.s32.totalorder %s22, %s23
    %p34 = scmp.eq.s32.totalorder %s14, 0
    %p35 = por %p33, %p34
    %p36 = scmp.ne.s32.totalorder %s22, %s23
    %p37 = scmp.eq.s32.totalorder %s15, 1
    %p38 = por %p36, %p37
    %p40 = scmp.ne.s32.totalorder %s23, %s39
    %p41 = scmp.eq.s32.totalorder %s15, 0
    %p42 = por %p40, %p41
    %s44 = sadd.s32 %s43, 1
    %p47 = scmp.eq.s32.totalorder %s9, 1
    %p48 = scmp.ne.s32.totalorder %s43, %s45
    %p49 = scmp.eq.s32.totalorder %s9, 0
    %p50 = por %p48, %p49
    %p51 = scmp.ne.s32.totalorder %s43, %s45
    %p52 = scmp.eq.s32.totalorder %s14, 1
    %p53 = por %p51, %p52
    %p54 = scmp.ne.s32.totalorder %s45, %s46
    %p55 = scmp.eq.s32.totalorder %s14, 0
    %p56 = por %p54, %p55
    %p57 = scmp.ne.s32.totalorder %s45, %s46
    %p58 = scmp.eq.s32.totalorder %s15, 1
    %p59 = por %p57, %p58
    %p61 = scmp.ne.s32.totalorder %s46, %s60
    %p62 = scmp.eq.s32.totalorder %s15, 0
    %p63 = por %p61, %p62
    %s65 = sadd.s32 %s64, 1
    %p68 = scmp.eq.s32.totalorder %s9, 1
    %p69 = scmp.ne.s32.totalorder %s64, %s66
    %p70 = scmp.eq.s32.totalorder %s9, 0
    %p71 = por %p69, %p70
    %p72 = scmp.ne.s32.totalorder %s64, %s66
    %p73 = scmp.eq.s32.totalorder %s14, 1
    %p74 = por %p72, %p73
    %p75 = scmp.ne.s32.totalorder %s66, %s67
    %p76 = scmp.eq.s32.totalorder %s14, 0
    %p77 = por %p75, %p76
    %p78 = scmp.ne.s32.totalorder %s66, %s67
    %p79 = scmp.eq.s32.totalorder %s15, 1
    %p80 = por %p78, %p79
    %p82 = scmp.ne.s32.totalorder %s67, %s81
    %p83 = scmp.eq.s32.totalorder %s15, 0
    %p84 = por %p82, %p83
    %s85 = ssub.s32 %s9, %s16
    %p86 = scmp.eq.s32.totalorder %s85, 0
    %s88 = sadd.s32 %s87, 1
    %s89 = scalar_select %p86, %s87, %s88
    %p92 = pneg %p86
    %p93 = scmp.eq.s32.totalorder %s9, 1
    %p94 = por %p92, %p93
    %p95 = scmp.ne.s32.totalorder %s87, %s90
    %p96 = scmp.eq.s32.totalorder %s9, 0
    %p97 = por %p95, %p96
    %p98 = scmp.ne.s32.totalorder %s87, %s90
    %p99 = scmp.eq.s32.totalorder %s14, 1
    %p100 = por %p98, %p99
    %p101 = scmp.ne.s32.totalorder %s90, %s91
    %p102 = scmp.eq.s32.totalorder %s14, 0
    %p103 = por %p101, %p102
    %p104 = scmp.ne.s32.totalorder %s90, %s91
    %p105 = scmp.eq.s32.totalorder %s15, 1
    %p106 = por %p104, %p105
    %p108 = scmp.ne.s32.totalorder %s91, %s107
    %p109 = scmp.eq.s32.totalorder %s15, 0
    %p110 = por %p108, %p109
    %p111 = scmp.le.s32.totalorder 1, %s9
    %p112 = scmp.lt.s32.totalorder %s9, 3
    %p113 = pnand %p111, %p112
    %p114 = pneg %p113
    // Predicated region
    $region9: #{inception_c_forward.15} parent=5 // pred_check
      _
    $region10: #{inception_c_forward.15} parent=5 // pred_check_branch
      %116 = sbr.rel (%p113) target = $region12
    $region11: #{inception_c_forward.15} parent=5 // pred_region
      %s117 = ssub.s32 %s9, 1
      // Predicated region
      $region13: #{inception_c_forward.15} parent=11 // pred_check
        %p118 = pneg %p56
      $region14: #{inception_c_forward.15} parent=11 // pred_check_branch
        %120 = sbr.rel (%p118) target = $region16
      $region15: #{inception_c_forward.15} parent=11 // pred_region
        _
      $region16: #{inception_c_forward.15} parent=11 // pred_fallthru
        _
      // Predicated region
      $region17: #{inception_c_forward.15} parent=11 // pred_check
        %p121 = pneg %p77
      $region18: #{inception_c_forward.15} parent=11 // pred_check_branch
        %123 = sbr.rel (%p121) target = $region20
      $region19: #{inception_c_forward.15} parent=11 // pred_region
        _
      $region20: #{inception_c_forward.15} parent=11 // pred_fallthru
        _
    $region12: #{inception_c_forward.15} parent=5 // pred_fallthru
      _
    %p124 = scmp.lt.s32.totalorder %s9, 2
    // Predicated region
    $region21: #{inception_c_forward.15} parent=5 // pred_check
      %p125 = pneg %p124
    $region22: #{inception_c_forward.15} parent=5 // pred_check_branch
      %127 = sbr.rel (%p125) target = $region24
    $region23: #{inception_c_forward.15} parent=5 // pred_region
      // Predicated region
      $region25: #{inception_c_forward.15} parent=23 // pred_check
        %p128 = pneg %p29
      $region26: #{inception_c_forward.15} parent=23 // pred_check_branch
        %130 = sbr.rel (%p128) target = $region28
      $region27: #{inception_c_forward.15} parent=23 // pred_region
        %p131 = scmp.lt.s32.totalorder %s9, 1
        %s132 = scalar_select %p131, %s9, 1
        %s133 = smul.addr %s132, 20
        %s134 = smul.addr %s133, 4
        %s135 = scalar_lea.vmem %s0, %s134
      $region28: #{inception_c_forward.15} parent=23 // pred_fallthru
        _
    $region24: #{inception_c_forward.15} parent=5 // pred_fallthru
      _
    %p136 = scmp.le.s32.totalorder 1, %s9
    %p137 = scmp.lt.s32.totalorder %s9, 3
    %p138 = pnand %p136, %p137
    %p139 = pneg %p138
    // Predicated region
    $region29: #{inception_c_forward.15} parent=5 // pred_check
      _
    $region30: #{inception_c_forward.15} parent=5 // pred_check_branch
      %141 = sbr.rel (%p138) target = $region32
    $region31: #{inception_c_forward.15} parent=5 // pred_region
      %s142 = ssub.s32 %s9, 1
      %p143 = scmp.lt.s32.totalorder %s14, 1
      %s144 = scalar_select %p143, %s14, 1
      %s145 = smul.addr %s144, 20
      %s146 = smul.addr %s145, 4
      %s147 = scalar_lea.vmem %s0, %s146
      %p148 = pneg %p35
      %p149 = pneg %p32
      %p150 = pneg %p56
      %p151 = pneg %p53
      %p152 = pneg %p77
      %p153 = pneg %p74
      %p154 = pneg %p103
      %p155 = pneg %p100
      %p156 = scmp.lt.s32.totalorder %s14, 1
      %s157 = scalar_select %p156, %s14, 1
      %s158 = smul.addr %s157, 16
      %s159 = smul.addr %s158, 8
      %s160 = scalar_lea.vmem %s3, %s159
      %p161 = scmp.lt.s32.totalorder %s14, 1
      %s162 = scalar_select %p161, %s14, 1
      %s163 = smul.addr %s162, 20
      %s164 = smul.addr %s163, 4
      %s165 = scalar_lea.vmem %s0, %s164
      %p166 = scmp.lt.s32.totalorder %s14, 1
      %s167 = scalar_select %p166, %s14, 1
      %s168 = smul.addr %s167, 16
      %s169 = smul.addr %s168, 8
      %s170 = scalar_lea.vmem %s3, %s169
      %v172 = vld [vmem:[%s165] sm:$0xf]
      %v173 = vld [vmem:[%s165 + $0x4] sm:$0x1]
      %v174 = vld [vmem:[%s165 + $0x8] sm:$0xf]
      %v175 = vld [vmem:[%s165 + $0xc] sm:$0x1]
      %v176 = vld [vmem:[%s165 + $0x10] sm:$0xf]
      %v177 = vld [vmem:[%s165 + $0x14] sm:$0x1]
      %v178 = vld [vmem:[%s165 + $0x18] sm:$0xf]
      %v179 = vld [vmem:[%s165 + $0x1c] sm:$0x1]
      %v180 = vld [vmem:[%s165 + $0x20] sm:$0xf]
      %v181 = vld [vmem:[%s165 + $0x24] sm:$0x1]
      %v182 = vld [vmem:[%s165 + $0x28] sm:$0xf]
      %v183 = vld [vmem:[%s165 + $0x2c] sm:$0x1]
      %v184 = vld [vmem:[%s165 + $0x30] sm:$0xf]
      %v185 = vld [vmem:[%s165 + $0x34] sm:$0x1]
      %v186 = vld [vmem:[%s165 + $0x38] sm:$0xf]
      %v187 = vld [vmem:[%s165 + $0x3c] sm:$0x1]
      %v188 = vld [vmem:[%s165 + $0x40] sm:$0xf]
      %v189 = vld [vmem:[%s165 + $0x44] sm:$0x1]
      %v190 = vld [vmem:[%s165 + $0x48] sm:$0xf]
      %v191 = vld [vmem:[%s165 + $0x4c] sm:$0x1]
      %v192 = vunpack.c.l.bf16 %v172
      %v193 = vunpack.c.l.bf16 %v173
      %v194 = vunpack.c.l.bf16 %v174
      %v195 = vunpack.c.l.bf16 %v175
      %v196 = vunpack.c.l.bf16 %v176
      %v197 = vunpack.c.l.bf16 %v177
      %v198 = vunpack.c.l.bf16 %v178
      %v199 = vunpack.c.l.bf16 %v179
      %v200 = vunpack.c.l.bf16 %v180
      %v201 = vunpack.c.l.bf16 %v181
      %v202 = vunpack.c.l.bf16 %v182
      %v203 = vunpack.c.l.bf16 %v183
      %v204 = vunpack.c.l.bf16 %v184
      %v205 = vunpack.c.l.bf16 %v185
      %v206 = vunpack.c.l.bf16 %v186
      %v207 = vunpack.c.l.bf16 %v187
      %v208 = vunpack.c.l.bf16 %v188
      %v209 = vunpack.c.l.bf16 %v189
      %v210 = vunpack.c.l.bf16 %v190
      %v211 = vunpack.c.l.bf16 %v191
      %vm232 = vcmask 1046528
      %v233 = vrot.slane %v192, 1
      %v234 = vrot.slane %v193, 1
      %v235 = vsel %vm232, %v233, %v234
      %v236 = vrot.slane %v194, 1
      %v237 = vrot.slane %v195, 1
      %v238 = vsel %vm232, %v236, %v237
      %v239 = vrot.slane %v196, 1
      %v240 = vrot.slane %v197, 1
      %v241 = vsel %vm232, %v239, %v240
      %v242 = vrot.slane %v198, 1
      %v243 = vrot.slane %v199, 1
      %v244 = vsel %vm232, %v242, %v243
      %v245 = vrot.slane %v200, 1
      %v246 = vrot.slane %v201, 1
      %v247 = vsel %vm232, %v245, %v246
      %v248 = vrot.slane %v202, 1
      %v249 = vrot.slane %v203, 1
      %v250 = vsel %vm232, %v248, %v249
      %v251 = vrot.slane %v204, 1
      %v252 = vrot.slane %v205, 1
      %v253 = vsel %vm232, %v251, %v252
      %v254 = vrot.slane %v206, 1
      %v255 = vrot.slane %v207, 1
      %v256 = vsel %vm232, %v254, %v255
      %v257 = vrot.slane %v208, 1
      %v258 = vrot.slane %v209, 1
      %v259 = vsel %vm232, %v257, %v258
      %v260 = vrot.slane %v210, 1
      %v261 = vrot.slane %v211, 1
      %v262 = vsel %vm232, %v260, %v261
      %v273 = vadd.f32 %v192, %v235
      %v274 = vadd.f32 %v194, %v238
      %v275 = vadd.f32 %v196, %v241
      %v276 = vadd.f32 %v198, %v244
      %v277 = vadd.f32 %v200, %v247
      %v278 = vadd.f32 %v202, %v250
      %v279 = vadd.f32 %v204, %v253
      %v280 = vadd.f32 %v206, %v256
      %v281 = vadd.f32 %v208, %v259
      %v282 = vadd.f32 %v210, %v262
      %vm283 = vcmask 1045504
      %v284 = vrot.slane %v192, 2
      %v285 = vrot.slane %v193, 2
      %v286 = vsel %vm283, %v284, %v285
      %v287 = vrot.slane %v194, 2
      %v288 = vrot.slane %v195, 2
      %v289 = vsel %vm283, %v287, %v288
      %v290 = vrot.slane %v196, 2
      %v291 = vrot.slane %v197, 2
      %v292 = vsel %vm283, %v290, %v291
      %v293 = vrot.slane %v198, 2
      %v294 = vrot.slane %v199, 2
      %v295 = vsel %vm283, %v293, %v294
      %v296 = vrot.slane %v200, 2
      %v297 = vrot.slane %v201, 2
      %v298 = vsel %vm283, %v296, %v297
      %v299 = vrot.slane %v202, 2
      %v300 = vrot.slane %v203, 2
      %v301 = vsel %vm283, %v299, %v300
      %v302 = vrot.slane %v204, 2
      %v303 = vrot.slane %v205, 2
      %v304 = vsel %vm283, %v302, %v303
      %v305 = vrot.slane %v206, 2
      %v306 = vrot.slane %v207, 2
      %v307 = vsel %vm283, %v305, %v306
      %v308 = vrot.slane %v208, 2
      %v309 = vrot.slane %v209, 2
      %v310 = vsel %vm283, %v308, %v309
      %v311 = vrot.slane %v210, 2
      %v312 = vrot.slane %v211, 2
      %v313 = vsel %vm283, %v311, %v312
      %v324 = vadd.f32 %v273, %v286
      %v325 = vadd.f32 %v274, %v289
      %v326 = vadd.f32 %v275, %v292
      %v327 = vadd.f32 %v276, %v295
      %v328 = vadd.f32 %v277, %v298
      %v329 = vadd.f32 %v278, %v301
      %v330 = vadd.f32 %v279, %v304
      %v331 = vadd.f32 %v280, %v307
      %v332 = vadd.f32 %v281, %v310
      %v333 = vadd.f32 %v282, %v313
      %v334 = vadd.f32 %v324, %v325
      %v335 = vadd.f32 %v325, %v326
      %v336 = vadd.f32 %v326, %v327
      %v337 = vadd.f32 %v327, %v328
      %v338 = vadd.f32 %v328, %v329
      %v339 = vadd.f32 %v329, %v330
      %v340 = vadd.f32 %v330, %v331
      %v341 = vadd.f32 %v331, %v332
      %v342 = vadd.f32 %v334, %v326
      %v343 = vadd.f32 %v335, %v327
      %v344 = vadd.f32 %v336, %v328
      %v345 = vadd.f32 %v337, %v329
      %v346 = vadd.f32 %v338, %v330
      %v347 = vadd.f32 %v339, %v331
      %v348 = vadd.f32 %v340, %v332
      %v349 = vadd.f32 %v341, %v333
      %v350 = vmul.f32 %v342, 0.11111111
      %v351 = vmul.f32 %v343, 0.11111111
      %v352 = vmul.f32 %v344, 0.11111111
      %v353 = vmul.f32 %v345, 0.11111111
      %v354 = vmul.f32 %v346, 0.11111111
      %v355 = vmul.f32 %v347, 0.11111111
      %v356 = vmul.f32 %v348, 0.11111111
      %v357 = vmul.f32 %v349, 0.11111111
      %v358 = vpack.c.bf16 %v350, %v350
      %v359 = vpack.c.bf16 %v351, %v351
      %v360 = vpack.c.bf16 %v352, %v352
      %v361 = vpack.c.bf16 %v353, %v353
      %v362 = vpack.c.bf16 %v354, %v354
      %v363 = vpack.c.bf16 %v355, %v355
      %v364 = vpack.c.bf16 %v356, %v356
      %v365 = vpack.c.bf16 %v357, %v357
      %v366 = vld [vmem:[%s1] sm:$0xff]
      %v367 = vld [vmem:[%s1 + $0x8] sm:$0xff]
      %v368 = vld [vmem:[%s2] sm:$0x3]
      %v370 = vlaneseq
      %v371 = vshrl.u32 %v370, 7
      %v372 = vsub.s32 0, %v371
      %v373 = vrot.slane %v368, %v372
      %v374 = vlaneseq
      %v375 = vshrl.u32 %v374, 7
      %v376 = vsub.s32 1, %v375
      %v377 = vrot.slane %v368, %v376
      %v388 = vunpack.c.l.b16 %v358
      %v389 = vunpack.c.l.b16 %v359
      %v390 = vunpack.c.l.b16 %v360
      %v391 = vunpack.c.l.b16 %v361
      %v392 = vunpack.c.l.b16 %v362
      %v393 = vunpack.c.l.b16 %v363
      %v394 = vunpack.c.l.b16 %v364
      %v395 = vunpack.c.l.b16 %v365
      %v396 = vpack.c.b16 %v389, %v388
      %v397 = vpack.c.b16 %v391, %v390
      %v398 = vpack.c.b16 %v393, %v392
      %v399 = vpack.c.b16 %v395, %v394
      %v402 = vunpack.c.l.b16 %v366
      %v403 = vunpack.c.h.b16 %v366
      %v404 = vunpack.c.l.b16 %v367
      %v405 = vunpack.c.h.b16 %v367
      %v406 = vpack.c.b16 %v404, %v402
      %v407 = vpack.c.b16 %v405, %v403
      %vm410 = vcmask 130048
      %v412 = vsel %vm410, %v396, 0
      %v415 = vsel %vm410, %v397, 0
      %v418 = vsel %vm410, %v398, 0
      %v421 = vsel %vm410, %v399, 0
      %423 = vmatprep.subr.bf16.mxu0 %v407
      %424 = vmatpush1.bf16.msra.mxu0 %v406
      %425 = vmatprep.subr.bf16.mxu0 0
      %426 = vmatpush1.bf16.msra.mxu0 0
      %427 = vmatprep.subr.bf16.mxu0 0
      %428 = vmatpush1.bf16.msra.mxu0 0
      %429 = vmatprep.subr.bf16.mxu0 0
      %430 = vmatpush1.bf16.msra.mxu0 0
      %431 = vmatprep.subr.bf16.mxu0 0
      %432 = vmatpush1.bf16.msra.mxu0 0
      %433 = vmatprep.subr.bf16.mxu0 0
      %434 = vmatpush1.bf16.msra.mxu0 0
      %435 = vmatprep.subr.bf16.mxu0 0
      %436 = vmatpush1.bf16.msra.mxu0 0
      %437 = vmatprep.subr.bf16.mxu0 0
      %438 = vmatpush1.bf16.msra.mxu0 0
      %439 = vmatprep.subr.bf16.mxu0 0
      %440 = vmatpush1.bf16.msra.mxu0 0
      %441 = vmatprep.subr.bf16.mxu0 0
      %442 = vmatpush1.bf16.msra.mxu0 0
      %443 = vmatprep.subr.bf16.mxu0 0
      %444 = vmatpush1.bf16.msra.mxu0 0
      %445 = vmatprep.subr.bf16.mxu0 0
      %446 = vmatpush1.bf16.msra.mxu0 0
      %447 = vmatprep.subr.bf16.mxu0 0
      %448 = vmatpush1.bf16.msra.mxu0 0
      %449 = vmatprep.subr.bf16.mxu0 0
      %450 = vmatpush1.bf16.msra.mxu0 0
      %451 = vmatprep.subr.bf16.mxu0 0
      %452 = vmatpush1.bf16.msra.mxu0 0
      %453 = vmatprep.subr.bf16.mxu0 0
      %454 = vmatpush1.bf16.msra.mxu0 0
      %455 = vmatprep.mubr.bf16.mxu0 0
      %456 = vmatmul.mubr.bf16.gmra.mrb[0].mxu0 %v412
      %v457 = vpop.f32.mrb[0].mxu0
      %v458 = vadd.f32 %v373, %v457
      %v459 = vpop.f32.mrb[0].mxu0
      %v460 = vadd.f32 %v377, %v459
      %v461 = vpop.f32.mrb[0].mxu0
      %v462 = vadd.f32 %v373, %v461
      %v463 = vpop.f32.mrb[0].mxu0
      %v464 = vadd.f32 %v377, %v463
      %465 = vmatprep.mubr.bf16.mxu0 0
      %466 = vmatmul.mubr.bf16.gmra.mrb[0].mxu0 %v415
      %v467 = vpop.f32.mrb[0].mxu0
      %v468 = vadd.f32 %v373, %v467
      %v469 = vpop.f32.mrb[0].mxu0
      %v470 = vadd.f32 %v377, %v469
      %v471 = vpop.f32.mrb[0].mxu0
      %v472 = vadd.f32 %v373, %v471
      %v473 = vpop.f32.mrb[0].mxu0
      %v474 = vadd.f32 %v377, %v473
      %475 = vmatprep.mubr.bf16.mxu0 0
      %476 = vmatmul.mubr.bf16.gmra.mrb[0].mxu0 %v418
      %v477 = vpop.f32.mrb[0].mxu0
      %v478 = vadd.f32 %v373, %v477
      %v479 = vpop.f32.mrb[0].mxu0
      %v480 = vadd.f32 %v377, %v479
      %v481 = vpop.f32.mrb[0].mxu0
      %v482 = vadd.f32 %v373, %v481
      %v483 = vpop.f32.mrb[0].mxu0
      %v484 = vadd.f32 %v377, %v483
      %485 = vmatprep.mubr.bf16.mxu0 0
      %486 = vmatmul.mubr.bf16.gmra.mrb[0].mxu0 %v421
      %v487 = vpop.f32.mrb[0].mxu0
      %v488 = vadd.f32 %v373, %v487
      %v489 = vpop.f32.mrb[0].mxu0
      %v490 = vadd.f32 %v377, %v489
      %v491 = vpop.f32.mrb[0].mxu0
      %v492 = vadd.f32 %v373, %v491
      %v493 = vpop.f32.mrb[0].mxu0
      %v494 = vadd.f32 %v377, %v493
      %495 = vdwg.mxu0
      %v496 = vmax.f32 %v458, 0.0
      %v497 = vmax.f32 %v460, 0.0
      %v498 = vmax.f32 %v462, 0.0
      %v499 = vmax.f32 %v464, 0.0
      %v500 = vmax.f32 %v468, 0.0
      %v501 = vmax.f32 %v470, 0.0
      %v502 = vmax.f32 %v472, 0.0
      %v503 = vmax.f32 %v474, 0.0
      %v504 = vmax.f32 %v478, 0.0
      %v505 = vmax.f32 %v480, 0.0
      %v506 = vmax.f32 %v482, 0.0
      %v507 = vmax.f32 %v484, 0.0
      %v508 = vmax.f32 %v488, 0.0
      %v509 = vmax.f32 %v490, 0.0
      %v510 = vmax.f32 %v492, 0.0
      %v511 = vmax.f32 %v494, 0.0
      %512 = vst [vmem:[%s170] sm:$0xff] %v496
      %513 = vst [vmem:[%s170 + $0x8] sm:$0xff] %v497
      %514 = vst [vmem:[%s170 + $0x10] sm:$0xff] %v498
      %515 = vst [vmem:[%s170 + $0x18] sm:$0xff] %v499
      %516 = vst [vmem:[%s170 + $0x20] sm:$0xff] %v500
      %517 = vst [vmem:[%s170 + $0x28] sm:$0xff] %v501
      %518 = vst [vmem:[%s170 + $0x30] sm:$0xff] %v502
      %519 = vst [vmem:[%s170 + $0x38] sm:$0xff] %v503
      %520 = vst [vmem:[%s170 + $0x40] sm:$0xff] %v504
      %521 = vst [vmem:[%s170 + $0x48] sm:$0xff] %v505
      %522 = vst [vmem:[%s170 + $0x50] sm:$0xff] %v506
      %523 = vst [vmem:[%s170 + $0x58] sm:$0xff] %v507
      %524 = vst [vmem:[%s170 + $0x60] sm:$0xff] %v508
      %525 = vst [vmem:[%s170 + $0x68] sm:$0xff] %v509
      %526 = vst [vmem:[%s170 + $0x70] sm:$0xff] %v510
      %527 = vst [vmem:[%s170 + $0x78] sm:$0xff] %v511
      %p528 = scmp.lt.s32.totalorder %s14, 1
      %s529 = scalar_select %p528, %s14, 1
      %s530 = smul.addr %s529, 16
      %s531 = smul.addr %s530, 8
      %s532 = scalar_lea.vmem %s3, %s531
      // Predicated region
      $region33: #{inception_c_forward.15} parent=31 // pred_check
        %p533 = pneg %p100
      $region34: #{inception_c_forward.15} parent=31 // pred_check_branch
        %535 = sbr.rel (%p533) target = $region36
      $region35: #{inception_c_forward.15} parent=31 // pred_region
        _
      $region36: #{inception_c_forward.15} parent=31 // pred_fallthru
        _
    $region32: #{inception_c_forward.15} parent=5 // pred_fallthru
      _
    %p536 = scmp.le.s32.totalorder 2, %s9
    // Predicated region
    $region37: #{inception_c_forward.15} parent=5 // pred_check
      %p537 = pneg %p536
    $region38: #{inception_c_forward.15} parent=5 // pred_check_branch
      %539 = sbr.rel (%p537) target = $region40
    $region39: #{inception_c_forward.15} parent=5 // pred_region
      %s540 = ssub.s32 %s9, 2
      // Predicated region
      $region41: #{inception_c_forward.15} parent=39 // pred_check
        %p541 = pneg %p106
      $region42: #{inception_c_forward.15} parent=39 // pred_check_branch
        %543 = sbr.rel (%p541) target = $region44
      $region43: #{inception_c_forward.15} parent=39 // pred_region
        %p544 = scmp.lt.s32.totalorder %s15, 1
        %s545 = scalar_select %p544, %s15, 1
        %s546 = smul.addr %s545, 16
        %s547 = smul.addr %s546, 8
        %s548 = scalar_lea.vmem %s3, %s547
      $region44: #{inception_c_forward.15} parent=39 // pred_fallthru
        _
    $region40: #{inception_c_forward.15} parent=5 // pred_fallthru
      _
  $region6: #{inception_c_forward.15} parent=0 // loop_footer
    %s13 = sadd.s32 1, %s9
  $region7: #{inception_c_forward.15} parent=0 // loop_footer_branch
    %8 = sbr.rel target = $region3
  $region8: #{inception_c_forward.15} parent=0 // loop_exit
    _

// kernel: inception_c_forward.14
$region0: #{inception_c_forward.14}
  #allocation0 [shape = 'u32[]', space=smem, size = 0x4, offset = 0x4, fixed_abs, tag = 'smem constant byte address 0x4 - core index']
  #allocation1 [shape = 'u32[144,128]{1,0:T(1,128)}', space=vmem, size = 0x12000, scoped, tag = 'internal scratch']
  %s0 = inlined_call_operand.vmem [shape: bf16[2,112,128], index: 0, kind: input, shape index: {}]
  %s1 = inlined_call_operand.vmem [shape: bf16[7,128,256], index: 1, kind: input, shape index: {}]
  %s2 = inlined_call_operand.vmem [shape: f32[1,256], index: 2, kind: input, shape index: {}]
  %s3 = inlined_call_operand.vmem [shape: f32[2,64,256], index: 3, kind: output, shape index: {}]
  %s4 = sld [smem:[#allocation0]]
  $region45: #{inception_c_forward.14} parent=0
    _
  %s6 = ssub.s32 1, %s4
  %s7 = scalar_select 0, %s6, %s4
  loop: start=0, step=1, limit=4
  $region2: #{inception_c_forward.14} parent=0 // loop_pre_header
    _
  $region3: #{inception_c_forward.14} parent=0 // loop_header
    %s9 = sphi 0, %s13
    %p10 = scmp.ge.s32.totalorder %s9, 4
    %s19 = sphi 0, %s21
    %s22 = sphi 0, %s19
    %s23 = sphi 0, %s22
    %s39 = sphi 0, %s23
    %s43 = sphi 0, %s43
    %s45 = sphi 0, %s43
    %s46 = sphi 0, %s45
    %s60 = sphi 0, %s46
    %s64 = sphi 0, %s64
    %s66 = sphi 0, %s64
    %s67 = sphi 0, %s66
    %s81 = sphi 0, %s67
    %s87 = sphi 0, %s89
    %s90 = sphi 0, %s87
    %s91 = sphi 0, %s90
    %s107 = sphi 0, %s91
  $region4: #{inception_c_forward.14} parent=0 // loop_header_branch
    %12 = sbr.rel (%p10) target = $region8
  $region5: #{inception_c_forward.14} parent=0 // loop_body
    %s14 = ssub.s32 %s9, 1
    %s15 = ssub.s32 %s9, 2
    %s16 = sadd.s32 %s9, 1
    %s17 = ssub.s32 %s9, %s16
    %p18 = scmp.eq.s32.totalorder %s17, 0
    %s20 = sadd.s32 %s19, 1
    %s21 = scalar_select %p18, %s19, %s20
    %p24 = pneg %p18
    %p25 = scmp.eq.s32.totalorder %s9, 1
    %p26 = por %p24, %p25
    %p27 = scmp.ne.s32.totalorder %s19, %s22
    %p28 = scmp.eq.s32.totalorder %s9, 0
    %p29 = por %p27, %p28
    %p30 = scmp.ne.s32.totalorder %s19, %s22
    %p31 = scmp.eq.s32.totalorder %s14, 1
    %p32 = por %p30, %p31
    %p33 = scmp.ne.s32.totalorder %s22, %s23
    %p34 = scmp.eq.s32.totalorder %s14, 0
    %p35 = por %p33, %p34
    %p36 = scmp.ne.s32.totalorder %s22, %s23
    %p37 = scmp.eq.s32.totalorder %s15, 1
    %p38 = por %p36, %p37
    %p40 = scmp.ne.s32.totalorder %s23, %s39
    %p41 = scmp.eq.s32.totalorder %s15, 0
    %p42 = por %p40, %p41
    %s44 = sadd.s32 %s43, 1
    %p47 = scmp.eq.s32.totalorder %s9, 1
    %p48 = scmp.ne.s32.totalorder %s43, %s45
    %p49 = scmp.eq.s32.totalorder %s9, 0
    %p50 = por %p48, %p49
    %p51 = scmp.ne.s32.totalorder %s43, %s45
    %p52 = scmp.eq.s32.totalorder %s14, 1
    %p53 = por %p51, %p52
    %p54 = scmp.ne.s32.totalorder %s45, %s46
    %p55 = scmp.eq.s32.totalorder %s14, 0
    %p56 = por %p54, %p55
    %p57 = scmp.ne.s32.totalorder %s45, %s46
    %p58 = scmp.eq.s32.totalorder %s15, 1
    %p59 = por %p57, %p58
    %p61 = scmp.ne.s32.totalorder %s46, %s60
    %p62 = scmp.eq.s32.totalorder %s15, 0
    %p63 = por %p61, %p62
    %s65 = sadd.s32 %s64, 1
    %p68 = scmp.eq.s32.totalorder %s9, 1
    %p69 = scmp.ne.s32.totalorder %s64, %s66
    %p70 = scmp.eq.s32.totalorder %s9, 0
    %p71 = por %p69, %p70
    %p72 = scmp.ne.s32.totalorder %s64, %s66
    %p73 = scmp.eq.s32.totalorder %s14, 1
    %p74 = por %p72, %p73
    %p75 = scmp.ne.s32.totalorder %s66, %s67
    %p76 = scmp.eq.s32.totalorder %s14, 0
    %p77 = por %p75, %p76
    %p78 = scmp.ne.s32.totalorder %s66, %s67
    %p79 = scmp.eq.s32.totalorder %s15, 1
    %p80 = por %p78, %p79
    %p82 = scmp.ne.s32.totalorder %s67, %s81
    %p83 = scmp.eq.s32.totalorder %s15, 0
    %p84 = por %p82, %p83
    %s85 = ssub.s32 %s9, %s16
    %p86 = scmp.eq.s32.totalorder %s85, 0
    %s88 = sadd.s32 %s87, 1
    %s89 = scalar_select %p86, %s87, %s88
    %p92 = pneg %p86
    %p93 = scmp.eq.s32.totalorder %s9, 1
    %p94 = por %p92, %p93
    %p95 = scmp.ne.s32.totalorder %s87, %s90
    %p96 = scmp.eq.s32.totalorder %s9, 0
    %p97 = por %p95, %p96
    %p98 = scmp.ne.s32.totalorder %s87, %s90
    %p99 = scmp.eq.s32.totalorder %s14, 1
    %p100 = por %p98, %p99
    %p101 = scmp.ne.s32.totalorder %s90, %s91
    %p102 = scmp.eq.s32.totalorder %s14, 0
    %p103 = por %p101, %p102
    %p104 = scmp.ne.s32.totalorder %s90, %s91
    %p105 = scmp.eq.s32.totalorder %s15, 1
    %p106 = por %p104, %p105
    %p108 = scmp.ne.s32.totalorder %s91, %s107
    %p109 = scmp.eq.s32.totalorder %s15, 0
    %p110 = por %p108, %p109
    %p111 = scmp.le.s32.totalorder 1, %s9
    %p112 = scmp.lt.s32.totalorder %s9, 3
    %p113 = pnand %p111, %p112
    %p114 = pneg %p113
    // Predicated region
    $region9: #{inception_c_forward.14} parent=5 // pred_check
      _
    $region10: #{inception_c_forward.14} parent=5 // pred_check_branch
      %116 = sbr.rel (%p113) target = $region12
    $region11: #{inception_c_forward.14} parent=5 // pred_region
      %s117 = ssub.s32 %s9, 1
      // Predicated region
      $region13: #{inception_c_forward.14} parent=11 // pred_check
        %p118 = pneg %p56
      $region14: #{inception_c_forward.14} parent=11 // pred_check_branch
        %120 = sbr.rel (%p118) target = $region16
      $region15: #{inception_c_forward.14} parent=11 // pred_region
        _
      $region16: #{inception_c_forward.14} parent=11 // pred_fallthru
        _
      // Predicated region
      $region17: #{inception_c_forward.14} parent=11 // pred_check
        %p121 = pneg %p77
      $region18: #{inception_c_forward.14} parent=11 // pred_check_branch
        %123 = sbr.rel (%p121) target = $region20
      $region19: #{inception_c_forward.14} parent=11 // pred_region
        _
      $region20: #{inception_c_forward.14} parent=11 // pred_fallthru
        _
    $region12: #{inception_c_forward.14} parent=5 // pred_fallthru
      _
    %p124 = scmp.lt.s32.totalorder %s9, 2
    // Predicated region
    $region21: #{inception_c_forward.14} parent=5 // pred_check
      %p125 = pneg %p124
    $region22: #{inception_c_forward.14} parent=5 // pred_check_branch
      %127 = sbr.rel (%p125) target = $region24
    $region23: #{inception_c_forward.14} parent=5 // pred_region
      // Predicated region
      $region25: #{inception_c_forward.14} parent=23 // pred_check
        %p128 = pneg %p29
      $region26: #{inception_c_forward.14} parent=23 // pred_check_branch
        %130 = sbr.rel (%p128) target = $region28
      $region27: #{inception_c_forward.14} parent=23 // pred_region
        %p131 = scmp.lt.s32.totalorder %s9, 1
        %s132 = scalar_select %p131, %s9, 1
        %s133 = smul.addr %s132, 14
        %s134 = smul.addr %s133, 4
        %s135 = scalar_lea.vmem %s0, %s134
      $region28: #{inception_c_forward.14} parent=23 // pred_fallthru
        _
    $region24: #{inception_c_forward.14} parent=5 // pred_fallthru
      _
    %p136 = scmp.le.s32.totalorder 1, %s9
    %p137 = scmp.lt.s32.totalorder %s9, 3
    %p138 = pnand %p136, %p137
    %p139 = pneg %p138
    // Predicated region
    $region29: #{inception_c_forward.14} parent=5 // pred_check
      _
    $region30: #{inception_c_forward.14} parent=5 // pred_check_branch
      %141 = sbr.rel (%p138) target = $region32
    $region31: #{inception_c_forward.14} parent=5 // pred_region
      %s142 = ssub.s32 %s9, 1
      %p143 = scmp.lt.s32.totalorder %s14, 1
      %s144 = scalar_select %p143, %s14, 1
      %s145 = smul.addr %s144, 14
      %s146 = smul.addr %s145, 4
      %s147 = scalar_lea.vmem %s0, %s146
      %p148 = pneg %p35
      %p149 = pneg %p32
      %p150 = pneg %p56
      %p151 = pneg %p53
      %p152 = pneg %p77
      %p153 = pneg %p74
      %p154 = pneg %p103
      %p155 = pneg %p100
      %p156 = scmp.lt.s32.totalorder %s14, 1
      %s157 = scalar_select %p156, %s14, 1
      %s158 = smul.addr %s157, 16
      %s159 = smul.addr %s158, 8
      %s160 = scalar_lea.vmem %s3, %s159
      %p161 = scmp.lt.s32.totalorder %s14, 1
      %s162 = scalar_select %p161, %s14, 1
      %s163 = smul.addr %s162, 14
      %s164 = smul.addr %s163, 4
      %s165 = scalar_lea.vmem %s0, %s164
      %p166 = scmp.lt.s32.totalorder %s14, 1
      %s167 = scalar_select %p166, %s14, 1
      %s168 = smul.addr %s167, 16
      %s169 = smul.addr %s168, 8
      %s170 = scalar_lea.vmem %s3, %s169
      %v172 = vld [vmem:[%s165] sm:$0xf]
      %v173 = vld [vmem:[%s165 + $0x4] sm:$0xf]
      %v174 = vld [vmem:[%s165 + $0x8] sm:$0xf]
      %v175 = vld [vmem:[%s165 + $0xc] sm:$0xf]
      %v176 = vld [vmem:[%s165 + $0x10] sm:$0xf]
      %v177 = vld [vmem:[%s165 + $0x14] sm:$0xf]
      %v178 = vld [vmem:[%s165 + $0x18] sm:$0xf]
      %v179 = vld [vmem:[%s165 + $0x1c] sm:$0xf]
      %v180 = vld [vmem:[%s1] sm:$0xff]
      %v181 = vld [vmem:[%s1 + $0x8] sm:$0xff]
      %v182 = vld [vmem:[%s1 + $0x10] sm:$0xff]
      %v183 = vld [vmem:[%s1 + $0x18] sm:$0xff]
      %v184 = vld [vmem:[%s1 + $0x20] sm:$0xff]
      %v185 = vld [vmem:[%s1 + $0x28] sm:$0xff]
      %v186 = vld [vmem:[%s1 + $0x30] sm:$0xff]
      %v187 = vld [vmem:[%s1 + $0x38] sm:$0xff]
      %v188 = vld [vmem:[%s1 + $0x40] sm:$0xff]
      %v189 = vld [vmem:[%s1 + $0x48] sm:$0xff]
      %v190 = vld [vmem:[%s1 + $0x50] sm:$0xff]
      %v191 = vld [vmem:[%s1 + $0x58] sm:$0xff]
      %v192 = vld [vmem:[%s1 + $0x60] sm:$0xff]
      %v193 = vld [vmem:[%s1 + $0x68] sm:$0xff]
      %v194 = vld [vmem:[%s1 + $0x70] sm:$0xff]
      %v195 = vld [vmem:[%s1 + $0x78] sm:$0xff]
      %v196 = vld [vmem:[%s165 + $0x20] sm:$0xf]
      %s197 = scalar_lea.vmem %s1, 128
      %v198 = vld [vmem:[%s197] sm:$0xff]
      %v199 = vld [vmem:[%s197 + $0x8] sm:$0xff]
      %v200 = vld [vmem:[%s197 + $0x10] sm:$0xff]
      %v201 = vld [vmem:[%s197 + $0x18] sm:$0xff]
      %v202 = vld [vmem:[%s197 + $0x20] sm:$0xff]
      %v203 = vld [vmem:[%s197 + $0x28] sm:$0xff]
      %v204 = vld [vmem:[%s197 + $0x30] sm:$0xff]
      %v205 = vld [vmem:[%s197 + $0x38] sm:$0xff]
      %v206 = vld [vmem:[%s197 + $0x40] sm:$0xff]
      %v207 = vld [vmem:[%s197 + $0x48] sm:$0xff]
      %v208 = vld [vmem:[%s197 + $0x50] sm:$0xff]
      %v209 = vld [vmem:[%s197 + $0x58] sm:$0xff]
      %v210 = vld [vmem:[%s197 + $0x60] sm:$0xff]
      %v211 = vld [vmem:[%s197 + $0x68] sm:$0xff]
      %v212 = vld [vmem:[%s197 + $0x70] sm:$0xff]
      %v213 = vld [vmem:[%s197 + $0x78] sm:$0xff]
      %v222 = vunpack.c.l.b16 %v173
      %v223 = vunpack.c.l.b16 %v174
      %v224 = vunpack.c.l.b16 %v175
      %v225 = vunpack.c.l.b16 %v176
      %v226 = vunpack.c.l.b16 %v177
      %v227 = vunpack.c.l.b16 %v178
      %v228 = vunpack.c.l.b16 %v179
      %v229 = vunpack.c.l.b16 %v196
      %v230 = vpack.c.b16 %v223, %v222
      %v231 = vpack.c.b16 %v225, %v224
      %v232 = vpack.c.b16 %v227, %v226
      %v233 = vpack.c.b16 %v229, %v228
      %v254 = vunpack.c.l.b16 %v198
      %v255 = vunpack.c.h.b16 %v198
      %v256 = vunpack.c.l.b16 %v199
      %v257 = vunpack.c.h.b16 %v199
      %v258 = vunpack.c.l.b16 %v200
      %v259 = vunpack.c.h.b16 %v200
      %v260 = vunpack.c.l.b16 %v201
      %v261 = vunpack.c.h.b16 %v201
      %v262 = vunpack.c.l.b16 %v202
      %v263 = vunpack.c.h.b16 %v202
      %v264 = vunpack.c.l.b16 %v203
      %v265 = vunpack.c.h.b16 %v203
      %v266 = vunpack.c.l.b16 %v204
      %v267 = vunpack.c.h.b16 %v204
      %v268 = vunpack.c.l.b16 %v205
      %v269 = vunpack.c.h.b16 %v205
      %v270 = vunpack.c.l.b16 %v206
      %v271 = vunpack.c.h.b16 %v206
      %v272 = vunpack.c.l.b16 %v207
      %v273 = vunpack.c.h.b16 %v207
      %v274 = vunpack.c.l.b16 %v208
      %v275 = vunpack.c.h.b16 %v208
      %v276 = vunpack.c.l.b16 %v209
      %v277 = vunpack.c.h.b16 %v209
      %v278 = vunpack.c.l.b16 %v210
      %v279 = vunpack.c.h.b16 %v210
      %v280 = vunpack.c.l.b16 %v211
      %v281 = vunpack.c.h.b16 %v211
      %v282 = vunpack.c.l.b16 %v212
      %v283 = vunpack.c.h.b16 %v212
      %v284 = vunpack.c.l.b16 %v213
      %v285 = vunpack.c.h.b16 %v213
      %v286 = vpack.c.b16 %v256, %v254
      %v287 = vpack.c.b16 %v257, %v255
      %v288 = vpack.c.b16 %v260, %v258
      %v289 = vpack.c.b16 %v261, %v259
      %v290 = vpack.c.b16 %v264, %v262
      %v291 = vpack.c.b16 %v265, %v263
      %v292 = vpack.c.b16 %v268, %v266
      %v293 = vpack.c.b16 %v269, %v267
      %v294 = vpack.c.b16 %v272, %v270
      %v295 = vpack.c.b16 %v273, %v271
      %v296 = vpack.c.b16 %v276, %v274
      %v297 = vpack.c.b16 %v277, %v275
      %v298 = vpack.c.b16 %v280, %v278
      %v299 = vpack.c.b16 %v281, %v279
      %v300 = vpack.c.b16 %v284, %v282
      %v301 = vpack.c.b16 %v285, %v283
      %318 = vmatprep.subr.bf16.mxu0 %v287
      %319 = vmatpush1.bf16.msra.mxu0 %v286
      %320 = vmatprep.subr.bf16.mxu0 %v289
      %321 = vmatpush1.bf16.msra.mxu0 %v288
      %322 = vmatprep.subr.bf16.mxu0 %v291
      %323 = vmatpush1.bf16.msra.mxu0 %v290
      %324 = vmatprep.subr.bf16.mxu0 %v293
      %325 = vmatpush1.bf16.msra.mxu0 %v292
      %326 = vmatprep.subr.bf16.mxu0 %v295
      %327 = vmatpush1.bf16.msra.mxu0 %v294
      %328 = vmatprep.subr.bf16.mxu0 %v297
      %329 = vmatpush1.bf16.msra.mxu0 %v296
      %330 = vmatprep.subr.bf16.mxu0 %v299
      %331 = vmatpush1.bf16.msra.mxu0 %v298
      %332 = vmatprep.subr.bf16.mxu0 %v301
      %333 = vmatpush1.bf16.msra.mxu0 %v300
      %334 = vmatprep.subr.bf16.mxu0 0
      %335 = vmatpush1.bf16.msra.mxu0 0
      %336 = vmatprep.subr.bf16.mxu0 0
      %337 = vmatpush1.bf16.msra.mxu0 0
      %338 = vmatprep.subr.bf16.mxu0 0
      %339 = vmatpush1.bf16.msra.mxu0 0
      %340 = vmatprep.subr.bf16.mxu0 0
      %341 = vmatpush1.bf16.msra.mxu0 0
      %342 = vmatprep.subr.bf16.mxu0 0
      %343 = vmatpush1.bf16.msra.mxu0 0
      %344 = vmatprep.subr.bf16.mxu0 0
      %345 = vmatpush1.bf16.msra.mxu0 0
      %346 = vmatprep.subr.bf16.mxu0 0
      %347 = vmatpush1.bf16.msra.mxu0 0
      %348 = vmatprep.subr.bf16.mxu0 0
      %349 = vmatpush1.bf16.msra.mxu0 0
      %350 = vmatprep.mubr.bf16.mxu0 0
      %351 = vmatmul.mubr.bf16.gmra.mrb[0].mxu0 %v230
      %v352 = vpop.f32.mrb[0].mxu0
      %v353 = vadd.f32 0.0, %v352
      %v354 = vpop.f32.mrb[0].mxu0
      %v355 = vadd.f32 0.0, %v354
      %v356 = vpop.f32.mrb[0].mxu0
      %v357 = vadd.f32 0.0, %v356
      %v358 = vpop.f32.mrb[0].mxu0
      %v359 = vadd.f32 0.0, %v358
      %360 = vmatprep.mubr.bf16.mxu0 0
      %361 = vmatmul.mubr.bf16.gmra.mrb[0].mxu0 %v231
      %v362 = vpop.f32.mrb[0].mxu0
      %v363 = vadd.f32 0.0, %v362
      %v364 = vpop.f32.mrb[0].mxu0
      %v365 = vadd.f32 0.0, %v364
      %v366 = vpop.f32.mrb[0].mxu0
      %v367 = vadd.f32 0.0, %v366
      %v368 = vpop.f32.mrb[0].mxu0
      %v369 = vadd.f32 0.0, %v368
      %370 = vmatprep.mubr.bf16.mxu0 0
      %371 = vmatmul.mubr.bf16.gmra.mrb[0].mxu0 %v232
      %v372 = vpop.f32.mrb[0].mxu0
      %v373 = vadd.f32 0.0, %v372
      %v374 = vpop.f32.mrb[0].mxu0
      %v375 = vadd.f32 0.0, %v374
      %v376 = vpop.f32.mrb[0].mxu0
      %v377 = vadd.f32 0.0, %v376
      %v378 = vpop.f32.mrb[0].mxu0
      %v379 = vadd.f32 0.0, %v378
      %380 = vmatprep.mubr.bf16.mxu0 0
      %381 = vmatmul.mubr.bf16.gmra.mrb[0].mxu0 %v233
      %v382 = vpop.f32.mrb[0].mxu0
      %v383 = vadd.f32 0.0, %v382
      %v384 = vpop.f32.mrb[0].mxu0
      %v385 = vadd.f32 0.0, %v384
      %v386 = vpop.f32.mrb[0].mxu0
      %v387 = vadd.f32 0.0, %v386
      %v388 = vpop.f32.mrb[0].mxu0
      %v389 = vadd.f32 0.0, %v388
      %390 = vdwg.mxu0
      %v392 = vunpack.c.l.b16 %v172
      %v393 = vpack.c.b16 %v222, %v392
      %v394 = vpack.c.b16 %v224, %v223
      %v395 = vpack.c.b16 %v226, %v225
      %v396 = vpack.c.b16 %v228, %v227
      %v417 = vunpack.c.l.b16 %v180
      %v418 = vunpack.c.h.b16 %v180
      %v419 = vunpack.c.l.b16 %v181
      %v420 = vunpack.c.h.b16 %v181
      %v421 = vunpack.c.l.b16 %v182
      %v422 = vunpack.c.h.b16 %v182
      %v423 = vunpack.c.l.b16 %v183
      %v424 = vunpack.c.h.b16 %v183
      %v425 = vunpack.c.l.b16 %v184
      %v426 = vunpack.c.h.b16 %v184
      %v427 = vunpack.c.l.b16 %v185
      %v428 = vunpack.c.h.b16 %v185
      %v429 = vunpack.c.l.b16 %v186
      %v430 = vunpack.c.h.b16 %v186
      %v431 = vunpack.c.l.b16 %v187
      %v432 = vunpack.c.h.b16 %v187
      %v433 = vunpack.c.l.b16 %v188
      %v434 = vunpack.c.h.b16 %v188
      %v435 = vunpack.c.l.b16 %v189
      %v436 = vunpack.c.h.b16 %v189
      %v437 = vunpack.c.l.b16 %v190
      %v438 = vunpack.c.h.b16 %v190
      %v439 = vunpack.c.l.b16 %v191
      %v440 = vunpack.c.h.b16 %v191
      %v441 = vunpack.c.l.b16 %v192
      %v442 = vunpack.c.h.b16 %v192
      %v443 = vunpack.c.l.b16 %v193
      %v444 = vunpack.c.h.b16 %v193
      %v445 = vunpack.c.l.b16 %v194
      %v446 = vunpack.c.h.b16 %v194
      %v447 = vunpack.c.l.b16 %v195
      %v448 = vunpack.c.h.b16 %v195
      %v449 = vpack.c.b16 %v419, %v417
      %v450 = vpack.c.b16 %v420, %v418
      %v451 = vpack.c.b16 %v423, %v421
      %v452 = vpack.c.b16 %v424, %v422
      %v453 = vpack.c.b16 %v427, %v425
      %v454 = vpack.c.b16 %v428, %v426
      %v455 = vpack.c.b16 %v431, %v429
      %v456 = vpack.c.b16 %v432, %v430
      %v457 = vpack.c.b16 %v435, %v433
      %v458 = vpack.c.b16 %v436, %v434
      %v459 = vpack.c.b16 %v439, %v437
      %v460 = vpack.c.b16 %v440, %v438
      %v461 = vpack.c.b16 %v443, %v441
      %v462 = vpack.c.b16 %v444, %v442
      %v463 = vpack.c.b16 %v447, %v445
      %v464 = vpack.c.b16 %v448, %v446
      %481 = vmatprep.subr.bf16.mxu0 %v450
      %482 = vmatpush1.bf16.msra.mxu0 %v449
      %483 = vmatprep.subr.bf16.mxu0 %v452
      %484 = vmatpush1.bf16.msra.mxu0 %v451
      %485 = vmatprep.subr.bf16.mxu0 %v454
      %486 = vmatpush1.bf16.msra.mxu0 %v453
      %487 = vmatprep.subr.bf16.mxu0 %v456
      %488 = vmatpush1.bf16.msra.mxu0 %v455
      %489 = vmatprep.subr.bf16.mxu0 %v458
      %490 = vmatpush1.bf16.msra.mxu0 %v457
      %491 = vmatprep.subr.bf16.mxu0 %v460
      %492 = vmatpush1.bf16.msra.mxu0 %v459
      %493 = vmatprep.subr.bf16.mxu0 %v462
      %494 = vmatpush1.bf16.msra.mxu0 %v461
      %495 = vmatprep.subr.bf16.mxu0 %v464
      %496 = vmatpush1.bf16.msra.mxu0 %v463
      %497 = vmatprep.subr.bf16.mxu0 0
      %498 = vmatpush1.bf16.msra.mxu0 0
      %499 = vmatprep.subr.bf16.mxu0 0
      %500 = vmatpush1.bf16.msra.mxu0 0
      %501 = vmatprep.subr.bf16.mxu0 0
      %502 = vmatpush1.bf16.msra.mxu0 0
      %503 = vmatprep.subr.bf16.mxu0 0
      %504 = vmatpush1.bf16.msra.mxu0 0
      %505 = vmatprep.subr.bf16.mxu0 0
      %506 = vmatpush1.bf16.msra.mxu0 0
      %507 = vmatprep.subr.bf16.mxu0 0
      %508 = vmatpush1.bf16.msra.mxu0 0
      %509 = vmatprep.subr.bf16.mxu0 0
      %510 = vmatpush1.bf16.msra.mxu0 0
      %511 = vmatprep.subr.bf16.mxu0 0
      %512 = vmatpush1.bf16.msra.mxu0 0
      %513 = vmatprep.mubr.bf16.mxu0 0
      %514 = vmatmul.mubr.bf16.gmra.mrb[0].mxu0 %v393
      %v515 = vpop.f32.mrb[0].mxu0
      %v516 = vadd.f32 %v353, %v515
      %v517 = vpop.f32.mrb[0].mxu0
      %v518 = vadd.f32 %v355, %v517
      %v519 = vpop.f32.mrb[0].mxu0
      %v520 = vadd.f32 %v357, %v519
      %v521 = vpop.f32.mrb[0].mxu0
      %v522 = vadd.f32 %v359, %v521
      %523 = vmatprep.mubr.bf16.mxu0 0
      %524 = vmatmul.mubr.bf16.gmra.mrb[0].mxu0 %v394
      %v525 = vpop.f32.mrb[0].mxu0
      %v526 = vadd.f32 %v363, %v525
      %v527 = vpop.f32.mrb[0].mxu0
      %v528 = vadd.f32 %v365, %v527
      %v529 = vpop.f32.mrb[0].mxu0
      %v530 = vadd.f32 %v367, %v529
      %v531 = vpop.f32.mrb[0].mxu0
      %v532 = vadd.f32 %v369, %v531
      %533 = vmatprep.mubr.bf16.mxu0 0
      %534 = vmatmul.mubr.bf16.gmra.mrb[0].mxu0 %v395
      %v535 = vpop.f32.mrb[0].mxu0
      %v536 = vadd.f32 %v373, %v535
      %v537 = vpop.f32.mrb[0].mxu0
      %v538 = vadd.f32 %v375, %v537
      %v539 = vpop.f32.mrb[0].mxu0
      %v540 = vadd.f32 %v377, %v539
      %v541 = vpop.f32.mrb[0].mxu0
      %v542 = vadd.f32 %v379, %v541
      %543 = vmatprep.mubr.bf16.mxu0 0
      %544 = vmatmul.mubr.bf16.gmra.mrb[0].mxu0 %v396
      %v545 = vpop.f32.mrb[0].mxu0
      %v546 = vadd.f32 %v383, %v545
      %v547 = vpop.f32.mrb[0].mxu0
      %v548 = vadd.f32 %v385, %v547
      %v549 = vpop.f32.mrb[0].mxu0
      %v550 = vadd.f32 %v387, %v549
      %v551 = vpop.f32.mrb[0].mxu0
      %v552 = vadd.f32 %v389, %v551
      %553 = vdwg.mxu0
      %v554 = vld [vmem:[%s165 + $0x8] sm:$0xf]
      %v555 = vld [vmem:[%s165 + $0xc] sm:$0xf]
      %v556 = vld [vmem:[%s165 + $0x10] sm:$0xf]
      %v557 = vld [vmem:[%s165 + $0x14] sm:$0xf]
      %v558 = vld [vmem:[%s165 + $0x18] sm:$0xf]
      %v559 = vld [vmem:[%s165 + $0x1c] sm:$0xf]
      %v560 = vld [vmem:[%s165 + $0x20] sm:$0xf]
      %v561 = vld [vmem:[%s165 + $0x24] sm:$0xf]
      %s562 = scalar_lea.vmem %s1, 256
      %v563 = vld [vmem:[%s562] sm:$0xff]
      %v564 = vld [vmem:[%s562 + $0x8] sm:$0xff]
      %v565 = vld [vmem:[%s562 + $0x10] sm:$0xff]
      %v566 = vld [vmem:[%s562 + $0x18] sm:$0xff]
      %v567 = vld [vmem:[%s562 + $0x20] sm:$0xff]
      %v568 = vld [vmem:[%s562 + $0x28] sm:$0xff]
      %v569 = vld [vmem:[%s562 + $0x30] sm:$0xff]
      %v570 = vld [vmem:[%s562 + $0x38] sm:$0xff]
      %v571 = vld [vmem:[%s562 + $0x40] sm:$0xff]
      %v572 = vld [vmem:[%s562 + $0x48] sm:$0xff]
      %v573 = vld [vmem:[%s562 + $0x50] sm:$0xff]
      %v574 = vld [vmem:[%s562 + $0x58] sm:$0xff]
      %v575 = vld [vmem:[%s562 + $0x60] sm:$0xff]
      %v576 = vld [vmem:[%s562 + $0x68] sm:$0xff]
      %v577 = vld [vmem:[%s562 + $0x70] sm:$0xff]
      %v578 = vld [vmem:[%s562 + $0x78] sm:$0xff]
      %v587 = vunpack.c.l.b16 %v554
      %v588 = vunpack.c.l.b16 %v555
      %v589 = vunpack.c.l.b16 %v556
      %v590 = vunpack.c.l.b16 %v557
      %v591 = vunpack.c.l.b16 %v558
      %v592 = vunpack.c.l.b16 %v559
      %v593 = vunpack.c.l.b16 %v560
      %v594 = vunpack.c.l.b16 %v561
      %v595 = vpack.c.b16 %v588, %v587
      %v596 = vpack.c.b16 %v590, %v589
      %v597 = vpack.c.b16 %v592, %v591
      %v598 = vpack.c.b16 %v594, %v593
      %v619 = vunpack.c.l.b16 %v563
      %v620 = vunpack.c.h.b16 %v563
      %v621 = vunpack.c.l.b16 %v564
      %v622 = vunpack.c.h.b16 %v564
      %v623 = vunpack.c.l.b16 %v565
      %v624 = vunpack.c.h.b16 %v565
      %v625 = vunpack.c.l.b16 %v566
      %v626 = vunpack.c.h.b16 %v566
      %v627 = vunpack.c.l.b16 %v567
      %v628 = vunpack.c.h.b16 %v567
      %v629 = vunpack.c.l.b16 %v568
      %v630 = vunpack.c.h.b16 %v568
      %v631 = vunpack.c.l.b16 %v569
      %v632 = vunpack.c.h.b16 %v569
      %v633 = vunpack.c.l.b16 %v570
      %v634 = vunpack.c.h.b16 %v570
      %v635 = vunpack.c.l.b16 %v571
      %v636 = vunpack.c.h.b16 %v571
      %v637 = vunpack.c.l.b16 %v572
      %v638 = vunpack.c.h.b16 %v572
      %v639 = vunpack.c.l.b16 %v573
      %v640 = vunpack.c.h.b16 %v573
      %v641 = vunpack.c.l.b16 %v574
      %v642 = vunpack.c.h.b16 %v574
      %v643 = vunpack.c.l.b16 %v575
      %v644 = vunpack.c.h.b16 %v575
      %v645 = vunpack.c.l.b16 %v576
      %v646 = vunpack.c.h.b16 %v576
      %v647 = vunpack.c.l.b16 %v577
      %v648 = vunpack.c.h.b16 %v577
      %v649 = vunpack.c.l.b16 %v578
      %v650 = vunpack.c.h.b16 %v578
      %v651 = vpack.c.b16 %v621, %v619
      %v652 = vpack.c.b16 %v622, %v620
      %v653 = vpack.c.b16 %v625, %v623
      %v654 = vpack.c.b16 %v626, %v624
      %v655 = vpack.c.b16 %v629, %v627
      %v656 = vpack.c.b16 %v630, %v628
      %v657 = vpack.c.b16 %v633, %v631
      %v658 = vpack.c.b16 %v634, %v632
      %v659 = vpack.c.b16 %v637, %v635
      %v660 = vpack.c.b16 %v638, %v636
      %v661 = vpack.c.b16 %v641, %v639
      %v662 = vpack.c.b16 %v642, %v640
      %v663 = vpack.c.b16 %v645, %v643
      %v664 = vpack.c.b16 %v646, %v644
      %v665 = vpack.c.b16 %v649, %v647
      %v666 = vpack.c.b16 %v650, %v648
      %683 = vmatprep.subr.bf16.mxu0 %v652
      %684 = vmatpush1.bf16.msra.mxu0 %v651
      %685 = vmatprep.subr.bf16.mxu0 %v654
      %686 = vmatpush1.bf16.msra.mxu0 %v653
      %687 = vmatprep.subr.bf16.mxu0 %v656
      %688 = vmatpush1.bf16.msra.mxu0 %v655
      %689 = vmatprep.subr.bf16.mxu0 %v658
      %690 = vmatpush1.bf16.msra.mxu0 %v657
      %691 = vmatprep.subr.bf16.mxu0 %v660
      %692 = vmatpush1.bf16.msra.mxu0 %v659
      %693 = vmatprep.subr.bf16.mxu0 %v662
      %694 = vmatpush1.bf16.msra.mxu0 %v661
      %695 = vmatprep.subr.bf16.mxu0 %v664
      %696 = vmatpush1.bf16.msra.mxu0 %v663
      %697 = vmatprep.subr.bf16.mxu0 %v666
      %698 = vmatpush1.bf16.msra.mxu0 %v665
      %699 = vmatprep.subr.bf16.mxu0 0
      %700 = vmatpush1.bf16.msra.mxu0 0
      %701 = vmatprep.subr.bf16.mxu0 0
      %702 = vmatpush1.bf16.msra.mxu0 0
      %703 = vmatprep.subr.bf16.mxu0 0
      %704 = vmatpush1.bf16.msra.mxu0 0
      %705 = vmatprep.subr.bf16.mxu0 0
      %706 = vmatpush1.bf16.msra.mxu0 0
      %707 = vmatprep.subr.bf16.mxu0 0
      %708 = vmatpush1.bf16.msra.mxu0 0
      %709 = vmatprep.subr.bf16.mxu0 0
      %710 = vmatpush1.bf16.msra.mxu0 0
      %711 = vmatprep.subr.bf16.mxu0 0
      %712 = vmatpush1.bf16.msra.mxu0 0
      %713 = vmatprep.subr.bf16.mxu0 0
      %714 = vmatpush1.bf16.msra.mxu0 0
      %715 = vmatprep.mubr.bf16.mxu0 0
      %716 = vmatmul.mubr.bf16.gmra.mrb[0].mxu0 %v595
      %v717 = vpop.f32.mrb[0].mxu0
      %v718 = vadd.f32 0.0, %v717
      %v719 = vpop.f32.mrb[0].mxu0
      %v720 = vadd.f32 0.0, %v719
      %v721 = vpop.f32.mrb[0].mxu0
      %v722 = vadd.f32 0.0, %v721
      %v723 = vpop.f32.mrb[0].mxu0
      %v724 = vadd.f32 0.0, %v723
      %725 = vmatprep.mubr.bf16.mxu0 0
      %726 = vmatmul.mubr.bf16.gmra.mrb[0].mxu0 %v596
      %v727 = vpop.f32.mrb[0].mxu0
      %v728 = vadd.f32 0.0, %v727
      %v729 = vpop.f32.mrb[0].mxu0
      %v730 = vadd.f32 0.0, %v729
      %v731 = vpop.f32.mrb[0].mxu0
      %v732 = vadd.f32 0.0, %v731
      %v733 = vpop.f32.mrb[0].mxu0
      %v734 = vadd.f32 0.0, %v733
      %735 = vmatprep.mubr.bf16.mxu0 0
      %736 = vmatmul.mubr.bf16.gmra.mrb[0].mxu0 %v597
      %v737 = vpop.f32.mrb[0].mxu0
      %v738 = vadd.f32 0.0, %v737
      %v739 = vpop.f32.mrb[0].mxu0
      %v740 = vadd.f32 0.0, %v739
      %v741 = vpop.f32.mrb[0].mxu0
      %v742 = vadd.f32 0.0, %v741
      %v743 = vpop.f32.mrb[0].mxu0
      %v744 = vadd.f32 0.0, %v743
      %745 = vmatprep.mubr.bf16.mxu0 0
      %746 = vmatmul.mubr.bf16.gmra.mrb[0].mxu0 %v598
      %v747 = vpop.f32.mrb[0].mxu0
      %v748 = vadd.f32 0.0, %v747
      %v749 = vpop.f32.mrb[0].mxu0
      %v750 = vadd.f32 0.0, %v749
      %v751 = vpop.f32.mrb[0].mxu0
      %v752 = vadd.f32 0.0, %v751
      %v753 = vpop.f32.mrb[0].mxu0
      %v754 = vadd.f32 0.0, %v753
      %755 = vdwg.mxu0
      %v756 = vadd.f32 %v516, %v718
      %v757 = vadd.f32 %v518, %v720
      %v758 = vadd.f32 %v520, %v722
      %v759 = vadd.f32 %v522, %v724
      %v760 = vadd.f32 %v526, %v728
      %v761 = vadd.f32 %v528, %v730
      %v762 = vadd.f32 %v530, %v732
      %v763 = vadd.f32 %v532, %v734
      %v764 = vadd.f32 %v536, %v738
      %v765 = vadd.f32 %v538, %v740
      %v766 = vadd.f32 %v540, %v742
      %v767 = vadd.f32 %v542, %v744
      %v768 = vadd.f32 %v546, %v748
      %v769 = vadd.f32 %v548, %v750
      %v770 = vadd.f32 %v550, %v752
      %v771 = vadd.f32 %v552, %v754
      %v772 = vld [vmem:[%s165 + $0xc] sm:$0xf]
      %v773 = vld [vmem:[%s165 + $0x10] sm:$0xf]
      %v774 = vld [vmem:[%s165 + $0x14] sm:$0xf]
      %v775 = vld [vmem:[%s165 + $0x18] sm:$0xf]
      %v776 = vld [vmem:[%s165 + $0x1c] sm:$0xf]
      %v777 = vld [vmem:[%s165 + $0x20] sm:$0xf]
      %v778 = vld [vmem:[%s165 + $0x24] sm:$0xf]
      %v779 = vld [vmem:[%s165 + $0x28] sm:$0xf]
      %s780 = scalar_lea.vmem %s1, 384
      %v781 = vld [vmem:[%s780] sm:$0xff]
      %v782 = vld [vmem:[%s780 + $0x8] sm:$0xff]
      %v783 = vld [vmem:[%s780 + $0x10] sm:$0xff]
      %v784 = vld [vmem:[%s780 + $0x18] sm:$0xff]
      %v785 = vld [vmem:[%s780 + $0x20] sm:$0xff]
      %v786 = vld [vmem:[%s780 + $0x28] sm:$0xff]
      %v787 = vld [vmem:[%s780 + $0x30] sm:$0xff]
      %v788 = vld [vmem:[%s780 + $0x38] sm:$0xff]
      %v789 = vld [vmem:[%s780 + $0x40] sm:$0xff]
      %v790 = vld [vmem:[%s780 + $0x48] sm:$0xff]
      %v791 = vld [vmem:[%s780 + $0x50] sm:$0xff]
      %v792 = vld [vmem:[%s780 + $0x58] sm:$0xff]
      %v793 = vld [vmem:[%s780 + $0x60] sm:$0xff]
      %v794 = vld [vmem:[%s780 + $0x68] sm:$0xff]
      %v795 = vld [vmem:[%s780 + $0x70] sm:$0xff]
      %v796 = vld [vmem:[%s780 + $0x78] sm:$0xff]
      %v805 = vunpack.c.l.b16 %v772
      %v806 = vunpack.c.l.b16 %v773
      %v807 = vunpack.c.l.b16 %v774
      %v808 = vunpack.c.l.b16 %v775
      %v809 = vunpack.c.l.b16 %v776
      %v810 = vunpack.c.l.b16 %v777
      %v811 = vunpack.c.l.b16 %v778
      %v812 = vunpack.c.l.b16 %v779
      %v813 = vpack.c.b16 %v806, %v805
      %v814 = vpack.c.b16 %v808, %v807
      %v815 = vpack.c.b16 %v810, %v809
      %v816 = vpack.c.b16 %v812, %v811
      %v837 = vunpack.c.l.b16 %v781
      %v838 = vunpack.c.h.b16 %v781
      %v839 = vunpack.c.l.b16 %v782
      %v840 = vunpack.c.h.b16 %v782
      %v841 = vunpack.c.l.b16 %v783
      %v842 = vunpack.c.h.b16 %v783
      %v843 = vunpack.c.l.b16 %v784
      %v844 = vunpack.c.h.b16 %v784
      %v845 = vunpack.c.l.b16 %v785
      %v846 = vunpack.c.h.b16 %v785
      %v847 = vunpack.c.l.b16 %v786
      %v848 = vunpack.c.h.b16 %v786
      %v849 = vunpack.c.l.b16 %v787
      %v850 = vunpack.c.h.b16 %v787
      %v851 = vunpack.c.l.b16 %v788
      %v852 = vunpack.c.h.b16 %v788
      %v853 = vunpack.c.l.b16 %v789
      %v854 = vunpack.c.h.b16 %v789
      %v855 = vunpack.c.l.b16 %v790
      %v856 = vunpack.c.h.b16 %v790
      %v857 = vunpack.c.l.b16 %v791
      %v858 = vunpack.c.h.b16 %v791
      %v859 = vunpack.c.l.b16 %v792
      %v860 = vunpack.c.h.b16 %v792
      %v861 = vunpack.c.l.b16 %v793
      %v862 = vunpack.c.h.b16 %v793
      %v863 = vunpack.c.l.b16 %v794
      %v864 = vunpack.c.h.b16 %v794
      %v865 = vunpack.c.l.b16 %v795
      %v866 = vunpack.c.h.b16 %v795
      %v867 = vunpack.c.l.b16 %v796
      %v868 = vunpack.c.h.b16 %v796
      %v869 = vpack.c.b16 %v839, %v837
      %v870 = vpack.c.b16 %v840, %v838
      %v871 = vpack.c.b16 %v843, %v841
      %v872 = vpack.c.b16 %v844, %v842
      %v873 = vpack.c.b16 %v847, %v845
      %v874 = vpack.c.b16 %v848, %v846
      %v875 = vpack.c.b16 %v851, %v849
      %v876 = vpack.c.b16 %v852, %v850
      %v877 = vpack.c.b16 %v855, %v853
      %v878 = vpack.c.b16 %v856, %v854
      %v879 = vpack.c.b16 %v859, %v857
      %v880 = vpack.c.b16 %v860, %v858
      %v881 = vpack.c.b16 %v863, %v861
      %v882 = vpack.c.b16 %v864, %v862
      %v883 = vpack.c.b16 %v867, %v865
      %v884 = vpack.c.b16 %v868, %v866
      %901 = vmatprep.subr.bf16.mxu0 %v870
      %902 = vmatpush1.bf16.msra.mxu0 %v869
      %903 = vmatprep.subr.bf16.mxu0 %v872
      %904 = vmatpush1.bf16.msra.mxu0 %v871
      %905 = vmatprep.subr.bf16.mxu0 %v874
      %906 = vmatpush1.bf16.msra.mxu0 %v873
      %907 = vmatprep.subr.bf16.mxu0 %v876
      %908 = vmatpush1.bf16.msra.mxu0 %v875
      %909 = vmatprep.subr.bf16.mxu0 %v878
      %910 = vmatpush1.bf16.msra.mxu0 %v877
      %911 = vmatprep.subr.bf16.mxu0 %v880
      %912 = vmatpush1.bf16.msra.mxu0 %v879
      %913 = vmatprep.subr.bf16.mxu0 %v882
      %914 = vmatpush1.bf16.msra.mxu0 %v881
      %915 = vmatprep.subr.bf16.mxu0 %v884
      %916 = vmatpush1.bf16.msra.mxu0 %v883
      %917 = vmatprep.subr.bf16.mxu0 0
      %918 = vmatpush1.bf16.msra.mxu0 0
      %919 = vmatprep.subr.bf16.mxu0 0
      %920 = vmatpush1.bf16.msra.mxu0 0
      %921 = vmatprep.subr.bf16.mxu0 0
      %922 = vmatpush1.bf16.msra.mxu0 0
      %923 = vmatprep.subr.bf16.mxu0 0
      %924 = vmatpush1.bf16.msra.mxu0 0
      %925 = vmatprep.subr.bf16.mxu0 0
      %926 = vmatpush1.bf16.msra.mxu0 0
      %927 = vmatprep.subr.bf16.mxu0 0
      %928 = vmatpush1.bf16.msra.mxu0 0
      %929 = vmatprep.subr.bf16.mxu0 0
      %930 = vmatpush1.bf16.msra.mxu0 0
      %931 = vmatprep.subr.bf16.mxu0 0
      %932 = vmatpush1.bf16.msra.mxu0 0
      %933 = vmatprep.mubr.bf16.mxu0 0
      %934 = vmatmul.mubr.bf16.gmra.mrb[0].mxu0 %v813
      %v935 = vpop.f32.mrb[0].mxu0
      %v936 = vadd.f32 0.0, %v935
      %v937 = vpop.f32.mrb[0].mxu0
      %v938 = vadd.f32 0.0, %v937
      %v939 = vpop.f32.mrb[0].mxu0
      %v940 = vadd.f32 0.0, %v939
      %v941 = vpop.f32.mrb[0].mxu0
      %v942 = vadd.f32 0.0, %v941
      %943 = vmatprep.mubr.bf16.mxu0 0
      %944 = vmatmul.mubr.bf16.gmra.mrb[0].mxu0 %v814
      %v945 = vpop.f32.mrb[0].mxu0
      %v946 = vadd.f32 0.0, %v945
      %v947 = vpop.f32.mrb[0].mxu0
      %v948 = vadd.f32 0.0, %v947
      %v949 = vpop.f32.mrb[0].mxu0
      %v950 = vadd.f32 0.0, %v949
      %v951 = vpop.f32.mrb[0].mxu0
      %v952 = vadd.f32 0.0, %v951
      %953 = vmatprep.mubr.bf16.mxu0 0
      %954 = vmatmul.mubr.bf16.gmra.mrb[0].mxu0 %v815
      %v955 = vpop.f32.mrb[0].mxu0
      %v956 = vadd.f32 0.0, %v955
      %v957 = vpop.f32.mrb[0].mxu0
      %v958 = vadd.f32 0.0, %v957
      %v959 = vpop.f32.mrb[0].mxu0
      %v960 = vadd.f32 0.0, %v959
      %v961 = vpop.f32.mrb[0].mxu0
      %v962 = vadd.f32 0.0, %v961
      %963 = vmatprep.mubr.bf16.mxu0 0
      %964 = vmatmul.mubr.bf16.gmra.mrb[0].mxu0 %v816
      %v965 = vpop.f32.mrb[0].mxu0
      %v966 = vadd.f32 0.0, %v965
      %v967 = vpop.f32.mrb[0].mxu0
      %v968 = vadd.f32 0.0, %v967
      %v969 = vpop.f32.mrb[0].mxu0
      %v970 = vadd.f32 0.0, %v969
      %v971 = vpop.f32.mrb[0].mxu0
      %v972 = vadd.f32 0.0, %v971
      %973 = vdwg.mxu0
      %v974 = vadd.f32 %v756, %v936
      %v975 = vadd.f32 %v757, %v938
      %v976 = vadd.f32 %v758, %v940
      %v977 = vadd.f32 %v759, %v942
      %v978 = vadd.f32 %v760, %v946
      %v979 = vadd.f32 %v761, %v948
      %v980 = vadd.f32 %v762, %v950
      %v981 = vadd.f32 %v763, %v952
      %v982 = vadd.f32 %v764, %v956
      %v983 = vadd.f32 %v765, %v958
      %v984 = vadd.f32 %v766, %v960
      %v985 = vadd.f32 %v767, %v962
      %v986 = vadd.f32 %v768, %v966
      %v987 = vadd.f32 %v769, %v968
      %v988 = vadd.f32 %v770, %v970
      %v989 = vadd.f32 %v771, %v972
      %v990 = vld [vmem:[%s165 + $0x10] sm:$0xf]
      %v991 = vld [vmem:[%s165 + $0x14] sm:$0xf]
      %v992 = vld [vmem:[%s165 + $0x18] sm:$0xf]
      %v993 = vld [vmem:[%s165 + $0x1c] sm:$0xf]
      %v994 = vld [vmem:[%s165 + $0x20] sm:$0xf]
      %v995 = vld [vmem:[%s165 + $0x24] sm:$0xf]
      %v996 = vld [vmem:[%s165 + $0x28] sm:$0xf]
      %v997 = vld [vmem:[%s165 + $0x2c] sm:$0xf]
      %s998 = scalar_lea.vmem %s1, 512
      %v999 = vld [vmem:[%s998] sm:$0xff]
      %v1000 = vld [vmem:[%s998 + $0x8] sm:$0xff]
      %v1001 = vld [vmem:[%s998 + $0x10] sm:$0xff]
      %v1002 = vld [vmem:[%s998 + $0x18] sm:$0xff]
      %v1003 = vld [vmem:[%s998 + $0x20] sm:$0xff]
      %v1004 = vld [vmem:[%s998 + $0x28] sm:$0xff]
      %v1005 = vld [vmem:[%s998 + $0x30] sm:$0xff]
      %v1006 = vld [vmem:[%s998 + $0x38] sm:$0xff]
      %v1007 = vld [vmem:[%s998 + $0x40] sm:$0xff]
      %v1008 = vld [vmem:[%s998 + $0x48] sm:$0xff]
      %v1009 = vld [vmem:[%s998 + $0x50] sm:$0xff]
      %v1010 = vld [vmem:[%s998 + $0x58] sm:$0xff]
      %v1011 = vld [vmem:[%s998 + $0x60] sm:$0xff]
      %v1012 = vld [vmem:[%s998 + $0x68] sm:$0xff]
      %v1013 = vld [vmem:[%s998 + $0x70] sm:$0xff]
      %v1014 = vld [vmem:[%s998 + $0x78] sm:$0xff]
      %v1023 = vunpack.c.l.b16 %v990
      %v1024 = vunpack.c.l.b16 %v991
      %v1025 = vunpack.c.l.b16 %v992
      %v1026 = vunpack.c.l.b16 %v993
      %v1027 = vunpack.c.l.b16 %v994
      %v1028 = vunpack.c.l.b16 %v995
      %v1029 = vunpack.c.l.b16 %v996
      %v1030 = vunpack.c.l.b16 %v997
      %v1031 = vpack.c.b16 %v1024, %v1023
      %v1032 = vpack.c.b16 %v1026, %v1025
      %v1033 = vpack.c.b16 %v1028, %v1027
      %v1034 = vpack.c.b16 %v1030, %v1029
      %v1055 = vunpack.c.l.b16 %v999
      %v1056 = vunpack.c.h.b16 %v999
      %v1057 = vunpack.c.l.b16 %v1000
      %v1058 = vunpack.c.h.b16 %v1000
      %v1059 = vunpack.c.l.b16 %v1001
      %v1060 = vunpack.c.h.b16 %v1001
      %v1061 = vunpack.c.l.b16 %v1002
      %v1062 = vunpack.c.h.b16 %v1002
      %v1063 = vunpack.c.l.b16 %v1003
      %v1064 = vunpack.c.h.b16 %v1003
      %v1065 = vunpack.c.l.b16 %v1004
      %v1066 = vunpack.c.h.b16 %v1004
      %v1067 = vunpack.c.l.b16 %v1005
      %v1068 = vunpack.c.h.b16 %v1005
      %v1069 = vunpack.c.l.b16 %v1006
      %v1070 = vunpack.c.h.b16 %v1006
      %v1071 = vunpack.c.l.b16 %v1007
      %v1072 = vunpack.c.h.b16 %v1007
      %v1073 = vunpack.c.l.b16 %v1008
      %v1074 = vunpack.c.h.b16 %v1008
      %v1075 = vunpack.c.l.b16 %v1009
      %v1076 = vunpack.c.h.b16 %v1009
      %v1077 = vunpack.c.l.b16 %v1010
      %v1078 = vunpack.c.h.b16 %v1010
      %v1079 = vunpack.c.l.b16 %v1011
      %v1080 = vunpack.c.h.b16 %v1011
      %v1081 = vunpack.c.l.b16 %v1012
      %v1082 = vunpack.c.h.b16 %v1012
      %v1083 = vunpack.c.l.b16 %v1013
      %v1084 = vunpack.c.h.b16 %v1013
      %v1085 = vunpack.c.l.b16 %v1014
      %v1086 = vunpack.c.h.b16 %v1014
      %v1087 = vpack.c.b16 %v1057, %v1055
      %v1088 = vpack.c.b16 %v1058, %v1056
      %v1089 = vpack.c.b16 %v1061, %v1059
      %v1090 = vpack.c.b16 %v1062, %v1060
      %v1091 = vpack.c.b16 %v1065, %v1063
      %v1092 = vpack.c.b16 %v1066, %v1064
      %v1093 = vpack.c.b16 %v1069, %v1067
      %v1094 = vpack.c.b16 %v1070, %v1068
      %v1095 = vpack.c.b16 %v1073, %v1071
      %v1096 = vpack.c.b16 %v1074, %v1072
      %v1097 = vpack.c.b16 %v1077, %v1075
      %v1098 = vpack.c.b16 %v1078, %v1076
      %v1099 = vpack.c.b16 %v1081, %v1079
      %v1100 = vpack.c.b16 %v1082, %v1080
      %v1101 = vpack.c.b16 %v1085, %v1083
      %v1102 = vpack.c.b16 %v1086, %v1084
      %1119 = vmatprep.subr.bf16.mxu0 %v1088
      %1120 = vmatpush1.bf16.msra.mxu0 %v1087
      %1121 = vmatprep.subr.bf16.mxu0 %v1090
      %1122 = vmatpush1.bf16.msra.mxu0 %v1089
      %1123 = vmatprep.subr.bf16.mxu0 %v1092
      %1124 = vmatpush1.bf16.msra.mxu0 %v1091
      %1125 = vmatprep.subr.bf16.mxu0 %v1094
      %1126 = vmatpush1.bf16.msra.mxu0 %v1093
      %1127 = vmatprep.subr.bf16.mxu0 %v1096
      %1128 = vmatpush1.bf16.msra.mxu0 %v1095
      %1129 = vmatprep.subr.bf16.mxu0 %v1098
      %1130 = vmatpush1.bf16.msra.mxu0 %v1097
      %1131 = vmatprep.subr.bf16.mxu0 %v1100
      %1132 = vmatpush1.bf16.msra.mxu0 %v1099
      %1133 = vmatprep.subr.bf16.mxu0 %v1102
      %1134 = vmatpush1.bf16.msra.mxu0 %v1101
      %1135 = vmatprep.subr.bf16.mxu0 0
      %1136 = vmatpush1.bf16.msra.mxu0 0
      %1137 = vmatprep.subr.bf16.mxu0 0
      %1138 = vmatpush1.bf16.msra.mxu0 0
      %1139 = vmatprep.subr.bf16.mxu0 0
      %1140 = vmatpush1.bf16.msra.mxu0 0
      %1141 = vmatprep.subr.bf16.mxu0 0
      %1142 = vmatpush1.bf16.msra.mxu0 0
      %1143 = vmatprep.subr.bf16.mxu0 0
      %1144 = vmatpush1.bf16.msra.mxu0 0
      %1145 = vmatprep.subr.bf16.mxu0 0
      %1146 = vmatpush1.bf16.msra.mxu0 0
      %1147 = vmatprep.subr.bf16.mxu0 0
      %1148 = vmatpush1.bf16.msra.mxu0 0
      %1149 = vmatprep.subr.bf16.mxu0 0
      %1150 = vmatpush1.bf16.msra.mxu0 0
      %1151 = vmatprep.mubr.bf16.mxu0 0
      %1152 = vmatmul.mubr.bf16.gmra.mrb[0].mxu0 %v1031
      %v1153 = vpop.f32.mrb[0].mxu0
      %v1154 = vadd.f32 0.0, %v1153
      %v1155 = vpop.f32.mrb[0].mxu0
      %v1156 = vadd.f32 0.0, %v1155
      %v1157 = vpop.f32.mrb[0].mxu0
      %v1158 = vadd.f32 0.0, %v1157
      %v1159 = vpop.f32.mrb[0].mxu0
      %v1160 = vadd.f32 0.0, %v1159
      %1161 = vmatprep.mubr.bf16.mxu0 0
      %1162 = vmatmul.mubr.bf16.gmra.mrb[0].mxu0 %v1032
      %v1163 = vpop.f32.mrb[0].mxu0
      %v1164 = vadd.f32 0.0, %v1163
      %v1165 = vpop.f32.mrb[0].mxu0
      %v1166 = vadd.f32 0.0, %v1165
      %v1167 = vpop.f32.mrb[0].mxu0
      %v1168 = vadd.f32 0.0, %v1167
      %v1169 = vpop.f32.mrb[0].mxu0
      %v1170 = vadd.f32 0.0, %v1169
      %1171 = vmatprep.mubr.bf16.mxu0 0
      %1172 = vmatmul.mubr.bf16.gmra.mrb[0].mxu0 %v1033
      %v1173 = vpop.f32.mrb[0].mxu0
      %v1174 = vadd.f32 0.0, %v1173
      %v1175 = vpop.f32.mrb[0].mxu0
      %v1176 = vadd.f32 0.0, %v1175
      %v1177 = vpop.f32.mrb[0].mxu0
      %v1178 = vadd.f32 0.0, %v1177
      %v1179 = vpop.f32.mrb[0].mxu0
      %v1180 = vadd.f32 0.0, %v1179
      %1181 = vmatprep.mubr.bf16.mxu0 0
      %1182 = vmatmul.mubr.bf16.gmra.mrb[0].mxu0 %v1034
      %v1183 = vpop.f32.mrb[0].mxu0
      %v1184 = vadd.f32 0.0, %v1183
      %v1185 = vpop.f32.mrb[0].mxu0
      %v1186 = vadd.f32 0.0, %v1185
      %v1187 = vpop.f32.mrb[0].mxu0
      %v1188 = vadd.f32 0.0, %v1187
      %v1189 = vpop.f32.mrb[0].mxu0
      %v1190 = vadd.f32 0.0, %v1189
      %1191 = vdwg.mxu0
      %v1192 = vadd.f32 %v974, %v1154
      %v1193 = vadd.f32 %v975, %v1156
      %v1194 = vadd.f32 %v976, %v1158
      %v1195 = vadd.f32 %v977, %v1160
      %v1196 = vadd.f32 %v978, %v1164
      %v1197 = vadd.f32 %v979, %v1166
      %v1198 = vadd.f32 %v980, %v1168
      %v1199 = vadd.f32 %v981, %v1170
      %v1200 = vadd.f32 %v982, %v1174
      %v1201 = vadd.f32 %v983, %v1176
      %v1202 = vadd.f32 %v984, %v1178
      %v1203 = vadd.f32 %v985, %v1180
      %v1204 = vadd.f32 %v986, %v1184
      %v1205 = vadd.f32 %v987, %v1186
      %v1206 = vadd.f32 %v988, %v1188
      %v1207 = vadd.f32 %v989, %v1190
      %v1208 = vld [vmem:[%s165 + $0x14] sm:$0xf]
      %v1209 = vld [vmem:[%s165 + $0x18] sm:$0xf]
      %v1210 = vld [vmem:[%s165 + $0x1c] sm:$0xf]
      %v1211 = vld [vmem:[%s165 + $0x20] sm:$0xf]
      %v1212 = vld [vmem:[%s165 + $0x24] sm:$0xf]
      %v1213 = vld [vmem:[%s165 + $0x28] sm:$0xf]
      %v1214 = vld [vmem:[%s165 + $0x2c] sm:$0xf]
      %v1215 = vld [vmem:[%s165 + $0x30] sm:$0xf]
      %s1216 = scalar_lea.vmem %s1, 640
      %v1217 = vld [vmem:[%s1216] sm:$0xff]
      %v1218 = vld [vmem:[%s1216 + $0x8] sm:$0xff]
      %v1219 = vld [vmem:[%s1216 + $0x10] sm:$0xff]
      %v1220 = vld [vmem:[%s1216 + $0x18] sm:$0xff]
      %v1221 = vld [vmem:[%s1216 + $0x20] sm:$0xff]
      %v1222 = vld [vmem:[%s1216 + $0x28] sm:$0xff]
      %v1223 = vld [vmem:[%s1216 + $0x30] sm:$0xff]
      %v1224 = vld [vmem:[%s1216 + $0x38] sm:$0xff]
      %v1225 = vld [vmem:[%s1216 + $0x40] sm:$0xff]
      %v1226 = vld [vmem:[%s1216 + $0x48] sm:$0xff]
      %v1227 = vld [vmem:[%s1216 + $0x50] sm:$0xff]
      %v1228 = vld [vmem:[%s1216 + $0x58] sm:$0xff]
      %v1229 = vld [vmem:[%s1216 + $0x60] sm:$0xff]
      %v1230 = vld [vmem:[%s1216 + $0x68] sm:$0xff]
      %v1231 = vld [vmem:[%s1216 + $0x70] sm:$0xff]
      %v1232 = vld [vmem:[%s1216 + $0x78] sm:$0xff]
      %v1241 = vunpack.c.l.b16 %v1208
      %v1242 = vunpack.c.l.b16 %v1209
      %v1243 = vunpack.c.l.b16 %v1210
      %v1244 = vunpack.c.l.b16 %v1211
      %v1245 = vunpack.c.l.b16 %v1212
      %v1246 = vunpack.c.l.b16 %v1213
      %v1247 = vunpack.c.l.b16 %v1214
      %v1248 = vunpack.c.l.b16 %v1215
      %v1249 = vpack.c.b16 %v1242, %v1241
      %v1250 = vpack.c.b16 %v1244, %v1243
      %v1251 = vpack.c.b16 %v1246, %v1245
      %v1252 = vpack.c.b16 %v1248, %v1247
      %v1273 = vunpack.c.l.b16 %v1217
      %v1274 = vunpack.c.h.b16 %v1217
      %v1275 = vunpack.c.l.b16 %v1218
      %v1276 = vunpack.c.h.b16 %v1218
      %v1277 = vunpack.c.l.b16 %v1219
      %v1278 = vunpack.c.h.b16 %v1219
      %v1279 = vunpack.c.l.b16 %v1220
      %v1280 = vunpack.c.h.b16 %v1220
      %v1281 = vunpack.c.l.b16 %v1221
      %v1282 = vunpack.c.h.b16 %v1221
      %v1283 = vunpack.c.l.b16 %v1222
      %v1284 = vunpack.c.h.b16 %v1222
      %v1285 = vunpack.c.l.b16 %v1223
      %v1286 = vunpack.c.h.b16 %v1223
      %v1287 = vunpack.c.l.b16 %v1224
      %v1288 = vunpack.c.h.b16 %v1224
      %v1289 = vunpack.c.l.b16 %v1225
      %v1290 = vunpack.c.h.b16 %v1225
      %v1291 = vunpack.c.l.b16 %v1226
      %v1292 = vunpack.c.h.b16 %v1226
      %v1293 = vunpack.c.l.b16 %v1227
      %v1294 = vunpack.c.h.b16 %v1227
      %v1295 = vunpack.c.l.b16 %v1228
      %v1296 = vunpack.c.h.b16 %v1228
      %v1297 = vunpack.c.l.b16 %v1229
      %v1298 = vunpack.c.h.b16 %v1229
      %v1299 = vunpack.c.l.b16 %v1230
      %v1300 = vunpack.c.h.b16 %v1230
      %v1301 = vunpack.c.l.b16 %v1231
      %v1302 = vunpack.c.h.b16 %v1231
      %v1303 = vunpack.c.l.b16 %v1232
      %v1304 = vunpack.c.h.b16 %v1232
      %v1305 = vpack.c.b16 %v1275, %v1273
      %v1306 = vpack.c.b16 %v1276, %v1274
      %v1307 = vpack.c.b16 %v1279, %v1277
      %v1308 = vpack.c.b16 %v1280, %v1278
      %v1309 = vpack.c.b16 %v1283, %v1281
      %v1310 = vpack.c.b16 %v1284, %v1282
      %v1311 = vpack.c.b16 %v1287, %v1285
      %v1312 = vpack.c.b16 %v1288, %v1286
      %v1313 = vpack.c.b16 %v1291, %v1289
      %v1314 = vpack.c.b16 %v1292, %v1290
      %v1315 = vpack.c.b16 %v1295, %v1293
      %v1316 = vpack.c.b16 %v1296, %v1294
      %v1317 = vpack.c.b16 %v1299, %v1297
      %v1318 = vpack.c.b16 %v1300, %v1298
      %v1319 = vpack.c.b16 %v1303, %v1301
      %v1320 = vpack.c.b16 %v1304, %v1302
      %1337 = vmatprep.subr.bf16.mxu0 %v1306
      %1338 = vmatpush1.bf16.msra.mxu0 %v1305
      %1339 = vmatprep.subr.bf16.mxu0 %v1308
      %1340 = vmatpush1.bf16.msra.mxu0 %v1307
      %1341 = vmatprep.subr.bf16.mxu0 %v1310
      %1342 = vmatpush1.bf16.msra.mxu0 %v1309
      %1343 = vmatprep.subr.bf16.mxu0 %v1312
      %1344 = vmatpush1.bf16.msra.mxu0 %v1311
      %1345 = vmatprep.subr.bf16.mxu0 %v1314
      %1346 = vmatpush1.bf16.msra.mxu0 %v1313
      %1347 = vmatprep.subr.bf16.mxu0 %v1316
      %1348 = vmatpush1.bf16.msra.mxu0 %v1315
      %1349 = vmatprep.subr.bf16.mxu0 %v1318
      %1350 = vmatpush1.bf16.msra.mxu0 %v1317
      %1351 = vmatprep.subr.bf16.mxu0 %v1320
      %1352 = vmatpush1.bf16.msra.mxu0 %v1319
      %1353 = vmatprep.subr.bf16.mxu0 0
      %1354 = vmatpush1.bf16.msra.mxu0 0
      %1355 = vmatprep.subr.bf16.mxu0 0
      %1356 = vmatpush1.bf16.msra.mxu0 0
      %1357 = vmatprep.subr.bf16.mxu0 0
      %1358 = vmatpush1.bf16.msra.mxu0 0
      %1359 = vmatprep.subr.bf16.mxu0 0
      %1360 = vmatpush1.bf16.msra.mxu0 0
      %1361 = vmatprep.subr.bf16.mxu0 0
      %1362 = vmatpush1.bf16.msra.mxu0 0
      %1363 = vmatprep.subr.bf16.mxu0 0
      %1364 = vmatpush1.bf16.msra.mxu0 0
      %1365 = vmatprep.subr.bf16.mxu0 0
      %1366 = vmatpush1.bf16.msra.mxu0 0
      %1367 = vmatprep.subr.bf16.mxu0 0
      %1368 = vmatpush1.bf16.msra.mxu0 0
      %1369 = vmatprep.mubr.bf16.mxu0 0
      %1370 = vmatmul.mubr.bf16.gmra.mrb[0].mxu0 %v1249
      %v1371 = vpop.f32.mrb[0].mxu0
      %v1372 = vadd.f32 0.0, %v1371
      %v1373 = vpop.f32.mrb[0].mxu0
      %v1374 = vadd.f32 0.0, %v1373
      %v1375 = vpop.f32.mrb[0].mxu0
      %v1376 = vadd.f32 0.0, %v1375
      %v1377 = vpop.f32.mrb[0].mxu0
      %v1378 = vadd.f32 0.0, %v1377
      %1379 = vmatprep.mubr.bf16.mxu0 0
      %1380 = vmatmul.mubr.bf16.gmra.mrb[0].mxu0 %v1250
      %v1381 = vpop.f32.mrb[0].mxu0
      %v1382 = vadd.f32 0.0, %v1381
      %v1383 = vpop.f32.mrb[0].mxu0
      %v1384 = vadd.f32 0.0, %v1383
      %v1385 = vpop.f32.mrb[0].mxu0
      %v1386 = vadd.f32 0.0, %v1385
      %v1387 = vpop.f32.mrb[0].mxu0
      %v1388 = vadd.f32 0.0, %v1387
      %1389 = vmatprep.mubr.bf16.mxu0 0
      %1390 = vmatmul.mubr.bf16.gmra.mrb[0].mxu0 %v1251
      %v1391 = vpop.f32.mrb[0].mxu0
      %v1392 = vadd.f32 0.0, %v1391
      %v1393 = vpop.f32.mrb[0].mxu0
      %v1394 = vadd.f32 0.0, %v1393
      %v1395 = vpop.f32.mrb[0].mxu0
      %v1396 = vadd.f32 0.0, %v1395
      %v1397 = vpop.f32.mrb[0].mxu0
      %v1398 = vadd.f32 0.0, %v1397
      %1399 = vmatprep.mubr.bf16.mxu0 0
      %1400 = vmatmul.mubr.bf16.gmra.mrb[0].mxu0 %v1252
      %v1401 = vpop.f32.mrb[0].mxu0
      %v1402 = vadd.f32 0.0, %v1401
      %v1403 = vpop.f32.mrb[0].mxu0
      %v1404 = vadd.f32 0.0, %v1403
      %v1405 = vpop.f32.mrb[0].mxu0
      %v1406 = vadd.f32 0.0, %v1405
      %v1407 = vpop.f32.mrb[0].mxu0
      %v1408 = vadd.f32 0.0, %v1407
      %1409 = vdwg.mxu0
      %v1410 = vadd.f32 %v1192, %v1372
      %v1411 = vadd.f32 %v1193, %v1374
      %v1412 = vadd.f32 %v1194, %v1376
      %v1413 = vadd.f32 %v1195, %v1378
      %v1414 = vadd.f32 %v1196, %v1382
      %v1415 = vadd.f32 %v1197, %v1384
      %v1416 = vadd.f32 %v1198, %v1386
      %v1417 = vadd.f32 %v1199, %v1388
      %v1418 = vadd.f32 %v1200, %v1392
      %v1419 = vadd.f32 %v1201, %v1394
      %v1420 = vadd.f32 %v1202, %v1396
      %v1421 = vadd.f32 %v1203, %v1398
      %v1422 = vadd.f32 %v1204, %v1402
      %v1423 = vadd.f32 %v1205, %v1404
      %v1424 = vadd.f32 %v1206, %v1406
      %v1425 = vadd.f32 %v1207, %v1408
      %v1426 = vld [vmem:[%s165 + $0x18] sm:$0xf]
      %v1427 = vld [vmem:[%s165 + $0x1c] sm:$0xf]
      %v1428 = vld [vmem:[%s165 + $0x20] sm:$0xf]
      %v1429 = vld [vmem:[%s165 + $0x24] sm:$0xf]
      %v1430 = vld [vmem:[%s165 + $0x28] sm:$0xf]
      %v1431 = vld [vmem:[%s165 + $0x2c] sm:$0xf]
      %v1432 = vld [vmem:[%s165 + $0x30] sm:$0xf]
      %v1433 = vld [vmem:[%s165 + $0x34] sm:$0xf]
      %s1434 = scalar_lea.vmem %s1, 768
      %v1435 = vld [vmem:[%s1434] sm:$0xff]
      %v1436 = vld [vmem:[%s1434 + $0x8] sm:$0xff]
      %v1437 = vld [vmem:[%s1434 + $0x10] sm:$0xff]
      %v1438 = vld [vmem:[%s1434 + $0x18] sm:$0xff]
      %v1439 = vld [vmem:[%s1434 + $0x20] sm:$0xff]
      %v1440 = vld [vmem:[%s1434 + $0x28] sm:$0xff]
      %v1441 = vld [vmem:[%s1434 + $0x30] sm:$0xff]
      %v1442 = vld [vmem:[%s1434 + $0x38] sm:$0xff]
      %v1443 = vld [vmem:[%s1434 + $0x40] sm:$0xff]
      %v1444 = vld [vmem:[%s1434 + $0x48] sm:$0xff]
      %v1445 = vld [vmem:[%s1434 + $0x50] sm:$0xff]
      %v1446 = vld [vmem:[%s1434 + $0x58] sm:$0xff]
      %v1447 = vld [vmem:[%s1434 + $0x60] sm:$0xff]
      %v1448 = vld [vmem:[%s1434 + $0x68] sm:$0xff]
      %v1449 = vld [vmem:[%s1434 + $0x70] sm:$0xff]
      %v1450 = vld [vmem:[%s1434 + $0x78] sm:$0xff]
      %v1459 = vunpack.c.l.b16 %v1426
      %v1460 = vunpack.c.l.b16 %v1427
      %v1461 = vunpack.c.l.b16 %v1428
      %v1462 = vunpack.c.l.b16 %v1429
      %v1463 = vunpack.c.l.b16 %v1430
      %v1464 = vunpack.c.l.b16 %v1431
      %v1465 = vunpack.c.l.b16 %v1432
      %v1466 = vunpack.c.l.b16 %v1433
      %v1467 = vpack.c.b16 %v1460, %v1459
      %v1468 = vpack.c.b16 %v1462, %v1461
      %v1469 = vpack.c.b16 %v1464, %v1463
      %v1470 = vpack.c.b16 %v1466, %v1465
      %v1491 = vunpack.c.l.b16 %v1435
      %v1492 = vunpack.c.h.b16 %v1435
      %v1493 = vunpack.c.l.b16 %v1436
      %v1494 = vunpack.c.h.b16 %v1436
      %v1495 = vunpack.c.l.b16 %v1437
      %v1496 = vunpack.c.h.b16 %v1437
      %v1497 = vunpack.c.l.b16 %v1438
      %v1498 = vunpack.c.h.b16 %v1438
      %v1499 = vunpack.c.l.b16 %v1439
      %v1500 = vunpack.c.h.b16 %v1439
      %v1501 = vunpack.c.l.b16 %v1440
      %v1502 = vunpack.c.h.b16 %v1440
      %v1503 = vunpack.c.l.b16 %v1441
      %v1504 = vunpack.c.h.b16 %v1441
      %v1505 = vunpack.c.l.b16 %v1442
      %v1506 = vunpack.c.h.b16 %v1442
      %v1507 = vunpack.c.l.b16 %v1443
      %v1508 = vunpack.c.h.b16 %v1443
      %v1509 = vunpack.c.l.b16 %v1444
      %v1510 = vunpack.c.h.b16 %v1444
      %v1511 = vunpack.c.l.b16 %v1445
      %v1512 = vunpack.c.h.b16 %v1445
      %v1513 = vunpack.c.l.b16 %v1446
      %v1514 = vunpack.c.h.b16 %v1446
      %v1515 = vunpack.c.l.b16 %v1447
      %v1516 = vunpack.c.h.b16 %v1447
      %v1517 = vunpack.c.l.b16 %v1448
      %v1518 = vunpack.c.h.b16 %v1448
      %v1519 = vunpack.c.l.b16 %v1449
      %v1520 = vunpack.c.h.b16 %v1449
      %v1521 = vunpack.c.l.b16 %v1450
      %v1522 = vunpack.c.h.b16 %v1450
      %v1523 = vpack.c.b16 %v1493, %v1491
      %v1524 = vpack.c.b16 %v1494, %v1492
      %v1525 = vpack.c.b16 %v1497, %v1495
      %v1526 = vpack.c.b16 %v1498, %v1496
      %v1527 = vpack.c.b16 %v1501, %v1499
      %v1528 = vpack.c.b16 %v1502, %v1500
      %v1529 = vpack.c.b16 %v1505, %v1503
      %v1530 = vpack.c.b16 %v1506, %v1504
      %v1531 = vpack.c.b16 %v1509, %v1507
      %v1532 = vpack.c.b16 %v1510, %v1508
      %v1533 = vpack.c.b16 %v1513, %v1511
      %v1534 = vpack.c.b16 %v1514, %v1512
      %v1535 = vpack.c.b16 %v1517, %v1515
      %v1536 = vpack.c.b16 %v1518, %v1516
      %v1537 = vpack.c.b16 %v1521, %v1519
      %v1538 = vpack.c.b16 %v1522, %v1520
      %1555 = vmatprep.subr.bf16.mxu0 %v1524
      %1556 = vmatpush1.bf16.msra.mxu0 %v1523
      %1557 = vmatprep.subr.bf16.mxu0 %v1526
      %1558 = vmatpush1.bf16.msra.mxu0 %v1525
      %1559 = vmatprep.subr.bf16.mxu0 %v1528
      %1560 = vmatpush1.bf16.msra.mxu0 %v1527
      %1561 = vmatprep.subr.bf16.mxu0 %v1530
      %1562 = vmatpush1.bf16.msra.mxu0 %v1529
      %1563 = vmatprep.subr.bf16.mxu0 %v1532
      %1564 = vmatpush1.bf16.msra.mxu0 %v1531
      %1565 = vmatprep.subr.bf16.mxu0 %v1534
      %1566 = vmatpush1.bf16.msra.mxu0 %v1533
      %1567 = vmatprep.subr.bf16.mxu0 %v1536
      %1568 = vmatpush1.bf16.msra.mxu0 %v1535
      %1569 = vmatprep.subr.bf16.mxu0 %v1538
      %1570 = vmatpush1.bf16.msra.mxu0 %v1537
      %1571 = vmatprep.subr.bf16.mxu0 0
      %1572 = vmatpush1.bf16.msra.mxu0 0
      %1573 = vmatprep.subr.bf16.mxu0 0
      %1574 = vmatpush1.bf16.msra.mxu0 0
      %1575 = vmatprep.subr.bf16.mxu0 0
      %1576 = vmatpush1.bf16.msra.mxu0 0
      %1577 = vmatprep.subr.bf16.mxu0 0
      %1578 = vmatpush1.bf16.msra.mxu0 0
      %1579 = vmatprep.subr.bf16.mxu0 0
      %1580 = vmatpush1.bf16.msra.mxu0 0
      %1581 = vmatprep.subr.bf16.mxu0 0
      %1582 = vmatpush1.bf16.msra.mxu0 0
      %1583 = vmatprep.subr.bf16.mxu0 0
      %1584 = vmatpush1.bf16.msra.mxu0 0
      %1585 = vmatprep.subr.bf16.mxu0 0
      %1586 = vmatpush1.bf16.msra.mxu0 0
      %1587 = vmatprep.mubr.bf16.mxu0 0
      %1588 = vmatmul.mubr.bf16.gmra.mrb[0].mxu0 %v1467
      %v1589 = vpop.f32.mrb[0].mxu0
      %v1590 = vadd.f32 0.0, %v1589
      %v1591 = vpop.f32.mrb[0].mxu0
      %v1592 = vadd.f32 0.0, %v1591
      %v1593 = vpop.f32.mrb[0].mxu0
      %v1594 = vadd.f32 0.0, %v1593
      %v1595 = vpop.f32.mrb[0].mxu0
      %v1596 = vadd.f32 0.0, %v1595
      %1597 = vmatprep.mubr.bf16.mxu0 0
      %1598 = vmatmul.mubr.bf16.gmra.mrb[0].mxu0 %v1468
      %v1599 = vpop.f32.mrb[0].mxu0
      %v1600 = vadd.f32 0.0, %v1599
      %v1601 = vpop.f32.mrb[0].mxu0
      %v1602 = vadd.f32 0.0, %v1601
      %v1603 = vpop.f32.mrb[0].mxu0
      %v1604 = vadd.f32 0.0, %v1603
      %v1605 = vpop.f32.mrb[0].mxu0
      %v1606 = vadd.f32 0.0, %v1605
      %1607 = vmatprep.mubr.bf16.mxu0 0
      %1608 = vmatmul.mubr.bf16.gmra.mrb[0].mxu0 %v1469
      %v1609 = vpop.f32.mrb[0].mxu0
      %v1610 = vadd.f32 0.0, %v1609
      %v1611 = vpop.f32.mrb[0].mxu0
      %v1612 = vadd.f32 0.0, %v1611
      %v1613 = vpop.f32.mrb[0].mxu0
      %v1614 = vadd.f32 0.0, %v1613
      %v1615 = vpop.f32.mrb[0].mxu0
      %v1616 = vadd.f32 0.0, %v1615
      %1617 = vmatprep.mubr.bf16.mxu0 0
      %1618 = vmatmul.mubr.bf16.gmra.mrb[0].mxu0 %v1470
      %v1619 = vpop.f32.mrb[0].mxu0
      %v1620 = vadd.f32 0.0, %v1619
      %v1621 = vpop.f32.mrb[0].mxu0
      %v1622 = vadd.f32 0.0, %v1621
      %v1623 = vpop.f32.mrb[0].mxu0
      %v1624 = vadd.f32 0.0, %v1623
      %v1625 = vpop.f32.mrb[0].mxu0
      %v1626 = vadd.f32 0.0, %v1625
      %1627 = vdwg.mxu0
      %v1628 = vadd.f32 %v1410, %v1590
      %v1629 = vadd.f32 %v1411, %v1592
      %v1630 = vadd.f32 %v1412, %v1594
      %v1631 = vadd.f32 %v1413, %v1596
      %v1632 = vadd.f32 %v1414, %v1600
      %v1633 = vadd.f32 %v1415, %v1602
      %v1634 = vadd.f32 %v1416, %v1604
      %v1635 = vadd.f32 %v1417, %v1606
      %v1636 = vadd.f32 %v1418, %v1610
      %v1637 = vadd.f32 %v1419, %v1612
      %v1638 = vadd.f32 %v1420, %v1614
      %v1639 = vadd.f32 %v1421, %v1616
      %v1640 = vadd.f32 %v1422, %v1620
      %v1641 = vadd.f32 %v1423, %v1622
      %v1642 = vadd.f32 %v1424, %v1624
      %v1643 = vadd.f32 %v1425, %v1626
      %v1644 = vld [vmem:[%s2] sm:$0x3]
      %v1646 = vlaneseq
      %v1647 = vshrl.u32 %v1646, 7
      %v1648 = vsub.s32 0, %v1647
      %v1649 = vrot.slane %v1644, %v1648
      %v1650 = vlaneseq
      %v1651 = vshrl.u32 %v1650, 7
      %v1652 = vsub.s32 1, %v1651
      %v1653 = vrot.slane %v1644, %v1652
      %v1656 = vadd.f32 %v1628, %v1649
      %v1657 = vadd.f32 %v1629, %v1653
      %v1658 = vadd.f32 %v1630, %v1649
      %v1659 = vadd.f32 %v1631, %v1653
      %v1660 = vadd.f32 %v1632, %v1649
      %v1661 = vadd.f32 %v1633, %v1653
      %v1662 = vadd.f32 %v1634, %v1649
      %v1663 = vadd.f32 %v1635, %v1653
      %v1664 = vadd.f32 %v1636, %v1649
      %v1665 = vadd.f32 %v1637, %v1653
      %v1666 = vadd.f32 %v1638, %v1649
      %v1667 = vadd.f32 %v1639, %v1653
      %v1668 = vadd.f32 %v1640, %v1649
      %v1669 = vadd.f32 %v1641, %v1653
      %v1670 = vadd.f32 %v1642, %v1649
      %v1671 = vadd.f32 %v1643, %v1653
      %v1672 = vmax.f32 %v1656, 0.0
      %v1673 = vmax.f32 %v1657, 0.0
      %v1674 = vmax.f32 %v1658, 0.0
      %v1675 = vmax.f32 %v1659, 0.0
      %v1676 = vmax.f32 %v1660, 0.0
      %v1677 = vmax.f32 %v1661, 0.0
      %v1678 = vmax.f32 %v1662, 0.0
      %v1679 = vmax.f32 %v1663, 0.0
      %v1680 = vmax.f32 %v1664, 0.0
      %v1681 = vmax.f32 %v1665, 0.0
      %v1682 = vmax.f32 %v1666, 0.0
      %v1683 = vmax.f32 %v1667, 0.0
      %v1684 = vmax.f32 %v1668, 0.0
      %v1685 = vmax.f32 %v1669, 0.0
      %v1686 = vmax.f32 %v1670, 0.0
      %v1687 = vmax.f32 %v1671, 0.0
      %1688 = vst [vmem:[%s170] sm:$0xff] %v1672
      %1689 = vst [vmem:[%s170 + $0x8] sm:$0xff] %v1673
      %1690 = vst [vmem:[%s170 + $0x10] sm:$0xff] %v1674
      %1691 = vst [vmem:[%s170 + $0x18] sm:$0xff] %v1675
      %1692 = vst [vmem:[%s170 + $0x20] sm:$0xff] %v1676
      %1693 = vst [vmem:[%s170 + $0x28] sm:$0xff] %v1677
      %1694 = vst [vmem:[%s170 + $0x30] sm:$0xff] %v1678
      %1695 = vst [vmem:[%s170 + $0x38] sm:$0xff] %v1679
      %1696 = vst [vmem:[%s170 + $0x40] sm:$0xff] %v1680
      %1697 = vst [vmem:[%s170 + $0x48] sm:$0xff] %v1681
      %1698 = vst [vmem:[%s170 + $0x50] sm:$0xff] %v1682
      %1699 = vst [vmem:[%s170 + $0x58] sm:$0xff] %v1683
      %1700 = vst [vmem:[%s170 + $0x60] sm:$0xff] %v1684
      %1701 = vst [vmem:[%s170 + $0x68] sm:$0xff] %v1685
      %1702 = vst [vmem:[%s170 + $0x70] sm:$0xff] %v1686
      %1703 = vst [vmem:[%s170 + $0x78] sm:$0xff] %v1687
      %p1704 = scmp.lt.s32.totalorder %s14, 1
      %s1705 = scalar_select %p1704, %s14, 1
      %s1706 = smul.addr %s1705, 16
      %s1707 = smul.addr %s1706, 8
      %s1708 = scalar_lea.vmem %s3, %s1707
      // Predicated region
      $region33: #{inception_c_forward.14} parent=31 // pred_check
        %p1709 = pneg %p100
      $region34: #{inception_c_forward.14} parent=31 // pred_check_branch
        %1711 = sbr.rel (%p1709) target = $region36
      $region35: #{inception_c_forward.14} parent=31 // pred_region
        _
      $region36: #{inception_c_forward.14} parent=31 // pred_fallthru
        _
    $region32: #{inception_c_forward.14} parent=5 // pred_fallthru
      _
    %p1712 = scmp.le.s32.totalorder 2, %s9
    // Predicated region
    $region37: #{inception_c_forward.14} parent=5 // pred_check
      %p1713 = pneg %p1712
    $region38: #{inception_c_forward.14} parent=5 // pred_check_branch
      %1715 = sbr.rel (%p1713) target = $region40
    $region39: #{inception_c_forward.14} parent=5 // pred_region
      %s1716 = ssub.s32 %s9, 2
      // Predicated region
      $region41: #{inception_c_forward.14} parent=39 // pred_check
        %p1717 = pneg %p106
      $region42: #{inception_c_forward.14} parent=39 // pred_check_branch
        %1719 = sbr.rel (%p1717) target = $region44
      $region43: #{inception_c_forward.14} parent=39 // pred_region
        %p1720 = scmp.lt.s32.totalorder %s15, 1
        %s1721 = scalar_select %p1720, %s15, 1
        %s1722 = smul.addr %s1721, 16
        %s1723 = smul.addr %s1722, 8
        %s1724 = scalar_lea.vmem %s3, %s1723
      $region44: #{inception_c_forward.14} parent=39 // pred_fallthru
        _
    $region40: #{inception_c_forward.14} parent=5 // pred_fallthru
      _
  $region6: #{inception_c_forward.14} parent=0 // loop_footer
    %s13 = sadd.s32 1, %s9
  $region7: #{inception_c_forward.14} parent=0 // loop_footer_branch
    %8 = sbr.rel target = $region3
  $region8: #{inception_c_forward.14} parent=0 // loop_exit
    _

// kernel: inception_c_forward.9
$region0: #{inception_c_forward.9}
  #allocation0 [shape = 'u32[]', space=smem, size = 0x4, offset = 0x4, fixed_abs, tag = 'smem constant byte address 0x4 - core index']
  #allocation1 [shape = 'u32[144,128]{1,0:T(1,128)}', space=vmem, size = 0x12000, scoped, tag = 'internal scratch']
  %s0 = inlined_call_operand.vmem [shape: bf16[2,112,128], index: 0, kind: input, shape index: {}]
  %s1 = inlined_call_operand.vmem [shape: bf16[7,128,128], index: 1, kind: input, shape index: {}]
  %s2 = inlined_call_operand.vmem [shape: f32[1,128], index: 2, kind: input, shape index: {}]
  %s3 = inlined_call_operand.vmem [shape: bf16[2,64,128], index: 3, kind: output, shape index: {}]
  %s4 = sld [smem:[#allocation0]]
  $region45: #{inception_c_forward.9} parent=0
    _
  %s6 = ssub.s32 1, %s4
  %s7 = scalar_select 0, %s6, %s4
  loop: start=0, step=1, limit=4
  $region2: #{inception_c_forward.9} parent=0 // loop_pre_header
    _
  $region3: #{inception_c_forward.9} parent=0 // loop_header
    %s9 = sphi 0, %s13
    %p10 = scmp.ge.s32.totalorder %s9, 4
    %s19 = sphi 0, %s21
    %s22 = sphi 0, %s19
    %s23 = sphi 0, %s22
    %s39 = sphi 0, %s23
    %s43 = sphi 0, %s43
    %s45 = sphi 0, %s43
    %s46 = sphi 0, %s45
    %s60 = sphi 0, %s46
    %s64 = sphi 0, %s64
    %s66 = sphi 0, %s64
    %s67 = sphi 0, %s66
    %s81 = sphi 0, %s67
    %s87 = sphi 0, %s89
    %s90 = sphi 0, %s87
    %s91 = sphi 0, %s90
    %s107 = sphi 0, %s91
  $region4: #{inception_c_forward.9} parent=0 // loop_header_branch
    %12 = sbr.rel (%p10) target = $region8
  $region5: #{inception_c_forward.9} parent=0 // loop_body
    %s14 = ssub.s32 %s9, 1
    %s15 = ssub.s32 %s9, 2
    %s16 = sadd.s32 %s9, 1
    %s17 = ssub.s32 %s9, %s16
    %p18 = scmp.eq.s32.totalorder %s17, 0
    %s20 = sadd.s32 %s19, 1
    %s21 = scalar_select %p18, %s19, %s20
    %p24 = pneg %p18
    %p25 = scmp.eq.s32.totalorder %s9, 1
    %p26 = por %p24, %p25
    %p27 = scmp.ne.s32.totalorder %s19, %s22
    %p28 = scmp.eq.s32.totalorder %s9, 0
    %p29 = por %p27, %p28
    %p30 = scmp.ne.s32.totalorder %s19, %s22
    %p31 = scmp.eq.s32.totalorder %s14, 1
    %p32 = por %p30, %p31
    %p33 = scmp.ne.s32.totalorder %s22, %s23
    %p34 = scmp.eq.s32.totalorder %s14, 0
    %p35 = por %p33, %p34
    %p36 = scmp.ne.s32.totalorder %s22, %s23
    %p37 = scmp.eq.s32.totalorder %s15, 1
    %p38 = por %p36, %p37
    %p40 = scmp.ne.s32.totalorder %s23, %s39
    %p41 = scmp.eq.s32.totalorder %s15, 0
    %p42 = por %p40, %p41
    %s44 = sadd.s32 %s43, 1
    %p47 = scmp.eq.s32.totalorder %s9, 1
    %p48 = scmp.ne.s32.totalorder %s43, %s45
    %p49 = scmp.eq.s32.totalorder %s9, 0
    %p50 = por %p48, %p49
    %p51 = scmp.ne.s32.totalorder %s43, %s45
    %p52 = scmp.eq.s32.totalorder %s14, 1
    %p53 = por %p51, %p52
    %p54 = scmp.ne.s32.totalorder %s45, %s46
    %p55 = scmp.eq.s32.totalorder %s14, 0
    %p56 = por %p54, %p55
    %p57 = scmp.ne.s32.totalorder %s45, %s46
    %p58 = scmp.eq.s32.totalorder %s15, 1
    %p59 = por %p57, %p58
    %p61 = scmp.ne.s32.totalorder %s46, %s60
    %p62 = scmp.eq.s32.totalorder %s15, 0
    %p63 = por %p61, %p62
    %s65 = sadd.s32 %s64, 1
    %p68 = scmp.eq.s32.totalorder %s9, 1
    %p69 = scmp.ne.s32.totalorder %s64, %s66
    %p70 = scmp.eq.s32.totalorder %s9, 0
    %p71 = por %p69, %p70
    %p72 = scmp.ne.s32.totalorder %s64, %s66
    %p73 = scmp.eq.s32.totalorder %s14, 1
    %p74 = por %p72, %p73
    %p75 = scmp.ne.s32.totalorder %s66, %s67
    %p76 = scmp.eq.s32.totalorder %s14, 0
    %p77 = por %p75, %p76
    %p78 = scmp.ne.s32.totalorder %s66, %s67
    %p79 = scmp.eq.s32.totalorder %s15, 1
    %p80 = por %p78, %p79
    %p82 = scmp.ne.s32.totalorder %s67, %s81
    %p83 = scmp.eq.s32.totalorder %s15, 0
    %p84 = por %p82, %p83
    %s85 = ssub.s32 %s9, %s16
    %p86 = scmp.eq.s32.totalorder %s85, 0
    %s88 = sadd.s32 %s87, 1
    %s89 = scalar_select %p86, %s87, %s88
    %p92 = pneg %p86
    %p93 = scmp.eq.s32.totalorder %s9, 1
    %p94 = por %p92, %p93
    %p95 = scmp.ne.s32.totalorder %s87, %s90
    %p96 = scmp.eq.s32.totalorder %s9, 0
    %p97 = por %p95, %p96
    %p98 = scmp.ne.s32.totalorder %s87, %s90
    %p99 = scmp.eq.s32.totalorder %s14, 1
    %p100 = por %p98, %p99
    %p101 = scmp.ne.s32.totalorder %s90, %s91
    %p102 = scmp.eq.s32.totalorder %s14, 0
    %p103 = por %p101, %p102
    %p104 = scmp.ne.s32.totalorder %s90, %s91
    %p105 = scmp.eq.s32.totalorder %s15, 1
    %p106 = por %p104, %p105
    %p108 = scmp.ne.s32.totalorder %s91, %s107
    %p109 = scmp.eq.s32.totalorder %s15, 0
    %p110 = por %p108, %p109
    %p111 = scmp.le.s32.totalorder 1, %s9
    %p112 = scmp.lt.s32.totalorder %s9, 3
    %p113 = pnand %p111, %p112
    %p114 = pneg %p113
    // Predicated region
    $region9: #{inception_c_forward.9} parent=5 // pred_check
      _
    $region10: #{inception_c_forward.9} parent=5 // pred_check_branch
      %116 = sbr.rel (%p113) target = $region12
    $region11: #{inception_c_forward.9} parent=5 // pred_region
      %s117 = ssub.s32 %s9, 1
      // Predicated region
      $region13: #{inception_c_forward.9} parent=11 // pred_check
        %p118 = pneg %p56
      $region14: #{inception_c_forward.9} parent=11 // pred_check_branch
        %120 = sbr.rel (%p118) target = $region16
      $region15: #{inception_c_forward.9} parent=11 // pred_region
        _
      $region16: #{inception_c_forward.9} parent=11 // pred_fallthru
        _
      // Predicated region
      $region17: #{inception_c_forward.9} parent=11 // pred_check
        %p121 = pneg %p77
      $region18: #{inception_c_forward.9} parent=11 // pred_check_branch
        %123 = sbr.rel (%p121) target = $region20
      $region19: #{inception_c_forward.9} parent=11 // pred_region
        _
      $region20: #{inception_c_forward.9} parent=11 // pred_fallthru
        _
    $region12: #{inception_c_forward.9} parent=5 // pred_fallthru
      _
    %p124 = scmp.lt.s32.totalorder %s9, 2
    // Predicated region
    $region21: #{inception_c_forward.9} parent=5 // pred_check
      %p125 = pneg %p124
    $region22: #{inception_c_forward.9} parent=5 // pred_check_branch
      %127 = sbr.rel (%p125) target = $region24
    $region23: #{inception_c_forward.9} parent=5 // pred_region
      // Predicated region
      $region25: #{inception_c_forward.9} parent=23 // pred_check
        %p128 = pneg %p29
      $region26: #{inception_c_forward.9} parent=23 // pred_check_branch
        %130 = sbr.rel (%p128) target = $region28
      $region27: #{inception_c_forward.9} parent=23 // pred_region
        %p131 = scmp.lt.s32.totalorder %s9, 1
        %s132 = scalar_select %p131, %s9, 1
        %s133 = smul.addr %s132, 14
        %s134 = smul.addr %s133, 4
        %s135 = scalar_lea.vmem %s0, %s134
      $region28: #{inception_c_forward.9} parent=23 // pred_fallthru
        _
    $region24: #{inception_c_forward.9} parent=5 // pred_fallthru
      _
    %p136 = scmp.le.s32.totalorder 1, %s9
    %p137 = scmp.lt.s32.totalorder %s9, 3
    %p138 = pnand %p136, %p137
    %p139 = pneg %p138
    // Predicated region
    $region29: #{inception_c_forward.9} parent=5 // pred_check
      _
    $region30: #{inception_c_forward.9} parent=5 // pred_check_branch
      %141 = sbr.rel (%p138) target = $region32
    $region31: #{inception_c_forward.9} parent=5 // pred_region
      %s142 = ssub.s32 %s9, 1
      %p143 = scmp.lt.s32.totalorder %s14, 1
      %s144 = scalar_select %p143, %s14, 1
      %s145 = smul.addr %s144, 14
      %s146 = smul.addr %s145, 4
      %s147 = scalar_lea.vmem %s0, %s146
      %p148 = pneg %p35
      %p149 = pneg %p32
      %p150 = pneg %p56
      %p151 = pneg %p53
      %p152 = pneg %p77
      %p153 = pneg %p74
      %p154 = pneg %p103
      %p155 = pneg %p100
      %p156 = scmp.lt.s32.totalorder %s14, 1
      %s157 = scalar_select %p156, %s14, 1
      %s158 = smul.addr %s157, 8
      %s159 = smul.addr %s158, 4
      %s160 = scalar_lea.vmem %s3, %s159
      %p161 = scmp.lt.s32.totalorder %s14, 1
      %s162 = scalar_select %p161, %s14, 1
      %s163 = smul.addr %s162, 14
      %s164 = smul.addr %s163, 4
      %s165 = scalar_lea.vmem %s0, %s164
      %p166 = scmp.lt.s32.totalorder %s14, 1
      %s167 = scalar_select %p166, %s14, 1
      %s168 = smul.addr %s167, 8
      %s169 = smul.addr %s168, 4
      %s170 = scalar_lea.vmem %s3, %s169
      %v172 = vld [vmem:[%s165] sm:$0xf]
      %v173 = vld [vmem:[%s165 + $0x4] sm:$0xf]
      %v174 = vld [vmem:[%s165 + $0x8] sm:$0xf]
      %v175 = vld [vmem:[%s165 + $0xc] sm:$0xf]
      %v176 = vld [vmem:[%s165 + $0x10] sm:$0xf]
      %v177 = vld [vmem:[%s165 + $0x14] sm:$0xf]
      %v178 = vld [vmem:[%s165 + $0x18] sm:$0xf]
      %v179 = vld [vmem:[%s165 + $0x1c] sm:$0xf]
      %v180 = vld [vmem:[%s1] sm:$0xf]
      %v181 = vld [vmem:[%s1 + $0x4] sm:$0xf]
      %v182 = vld [vmem:[%s1 + $0x8] sm:$0xf]
      %v183 = vld [vmem:[%s1 + $0xc] sm:$0xf]
      %v184 = vld [vmem:[%s1 + $0x10] sm:$0xf]
      %v185 = vld [vmem:[%s1 + $0x14] sm:$0xf]
      %v186 = vld [vmem:[%s1 + $0x18] sm:$0xf]
      %v187 = vld [vmem:[%s1 + $0x1c] sm:$0xf]
      %v188 = vld [vmem:[%s1 + $0x20] sm:$0xf]
      %v189 = vld [vmem:[%s1 + $0x24] sm:$0xf]
      %v190 = vld [vmem:[%s1 + $0x28] sm:$0xf]
      %v191 = vld [vmem:[%s1 + $0x2c] sm:$0xf]
      %v192 = vld [vmem:[%s1 + $0x30] sm:$0xf]
      %v193 = vld [vmem:[%s1 + $0x34] sm:$0xf]
      %v194 = vld [vmem:[%s1 + $0x38] sm:$0xf]
      %v195 = vld [vmem:[%s1 + $0x3c] sm:$0xf]
      %v196 = vld [vmem:[%s165 + $0x20] sm:$0xf]
      %s197 = scalar_lea.vmem %s1, 64
      %v198 = vld [vmem:[%s197] sm:$0xf]
      %v199 = vld [vmem:[%s197 + $0x4] sm:$0xf]
      %v200 = vld [vmem:[%s197 + $0x8] sm:$0xf]
      %v201 = vld [vmem:[%s197 + $0xc] sm:$0xf]
      %v202 = vld [vmem:[%s197 + $0x10] sm:$0xf]
      %v203 = vld [vmem:[%s197 + $0x14] sm:$0xf]
      %v204 = vld [vmem:[%s197 + $0x18] sm:$0xf]
      %v205 = vld [vmem:[%s197 + $0x1c] sm:$0xf]
      %v206 = vld [vmem:[%s197 + $0x20] sm:$0xf]
      %v207 = vld [vmem:[%s197 + $0x24] sm:$0xf]
      %v208 = vld [vmem:[%s197 + $0x28] sm:$0xf]
      %v209 = vld [vmem:[%s197 + $0x2c] sm:$0xf]
      %v210 = vld [vmem:[%s197 + $0x30] sm:$0xf]
      %v211 = vld [vmem:[%s197 + $0x34] sm:$0xf]
      %v212 = vld [vmem:[%s197 + $0x38] sm:$0xf]
      %v213 = vld [vmem:[%s197 + $0x3c] sm:$0xf]
      %v222 = vunpack.c.l.b16 %v173
      %v223 = vunpack.c.l.b16 %v174
      %v224 = vunpack.c.l.b16 %v175
      %v225 = vunpack.c.l.b16 %v176
      %v226 = vunpack.c.l.b16 %v177
      %v227 = vunpack.c.l.b16 %v178
      %v228 = vunpack.c.l.b16 %v179
      %v229 = vunpack.c.l.b16 %v196
      %v230 = vpack.c.b16 %v223, %v222
      %v231 = vpack.c.b16 %v225, %v224
      %v232 = vpack.c.b16 %v227, %v226
      %v233 = vpack.c.b16 %v229, %v228
      %v254 = vunpack.c.l.b16 %v198
      %v255 = vunpack.c.l.b16 %v199
      %v256 = vunpack.c.l.b16 %v200
      %v257 = vunpack.c.l.b16 %v201
      %v258 = vunpack.c.l.b16 %v202
      %v259 = vunpack.c.l.b16 %v203
      %v260 = vunpack.c.l.b16 %v204
      %v261 = vunpack.c.l.b16 %v205
      %v262 = vunpack.c.l.b16 %v206
      %v263 = vunpack.c.l.b16 %v207
      %v264 = vunpack.c.l.b16 %v208
      %v265 = vunpack.c.l.b16 %v209
      %v266 = vunpack.c.l.b16 %v210
      %v267 = vunpack.c.l.b16 %v211
      %v268 = vunpack.c.l.b16 %v212
      %v269 = vunpack.c.l.b16 %v213
      %v270 = vpack.c.b16 %v255, %v254
      %v271 = vpack.c.b16 %v257, %v256
      %v272 = vpack.c.b16 %v259, %v258
      %v273 = vpack.c.b16 %v261, %v260
      %v274 = vpack.c.b16 %v263, %v262
      %v275 = vpack.c.b16 %v265, %v264
      %v276 = vpack.c.b16 %v267, %v266
      %v277 = vpack.c.b16 %v269, %v268
      %286 = vmatprep.subr.bf16.mxu0 0
      %287 = vmatpush1.bf16.msra.mxu0 %v270
      %288 = vmatprep.subr.bf16.mxu0 0
      %289 = vmatpush1.bf16.msra.mxu0 %v271
      %290 = vmatprep.subr.bf16.mxu0 0
      %291 = vmatpush1.bf16.msra.mxu0 %v272
      %292 = vmatprep.subr.bf16.mxu0 0
      %293 = vmatpush1.bf16.msra.mxu0 %v273
      %294 = vmatprep.subr.bf16.mxu0 0
      %295 = vmatpush1.bf16.msra.mxu0 %v274
      %296 = vmatprep.subr.bf16.mxu0 0
      %297 = vmatpush1.bf16.msra.mxu0 %v275
      %298 = vmatprep.subr.bf16.mxu0 0
      %299 = vmatpush1.bf16.msra.mxu0 %v276
      %300 = vmatprep.subr.bf16.mxu0 0
      %301 = vmatpush1.bf16.msra.mxu0 %v277
      %302 = vmatprep.subr.bf16.mxu0 0
      %303 = vmatpush1.bf16.msra.mxu0 0
      %304 = vmatprep.subr.bf16.mxu0 0
      %305 = vmatpush1.bf16.msra.mxu0 0
      %306 = vmatprep.subr.bf16.mxu0 0
      %307 = vmatpush1.bf16.msra.mxu0 0
      %308 = vmatprep.subr.bf16.mxu0 0
      %309 = vmatpush1.bf16.msra.mxu0 0
      %310 = vmatprep.subr.bf16.mxu0 0
      %311 = vmatpush1.bf16.msra.mxu0 0
      %312 = vmatprep.subr.bf16.mxu0 0
      %313 = vmatpush1.bf16.msra.mxu0 0
      %314 = vmatprep.subr.bf16.mxu0 0
      %315 = vmatpush1.bf16.msra.mxu0 0
      %316 = vmatprep.subr.bf16.mxu0 0
      %317 = vmatpush1.bf16.msra.mxu0 0
      %318 = vmatprep.mubr.bf16.mxu0 0
      %319 = vmatmul.mubr.bf16.gmra.mrb[0].mxu0 %v230
      %v320 = vpop.f32.mrb[0].mxu0
      %v321 = vadd.f32 0.0, %v320
      %v322 = vpop.f32.mrb[0].mxu0
      %v323 = vpop.f32.mrb[0].mxu0
      %v324 = vadd.f32 0.0, %v323
      %v325 = vpop.f32.mrb[0].mxu0
      %326 = vmatprep.mubr.bf16.mxu0 0
      %327 = vmatmul.mubr.bf16.gmra.mrb[0].mxu0 %v231
      %v328 = vpop.f32.mrb[0].mxu0
      %v329 = vadd.f32 0.0, %v328
      %v330 = vpop.f32.mrb[0].mxu0
      %v331 = vpop.f32.mrb[0].mxu0
      %v332 = vadd.f32 0.0, %v331
      %v333 = vpop.f32.mrb[0].mxu0
      %334 = vmatprep.mubr.bf16.mxu0 0
      %335 = vmatmul.mubr.bf16.gmra.mrb[0].mxu0 %v232
      %v336 = vpop.f32.mrb[0].mxu0
      %v337 = vadd.f32 0.0, %v336
      %v338 = vpop.f32.mrb[0].mxu0
      %v339 = vpop.f32.mrb[0].mxu0
      %v340 = vadd.f32 0.0, %v339
      %v341 = vpop.f32.mrb[0].mxu0
      %342 = vmatprep.mubr.bf16.mxu0 0
      %343 = vmatmul.mubr.bf16.gmra.mrb[0].mxu0 %v233
      %v344 = vpop.f32.mrb[0].mxu0
      %v345 = vadd.f32 0.0, %v344
      %v346 = vpop.f32.mrb[0].mxu0
      %v347 = vpop.f32.mrb[0].mxu0
      %v348 = vadd.f32 0.0, %v347
      %v349 = vpop.f32.mrb[0].mxu0
      %350 = vdwg.mxu0
      %v352 = vunpack.c.l.b16 %v172
      %v353 = vpack.c.b16 %v222, %v352
      %v354 = vpack.c.b16 %v224, %v223
      %v355 = vpack.c.b16 %v226, %v225
      %v356 = vpack.c.b16 %v228, %v227
      %v377 = vunpack.c.l.b16 %v180
      %v378 = vunpack.c.l.b16 %v181
      %v379 = vunpack.c.l.b16 %v182
      %v380 = vunpack.c.l.b16 %v183
      %v381 = vunpack.c.l.b16 %v184
      %v382 = vunpack.c.l.b16 %v185
      %v383 = vunpack.c.l.b16 %v186
      %v384 = vunpack.c.l.b16 %v187
      %v385 = vunpack.c.l.b16 %v188
      %v386 = vunpack.c.l.b16 %v189
      %v387 = vunpack.c.l.b16 %v190
      %v388 = vunpack.c.l.b16 %v191
      %v389 = vunpack.c.l.b16 %v192
      %v390 = vunpack.c.l.b16 %v193
      %v391 = vunpack.c.l.b16 %v194
      %v392 = vunpack.c.l.b16 %v195
      %v393 = vpack.c.b16 %v378, %v377
      %v394 = vpack.c.b16 %v380, %v379
      %v395 = vpack.c.b16 %v382, %v381
      %v396 = vpack.c.b16 %v384, %v383
      %v397 = vpack.c.b16 %v386, %v385
      %v398 = vpack.c.b16 %v388, %v387
      %v399 = vpack.c.b16 %v390, %v389
      %v400 = vpack.c.b16 %v392, %v391
      %409 = vmatprep.subr.bf16.mxu0 0
      %410 = vmatpush1.bf16.msra.mxu0 %v393
      %411 = vmatprep.subr.bf16.mxu0 0
      %412 = vmatpush1.bf16.msra.mxu0 %v394
      %413 = vmatprep.subr.bf16.mxu0 0
      %414 = vmatpush1.bf16.msra.mxu0 %v395
      %415 = vmatprep.subr.bf16.mxu0 0
      %416 = vmatpush1.bf16.msra.mxu0 %v396
      %417 = vmatprep.subr.bf16.mxu0 0
      %418 = vmatpush1.bf16.msra.mxu0 %v397
      %419 = vmatprep.subr.bf16.mxu0 0
      %420 = vmatpush1.bf16.msra.mxu0 %v398
      %421 = vmatprep.subr.bf16.mxu0 0
      %422 = vmatpush1.bf16.msra.mxu0 %v399
      %423 = vmatprep.subr.bf16.mxu0 0
      %424 = vmatpush1.bf16.msra.mxu0 %v400
      %425 = vmatprep.subr.bf16.mxu0 0
      %426 = vmatpush1.bf16.msra.mxu0 0
      %427 = vmatprep.subr.bf16.mxu0 0
      %428 = vmatpush1.bf16.msra.mxu0 0
      %429 = vmatprep.subr.bf16.mxu0 0
      %430 = vmatpush1.bf16.msra.mxu0 0
      %431 = vmatprep.subr.bf16.mxu0 0
      %432 = vmatpush1.bf16.msra.mxu0 0
      %433 = vmatprep.subr.bf16.mxu0 0
      %434 = vmatpush1.bf16.msra.mxu0 0
      %435 = vmatprep.subr.bf16.mxu0 0
      %436 = vmatpush1.bf16.msra.mxu0 0
      %437 = vmatprep.subr.bf16.mxu0 0
      %438 = vmatpush1.bf16.msra.mxu0 0
      %439 = vmatprep.subr.bf16.mxu0 0
      %440 = vmatpush1.bf16.msra.mxu0 0
      %441 = vmatprep.mubr.bf16.mxu0 0
      %442 = vmatmul.mubr.bf16.gmra.mrb[0].mxu0 %v353
      %v443 = vpop.f32.mrb[0].mxu0
      %v444 = vadd.f32 %v321, %v443
      %v445 = vpop.f32.mrb[0].mxu0
      %v446 = vpop.f32.mrb[0].mxu0
      %v447 = vadd.f32 %v324, %v446
      %v448 = vpop.f32.mrb[0].mxu0
      %449 = vmatprep.mubr.bf16.mxu0 0
      %450 = vmatmul.mubr.bf16.gmra.mrb[0].mxu0 %v354
      %v451 = vpop.f32.mrb[0].mxu0
      %v452 = vadd.f32 %v329, %v451
      %v453 = vpop.f32.mrb[0].mxu0
      %v454 = vpop.f32.mrb[0].mxu0
      %v455 = vadd.f32 %v332, %v454
      %v456 = vpop.f32.mrb[0].mxu0
      %457 = vmatprep.mubr.bf16.mxu0 0
      %458 = vmatmul.mubr.bf16.gmra.mrb[0].mxu0 %v355
      %v459 = vpop.f32.mrb[0].mxu0
      %v460 = vadd.f32 %v337, %v459
      %v461 = vpop.f32.mrb[0].mxu0
      %v462 = vpop.f32.mrb[0].mxu0
      %v463 = vadd.f32 %v340, %v462
      %v464 = vpop.f32.mrb[0].mxu0
      %465 = vmatprep.mubr.bf16.mxu0 0
      %466 = vmatmul.mubr.bf16.gmra.mrb[0].mxu0 %v356
      %v467 = vpop.f32.mrb[0].mxu0
      %v468 = vadd.f32 %v345, %v467
      %v469 = vpop.f32.mrb[0].mxu0
      %v470 = vpop.f32.mrb[0].mxu0
      %v471 = vadd.f32 %v348, %v470
      %v472 = vpop.f32.mrb[0].mxu0
      %473 = vdwg.mxu0
      %v474 = vld [vmem:[%s165 + $0x8] sm:$0xf]
      %v475 = vld [vmem:[%s165 + $0xc] sm:$0xf]
      %v476 = vld [vmem:[%s165 + $0x10] sm:$0xf]
      %v477 = vld [vmem:[%s165 + $0x14] sm:$0xf]
      %v478 = vld [vmem:[%s165 + $0x18] sm:$0xf]
      %v479 = vld [vmem:[%s165 + $0x1c] sm:$0xf]
      %v480 = vld [vmem:[%s165 + $0x20] sm:$0xf]
      %v481 = vld [vmem:[%s165 + $0x24] sm:$0xf]
      %s482 = scalar_lea.vmem %s1, 128
      %v483 = vld [vmem:[%s482] sm:$0xf]
      %v484 = vld [vmem:[%s482 + $0x4] sm:$0xf]
      %v485 = vld [vmem:[%s482 + $0x8] sm:$0xf]
      %v486 = vld [vmem:[%s482 + $0xc] sm:$0xf]
      %v487 = vld [vmem:[%s482 + $0x10] sm:$0xf]
      %v488 = vld [vmem:[%s482 + $0x14] sm:$0xf]
      %v489 = vld [vmem:[%s482 + $0x18] sm:$0xf]
      %v490 = vld [vmem:[%s482 + $0x1c] sm:$0xf]
      %v491 = vld [vmem:[%s482 + $0x20] sm:$0xf]
      %v492 = vld [vmem:[%s482 + $0x24] sm:$0xf]
      %v493 = vld [vmem:[%s482 + $0x28] sm:$0xf]
      %v494 = vld [vmem:[%s482 + $0x2c] sm:$0xf]
      %v495 = vld [vmem:[%s482 + $0x30] sm:$0xf]
      %v496 = vld [vmem:[%s482 + $0x34] sm:$0xf]
      %v497 = vld [vmem:[%s482 + $0x38] sm:$0xf]
      %v498 = vld [vmem:[%s482 + $0x3c] sm:$0xf]
      %v507 = vunpack.c.l.b16 %v474
      %v508 = vunpack.c.l.b16 %v475
      %v509 = vunpack.c.l.b16 %v476
      %v510 = vunpack.c.l.b16 %v477
      %v511 = vunpack.c.l.b16 %v478
      %v512 = vunpack.c.l.b16 %v479
      %v513 = vunpack.c.l.b16 %v480
      %v514 = vunpack.c.l.b16 %v481
      %v515 = vpack.c.b16 %v508, %v507
      %v516 = vpack.c.b16 %v510, %v509
      %v517 = vpack.c.b16 %v512, %v511
      %v518 = vpack.c.b16 %v514, %v513
      %v539 = vunpack.c.l.b16 %v483
      %v540 = vunpack.c.l.b16 %v484
      %v541 = vunpack.c.l.b16 %v485
      %v542 = vunpack.c.l.b16 %v486
      %v543 = vunpack.c.l.b16 %v487
      %v544 = vunpack.c.l.b16 %v488
      %v545 = vunpack.c.l.b16 %v489
      %v546 = vunpack.c.l.b16 %v490
      %v547 = vunpack.c.l.b16 %v491
      %v548 = vunpack.c.l.b16 %v492
      %v549 = vunpack.c.l.b16 %v493
      %v550 = vunpack.c.l.b16 %v494
      %v551 = vunpack.c.l.b16 %v495
      %v552 = vunpack.c.l.b16 %v496
      %v553 = vunpack.c.l.b16 %v497
      %v554 = vunpack.c.l.b16 %v498
      %v555 = vpack.c.b16 %v540, %v539
      %v556 = vpack.c.b16 %v542, %v541
      %v557 = vpack.c.b16 %v544, %v543
      %v558 = vpack.c.b16 %v546, %v545
      %v559 = vpack.c.b16 %v548, %v547
      %v560 = vpack.c.b16 %v550, %v549
      %v561 = vpack.c.b16 %v552, %v551
      %v562 = vpack.c.b16 %v554, %v553
      %571 = vmatprep.subr.bf16.mxu0 0
      %572 = vmatpush1.bf16.msra.mxu0 %v555
      %573 = vmatprep.subr.bf16.mxu0 0
      %574 = vmatpush1.bf16.msra.mxu0 %v556
      %575 = vmatprep.subr.bf16.mxu0 0
      %576 = vmatpush1.bf16.msra.mxu0 %v557
      %577 = vmatprep.subr.bf16.mxu0 0
      %578 = vmatpush1.bf16.msra.mxu0 %v558
      %579 = vmatprep.subr.bf16.mxu0 0
      %580 = vmatpush1.bf16.msra.mxu0 %v559
      %581 = vmatprep.subr.bf16.mxu0 0
      %582 = vmatpush1.bf16.msra.mxu0 %v560
      %583 = vmatprep.subr.bf16.mxu0 0
      %584 = vmatpush1.bf16.msra.mxu0 %v561
      %585 = vmatprep.subr.bf16.mxu0 0
      %586 = vmatpush1.bf16.msra.mxu0 %v562
      %587 = vmatprep.subr.bf16.mxu0 0
      %588 = vmatpush1.bf16.msra.mxu0 0
      %589 = vmatprep.subr.bf16.mxu0 0
      %590 = vmatpush1.bf16.msra.mxu0 0
      %591 = vmatprep.subr.bf16.mxu0 0
      %592 = vmatpush1.bf16.msra.mxu0 0
      %593 = vmatprep.subr.bf16.mxu0 0
      %594 = vmatpush1.bf16.msra.mxu0 0
      %595 = vmatprep.subr.bf16.mxu0 0
      %596 = vmatpush1.bf16.msra.mxu0 0
      %597 = vmatprep.subr.bf16.mxu0 0
      %598 = vmatpush1.bf16.msra.mxu0 0
      %599 = vmatprep.subr.bf16.mxu0 0
      %600 = vmatpush1.bf16.msra.mxu0 0
      %601 = vmatprep.subr.bf16.mxu0 0
      %602 = vmatpush1.bf16.msra.mxu0 0
      %603 = vmatprep.mubr.bf16.mxu0 0
      %604 = vmatmul.mubr.bf16.gmra.mrb[0].mxu0 %v515
      %v605 = vpop.f32.mrb[0].mxu0
      %v606 = vadd.f32 0.0, %v605
      %v607 = vpop.f32.mrb[0].mxu0
      %v608 = vpop.f32.mrb[0].mxu0
      %v609 = vadd.f32 0.0, %v608
      %v610 = vpop.f32.mrb[0].mxu0
      %611 = vmatprep.mubr.bf16.mxu0 0
      %612 = vmatmul.mubr.bf16.gmra.mrb[0].mxu0 %v516
      %v613 = vpop.f32.mrb[0].mxu0
      %v614 = vadd.f32 0.0, %v613
      %v615 = vpop.f32.mrb[0].mxu0
      %v616 = vpop.f32.mrb[0].mxu0
      %v617 = vadd.f32 0.0, %v616
      %v618 = vpop.f32.mrb[0].mxu0
      %619 = vmatprep.mubr.bf16.mxu0 0
      %620 = vmatmul.mubr.bf16.gmra.mrb[0].mxu0 %v517
      %v621 = vpop.f32.mrb[0].mxu0
      %v622 = vadd.f32 0.0, %v621
      %v623 = vpop.f32.mrb[0].mxu0
      %v624 = vpop.f32.mrb[0].mxu0
      %v625 = vadd.f32 0.0, %v624
      %v626 = vpop.f32.mrb[0].mxu0
      %627 = vmatprep.mubr.bf16.mxu0 0
      %628 = vmatmul.mubr.bf16.gmra.mrb[0].mxu0 %v518
      %v629 = vpop.f32.mrb[0].mxu0
      %v630 = vadd.f32 0.0, %v629
      %v631 = vpop.f32.mrb[0].mxu0
      %v632 = vpop.f32.mrb[0].mxu0
      %v633 = vadd.f32 0.0, %v632
      %v634 = vpop.f32.mrb[0].mxu0
      %635 = vdwg.mxu0
      %v636 = vadd.f32 %v444, %v606
      %v637 = vadd.f32 %v447, %v609
      %v638 = vadd.f32 %v452, %v614
      %v639 = vadd.f32 %v455, %v617
      %v640 = vadd.f32 %v460, %v622
      %v641 = vadd.f32 %v463, %v625
      %v642 = vadd.f32 %v468, %v630
      %v643 = vadd.f32 %v471, %v633
      %v644 = vld [vmem:[%s165 + $0xc] sm:$0xf]
      %v645 = vld [vmem:[%s165 + $0x10] sm:$0xf]
      %v646 = vld [vmem:[%s165 + $0x14] sm:$0xf]
      %v647 = vld [vmem:[%s165 + $0x18] sm:$0xf]
      %v648 = vld [vmem:[%s165 + $0x1c] sm:$0xf]
      %v649 = vld [vmem:[%s165 + $0x20] sm:$0xf]
      %v650 = vld [vmem:[%s165 + $0x24] sm:$0xf]
      %v651 = vld [vmem:[%s165 + $0x28] sm:$0xf]
      %s652 = scalar_lea.vmem %s1, 192
      %v653 = vld [vmem:[%s652] sm:$0xf]
      %v654 = vld [vmem:[%s652 + $0x4] sm:$0xf]
      %v655 = vld [vmem:[%s652 + $0x8] sm:$0xf]
      %v656 = vld [vmem:[%s652 + $0xc] sm:$0xf]
      %v657 = vld [vmem:[%s652 + $0x10] sm:$0xf]
      %v658 = vld [vmem:[%s652 + $0x14] sm:$0xf]
      %v659 = vld [vmem:[%s652 + $0x18] sm:$0xf]
      %v660 = vld [vmem:[%s652 + $0x1c] sm:$0xf]
      %v661 = vld [vmem:[%s652 + $0x20] sm:$0xf]
      %v662 = vld [vmem:[%s652 + $0x24] sm:$0xf]
      %v663 = vld [vmem:[%s652 + $0x28] sm:$0xf]
      %v664 = vld [vmem:[%s652 + $0x2c] sm:$0xf]
      %v665 = vld [vmem:[%s652 + $0x30] sm:$0xf]
      %v666 = vld [vmem:[%s652 + $0x34] sm:$0xf]
      %v667 = vld [vmem:[%s652 + $0x38] sm:$0xf]
      %v668 = vld [vmem:[%s652 + $0x3c] sm:$0xf]
      %v677 = vunpack.c.l.b16 %v644
      %v678 = vunpack.c.l.b16 %v645
      %v679 = vunpack.c.l.b16 %v646
      %v680 = vunpack.c.l.b16 %v647
      %v681 = vunpack.c.l.b16 %v648
      %v682 = vunpack.c.l.b16 %v649
      %v683 = vunpack.c.l.b16 %v650
      %v684 = vunpack.c.l.b16 %v651
      %v685 = vpack.c.b16 %v678, %v677
      %v686 = vpack.c.b16 %v680, %v679
      %v687 = vpack.c.b16 %v682, %v681
      %v688 = vpack.c.b16 %v684, %v683
      %v709 = vunpack.c.l.b16 %v653
      %v710 = vunpack.c.l.b16 %v654
      %v711 = vunpack.c.l.b16 %v655
      %v712 = vunpack.c.l.b16 %v656
      %v713 = vunpack.c.l.b16 %v657
      %v714 = vunpack.c.l.b16 %v658
      %v715 = vunpack.c.l.b16 %v659
      %v716 = vunpack.c.l.b16 %v660
      %v717 = vunpack.c.l.b16 %v661
      %v718 = vunpack.c.l.b16 %v662
      %v719 = vunpack.c.l.b16 %v663
      %v720 = vunpack.c.l.b16 %v664
      %v721 = vunpack.c.l.b16 %v665
      %v722 = vunpack.c.l.b16 %v666
      %v723 = vunpack.c.l.b16 %v667
      %v724 = vunpack.c.l.b16 %v668
      %v725 = vpack.c.b16 %v710, %v709
      %v726 = vpack.c.b16 %v712, %v711
      %v727 = vpack.c.b16 %v714, %v713
      %v728 = vpack.c.b16 %v716, %v715
      %v729 = vpack.c.b16 %v718, %v717
      %v730 = vpack.c.b16 %v720, %v719
      %v731 = vpack.c.b16 %v722, %v721
      %v732 = vpack.c.b16 %v724, %v723
      %741 = vmatprep.subr.bf16.mxu0 0
      %742 = vmatpush1.bf16.msra.mxu0 %v725
      %743 = vmatprep.subr.bf16.mxu0 0
      %744 = vmatpush1.bf16.msra.mxu0 %v726
      %745 = vmatprep.subr.bf16.mxu0 0
      %746 = vmatpush1.bf16.msra.mxu0 %v727
      %747 = vmatprep.subr.bf16.mxu0 0
      %748 = vmatpush1.bf16.msra.mxu0 %v728
      %749 = vmatprep.subr.bf16.mxu0 0
      %750 = vmatpush1.bf16.msra.mxu0 %v729
      %751 = vmatprep.subr.bf16.mxu0 0
      %752 = vmatpush1.bf16.msra.mxu0 %v730
      %753 = vmatprep.subr.bf16.mxu0 0
      %754 = vmatpush1.bf16.msra.mxu0 %v731
      %755 = vmatprep.subr.bf16.mxu0 0
      %756 = vmatpush1.bf16.msra.mxu0 %v732
      %757 = vmatprep.subr.bf16.mxu0 0
      %758 = vmatpush1.bf16.msra.mxu0 0
      %759 = vmatprep.subr.bf16.mxu0 0
      %760 = vmatpush1.bf16.msra.mxu0 0
      %761 = vmatprep.subr.bf16.mxu0 0
      %762 = vmatpush1.bf16.msra.mxu0 0
      %763 = vmatprep.subr.bf16.mxu0 0
      %764 = vmatpush1.bf16.msra.mxu0 0
      %765 = vmatprep.subr.bf16.mxu0 0
      %766 = vmatpush1.bf16.msra.mxu0 0
      %767 = vmatprep.subr.bf16.mxu0 0
      %768 = vmatpush1.bf16.msra.mxu0 0
      %769 = vmatprep.subr.bf16.mxu0 0
      %770 = vmatpush1.bf16.msra.mxu0 0
      %771 = vmatprep.subr.bf16.mxu0 0
      %772 = vmatpush1.bf16.msra.mxu0 0
      %773 = vmatprep.mubr.bf16.mxu0 0
      %774 = vmatmul.mubr.bf16.gmra.mrb[0].mxu0 %v685
      %v775 = vpop.f32.mrb[0].mxu0
      %v776 = vadd.f32 0.0, %v775
      %v777 = vpop.f32.mrb[0].mxu0
      %v778 = vpop.f32.mrb[0].mxu0
      %v779 = vadd.f32 0.0, %v778
      %v780 = vpop.f32.mrb[0].mxu0
      %781 = vmatprep.mubr.bf16.mxu0 0
      %782 = vmatmul.mubr.bf16.gmra.mrb[0].mxu0 %v686
      %v783 = vpop.f32.mrb[0].mxu0
      %v784 = vadd.f32 0.0, %v783
      %v785 = vpop.f32.mrb[0].mxu0
      %v786 = vpop.f32.mrb[0].mxu0
      %v787 = vadd.f32 0.0, %v786
      %v788 = vpop.f32.mrb[0].mxu0
      %789 = vmatprep.mubr.bf16.mxu0 0
      %790 = vmatmul.mubr.bf16.gmra.mrb[0].mxu0 %v687
      %v791 = vpop.f32.mrb[0].mxu0
      %v792 = vadd.f32 0.0, %v791
      %v793 = vpop.f32.mrb[0].mxu0
      %v794 = vpop.f32.mrb[0].mxu0
      %v795 = vadd.f32 0.0, %v794
      %v796 = vpop.f32.mrb[0].mxu0
      %797 = vmatprep.mubr.bf16.mxu0 0
      %798 = vmatmul.mubr.bf16.gmra.mrb[0].mxu0 %v688
      %v799 = vpop.f32.mrb[0].mxu0
      %v800 = vadd.f32 0.0, %v799
      %v801 = vpop.f32.mrb[0].mxu0
      %v802 = vpop.f32.mrb[0].mxu0
      %v803 = vadd.f32 0.0, %v802
      %v804 = vpop.f32.mrb[0].mxu0
      %805 = vdwg.mxu0
      %v806 = vadd.f32 %v636, %v776
      %v807 = vadd.f32 %v637, %v779
      %v808 = vadd.f32 %v638, %v784
      %v809 = vadd.f32 %v639, %v787
      %v810 = vadd.f32 %v640, %v792
      %v811 = vadd.f32 %v641, %v795
      %v812 = vadd.f32 %v642, %v800
      %v813 = vadd.f32 %v643, %v803
      %v814 = vld [vmem:[%s165 + $0x10] sm:$0xf]
      %v815 = vld [vmem:[%s165 + $0x14] sm:$0xf]
      %v816 = vld [vmem:[%s165 + $0x18] sm:$0xf]
      %v817 = vld [vmem:[%s165 + $0x1c] sm:$0xf]
      %v818 = vld [vmem:[%s165 + $0x20] sm:$0xf]
      %v819 = vld [vmem:[%s165 + $0x24] sm:$0xf]
      %v820 = vld [vmem:[%s165 + $0x28] sm:$0xf]
      %v821 = vld [vmem:[%s165 + $0x2c] sm:$0xf]
      %s822 = scalar_lea.vmem %s1, 256
      %v823 = vld [vmem:[%s822] sm:$0xf]
      %v824 = vld [vmem:[%s822 + $0x4] sm:$0xf]
      %v825 = vld [vmem:[%s822 + $0x8] sm:$0xf]
      %v826 = vld [vmem:[%s822 + $0xc] sm:$0xf]
      %v827 = vld [vmem:[%s822 + $0x10] sm:$0xf]
      %v828 = vld [vmem:[%s822 + $0x14] sm:$0xf]
      %v829 = vld [vmem:[%s822 + $0x18] sm:$0xf]
      %v830 = vld [vmem:[%s822 + $0x1c] sm:$0xf]
      %v831 = vld [vmem:[%s822 + $0x20] sm:$0xf]
      %v832 = vld [vmem:[%s822 + $0x24] sm:$0xf]
      %v833 = vld [vmem:[%s822 + $0x28] sm:$0xf]
      %v834 = vld [vmem:[%s822 + $0x2c] sm:$0xf]
      %v835 = vld [vmem:[%s822 + $0x30] sm:$0xf]
      %v836 = vld [vmem:[%s822 + $0x34] sm:$0xf]
      %v837 = vld [vmem:[%s822 + $0x38] sm:$0xf]
      %v838 = vld [vmem:[%s822 + $0x3c] sm:$0xf]
      %v847 = vunpack.c.l.b16 %v814
      %v848 = vunpack.c.l.b16 %v815
      %v849 = vunpack.c.l.b16 %v816
      %v850 = vunpack.c.l.b16 %v817
      %v851 = vunpack.c.l.b16 %v818
      %v852 = vunpack.c.l.b16 %v819
      %v853 = vunpack.c.l.b16 %v820
      %v854 = vunpack.c.l.b16 %v821
      %v855 = vpack.c.b16 %v848, %v847
      %v856 = vpack.c.b16 %v850, %v849
      %v857 = vpack.c.b16 %v852, %v851
      %v858 = vpack.c.b16 %v854, %v853
      %v879 = vunpack.c.l.b16 %v823
      %v880 = vunpack.c.l.b16 %v824
      %v881 = vunpack.c.l.b16 %v825
      %v882 = vunpack.c.l.b16 %v826
      %v883 = vunpack.c.l.b16 %v827
      %v884 = vunpack.c.l.b16 %v828
      %v885 = vunpack.c.l.b16 %v829
      %v886 = vunpack.c.l.b16 %v830
      %v887 = vunpack.c.l.b16 %v831
      %v888 = vunpack.c.l.b16 %v832
      %v889 = vunpack.c.l.b16 %v833
      %v890 = vunpack.c.l.b16 %v834
      %v891 = vunpack.c.l.b16 %v835
      %v892 = vunpack.c.l.b16 %v836
      %v893 = vunpack.c.l.b16 %v837
      %v894 = vunpack.c.l.b16 %v838
      %v895 = vpack.c.b16 %v880, %v879
      %v896 = vpack.c.b16 %v882, %v881
      %v897 = vpack.c.b16 %v884, %v883
      %v898 = vpack.c.b16 %v886, %v885
      %v899 = vpack.c.b16 %v888, %v887
      %v900 = vpack.c.b16 %v890, %v889
      %v901 = vpack.c.b16 %v892, %v891
      %v902 = vpack.c.b16 %v894, %v893
      %911 = vmatprep.subr.bf16.mxu0 0
      %912 = vmatpush1.bf16.msra.mxu0 %v895
      %913 = vmatprep.subr.bf16.mxu0 0
      %914 = vmatpush1.bf16.msra.mxu0 %v896
      %915 = vmatprep.subr.bf16.mxu0 0
      %916 = vmatpush1.bf16.msra.mxu0 %v897
      %917 = vmatprep.subr.bf16.mxu0 0
      %918 = vmatpush1.bf16.msra.mxu0 %v898
      %919 = vmatprep.subr.bf16.mxu0 0
      %920 = vmatpush1.bf16.msra.mxu0 %v899
      %921 = vmatprep.subr.bf16.mxu0 0
      %922 = vmatpush1.bf16.msra.mxu0 %v900
      %923 = vmatprep.subr.bf16.mxu0 0
      %924 = vmatpush1.bf16.msra.mxu0 %v901
      %925 = vmatprep.subr.bf16.mxu0 0
      %926 = vmatpush1.bf16.msra.mxu0 %v902
      %927 = vmatprep.subr.bf16.mxu0 0
      %928 = vmatpush1.bf16.msra.mxu0 0
      %929 = vmatprep.subr.bf16.mxu0 0
      %930 = vmatpush1.bf16.msra.mxu0 0
      %931 = vmatprep.subr.bf16.mxu0 0
      %932 = vmatpush1.bf16.msra.mxu0 0
      %933 = vmatprep.subr.bf16.mxu0 0
      %934 = vmatpush1.bf16.msra.mxu0 0
      %935 = vmatprep.subr.bf16.mxu0 0
      %936 = vmatpush1.bf16.msra.mxu0 0
      %937 = vmatprep.subr.bf16.mxu0 0
      %938 = vmatpush1.bf16.msra.mxu0 0
      %939 = vmatprep.subr.bf16.mxu0 0
      %940 = vmatpush1.bf16.msra.mxu0 0
      %941 = vmatprep.subr.bf16.mxu0 0
      %942 = vmatpush1.bf16.msra.mxu0 0
      %943 = vmatprep.mubr.bf16.mxu0 0
      %944 = vmatmul.mubr.bf16.gmra.mrb[0].mxu0 %v855
      %v945 = vpop.f32.mrb[0].mxu0
      %v946 = vadd.f32 0.0, %v945
      %v947 = vpop.f32.mrb[0].mxu0
      %v948 = vpop.f32.mrb[0].mxu0
      %v949 = vadd.f32 0.0, %v948
      %v950 = vpop.f32.mrb[0].mxu0
      %951 = vmatprep.mubr.bf16.mxu0 0
      %952 = vmatmul.mubr.bf16.gmra.mrb[0].mxu0 %v856
      %v953 = vpop.f32.mrb[0].mxu0
      %v954 = vadd.f32 0.0, %v953
      %v955 = vpop.f32.mrb[0].mxu0
      %v956 = vpop.f32.mrb[0].mxu0
      %v957 = vadd.f32 0.0, %v956
      %v958 = vpop.f32.mrb[0].mxu0
      %959 = vmatprep.mubr.bf16.mxu0 0
      %960 = vmatmul.mubr.bf16.gmra.mrb[0].mxu0 %v857
      %v961 = vpop.f32.mrb[0].mxu0
      %v962 = vadd.f32 0.0, %v961
      %v963 = vpop.f32.mrb[0].mxu0
      %v964 = vpop.f32.mrb[0].mxu0
      %v965 = vadd.f32 0.0, %v964
      %v966 = vpop.f32.mrb[0].mxu0
      %967 = vmatprep.mubr.bf16.mxu0 0
      %968 = vmatmul.mubr.bf16.gmra.mrb[0].mxu0 %v858
      %v969 = vpop.f32.mrb[0].mxu0
      %v970 = vadd.f32 0.0, %v969
      %v971 = vpop.f32.mrb[0].mxu0
      %v972 = vpop.f32.mrb[0].mxu0
      %v973 = vadd.f32 0.0, %v972
      %v974 = vpop.f32.mrb[0].mxu0
      %975 = vdwg.mxu0
      %v976 = vadd.f32 %v806, %v946
      %v977 = vadd.f32 %v807, %v949
      %v978 = vadd.f32 %v808, %v954
      %v979 = vadd.f32 %v809, %v957
      %v980 = vadd.f32 %v810, %v962
      %v981 = vadd.f32 %v811, %v965
      %v982 = vadd.f32 %v812, %v970
      %v983 = vadd.f32 %v813, %v973
      %v984 = vld [vmem:[%s165 + $0x14] sm:$0xf]
      %v985 = vld [vmem:[%s165 + $0x18] sm:$0xf]
      %v986 = vld [vmem:[%s165 + $0x1c] sm:$0xf]
      %v987 = vld [vmem:[%s165 + $0x20] sm:$0xf]
      %v988 = vld [vmem:[%s165 + $0x24] sm:$0xf]
      %v989 = vld [vmem:[%s165 + $0x28] sm:$0xf]
      %v990 = vld [vmem:[%s165 + $0x2c] sm:$0xf]
      %v991 = vld [vmem:[%s165 + $0x30] sm:$0xf]
      %s992 = scalar_lea.vmem %s1, 320
      %v993 = vld [vmem:[%s992] sm:$0xf]
      %v994 = vld [vmem:[%s992 + $0x4] sm:$0xf]
      %v995 = vld [vmem:[%s992 + $0x8] sm:$0xf]
      %v996 = vld [vmem:[%s992 + $0xc] sm:$0xf]
      %v997 = vld [vmem:[%s992 + $0x10] sm:$0xf]
      %v998 = vld [vmem:[%s992 + $0x14] sm:$0xf]
      %v999 = vld [vmem:[%s992 + $0x18] sm:$0xf]
      %v1000 = vld [vmem:[%s992 + $0x1c] sm:$0xf]
      %v1001 = vld [vmem:[%s992 + $0x20] sm:$0xf]
      %v1002 = vld [vmem:[%s992 + $0x24] sm:$0xf]
      %v1003 = vld [vmem:[%s992 + $0x28] sm:$0xf]
      %v1004 = vld [vmem:[%s992 + $0x2c] sm:$0xf]
      %v1005 = vld [vmem:[%s992 + $0x30] sm:$0xf]
      %v1006 = vld [vmem:[%s992 + $0x34] sm:$0xf]
      %v1007 = vld [vmem:[%s992 + $0x38] sm:$0xf]
      %v1008 = vld [vmem:[%s992 + $0x3c] sm:$0xf]
      %v1017 = vunpack.c.l.b16 %v984
      %v1018 = vunpack.c.l.b16 %v985
      %v1019 = vunpack.c.l.b16 %v986
      %v1020 = vunpack.c.l.b16 %v987
      %v1021 = vunpack.c.l.b16 %v988
      %v1022 = vunpack.c.l.b16 %v989
      %v1023 = vunpack.c.l.b16 %v990
      %v1024 = vunpack.c.l.b16 %v991
      %v1025 = vpack.c.b16 %v1018, %v1017
      %v1026 = vpack.c.b16 %v1020, %v1019
      %v1027 = vpack.c.b16 %v1022, %v1021
      %v1028 = vpack.c.b16 %v1024, %v1023
      %v1049 = vunpack.c.l.b16 %v993
      %v1050 = vunpack.c.l.b16 %v994
      %v1051 = vunpack.c.l.b16 %v995
      %v1052 = vunpack.c.l.b16 %v996
      %v1053 = vunpack.c.l.b16 %v997
      %v1054 = vunpack.c.l.b16 %v998
      %v1055 = vunpack.c.l.b16 %v999
      %v1056 = vunpack.c.l.b16 %v1000
      %v1057 = vunpack.c.l.b16 %v1001
      %v1058 = vunpack.c.l.b16 %v1002
      %v1059 = vunpack.c.l.b16 %v1003
      %v1060 = vunpack.c.l.b16 %v1004
      %v1061 = vunpack.c.l.b16 %v1005
      %v1062 = vunpack.c.l.b16 %v1006
      %v1063 = vunpack.c.l.b16 %v1007
      %v1064 = vunpack.c.l.b16 %v1008
      %v1065 = vpack.c.b16 %v1050, %v1049
      %v1066 = vpack.c.b16 %v1052, %v1051
      %v1067 = vpack.c.b16 %v1054, %v1053
      %v1068 = vpack.c.b16 %v1056, %v1055
      %v1069 = vpack.c.b16 %v1058, %v1057
      %v1070 = vpack.c.b16 %v1060, %v1059
      %v1071 = vpack.c.b16 %v1062, %v1061
      %v1072 = vpack.c.b16 %v1064, %v1063
      %1081 = vmatprep.subr.bf16.mxu0 0
      %1082 = vmatpush1.bf16.msra.mxu0 %v1065
      %1083 = vmatprep.subr.bf16.mxu0 0
      %1084 = vmatpush1.bf16.msra.mxu0 %v1066
      %1085 = vmatprep.subr.bf16.mxu0 0
      %1086 = vmatpush1.bf16.msra.mxu0 %v1067
      %1087 = vmatprep.subr.bf16.mxu0 0
      %1088 = vmatpush1.bf16.msra.mxu0 %v1068
      %1089 = vmatprep.subr.bf16.mxu0 0
      %1090 = vmatpush1.bf16.msra.mxu0 %v1069
      %1091 = vmatprep.subr.bf16.mxu0 0
      %1092 = vmatpush1.bf16.msra.mxu0 %v1070
      %1093 = vmatprep.subr.bf16.mxu0 0
      %1094 = vmatpush1.bf16.msra.mxu0 %v1071
      %1095 = vmatprep.subr.bf16.mxu0 0
      %1096 = vmatpush1.bf16.msra.mxu0 %v1072
      %1097 = vmatprep.subr.bf16.mxu0 0
      %1098 = vmatpush1.bf16.msra.mxu0 0
      %1099 = vmatprep.subr.bf16.mxu0 0
      %1100 = vmatpush1.bf16.msra.mxu0 0
      %1101 = vmatprep.subr.bf16.mxu0 0
      %1102 = vmatpush1.bf16.msra.mxu0 0
      %1103 = vmatprep.subr.bf16.mxu0 0
      %1104 = vmatpush1.bf16.msra.mxu0 0
      %1105 = vmatprep.subr.bf16.mxu0 0
      %1106 = vmatpush1.bf16.msra.mxu0 0
      %1107 = vmatprep.subr.bf16.mxu0 0
      %1108 = vmatpush1.bf16.msra.mxu0 0
      %1109 = vmatprep.subr.bf16.mxu0 0
      %1110 = vmatpush1.bf16.msra.mxu0 0
      %1111 = vmatprep.subr.bf16.mxu0 0
      %1112 = vmatpush1.bf16.msra.mxu0 0
      %1113 = vmatprep.mubr.bf16.mxu0 0
      %1114 = vmatmul.mubr.bf16.gmra.mrb[0].mxu0 %v1025
      %v1115 = vpop.f32.mrb[0].mxu0
      %v1116 = vadd.f32 0.0, %v1115
      %v1117 = vpop.f32.mrb[0].mxu0
      %v1118 = vpop.f32.mrb[0].mxu0
      %v1119 = vadd.f32 0.0, %v1118
      %v1120 = vpop.f32.mrb[0].mxu0
      %1121 = vmatprep.mubr.bf16.mxu0 0
      %1122 = vmatmul.mubr.bf16.gmra.mrb[0].mxu0 %v1026
      %v1123 = vpop.f32.mrb[0].mxu0
      %v1124 = vadd.f32 0.0, %v1123
      %v1125 = vpop.f32.mrb[0].mxu0
      %v1126 = vpop.f32.mrb[0].mxu0
      %v1127 = vadd.f32 0.0, %v1126
      %v1128 = vpop.f32.mrb[0].mxu0
      %1129 = vmatprep.mubr.bf16.mxu0 0
      %1130 = vmatmul.mubr.bf16.gmra.mrb[0].mxu0 %v1027
      %v1131 = vpop.f32.mrb[0].mxu0
      %v1132 = vadd.f32 0.0, %v1131
      %v1133 = vpop.f32.mrb[0].mxu0
      %v1134 = vpop.f32.mrb[0].mxu0
      %v1135 = vadd.f32 0.0, %v1134
      %v1136 = vpop.f32.mrb[0].mxu0
      %1137 = vmatprep.mubr.bf16.mxu0 0
      %1138 = vmatmul.mubr.bf16.gmra.mrb[0].mxu0 %v1028
      %v1139 = vpop.f32.mrb[0].mxu0
      %v1140 = vadd.f32 0.0, %v1139
      %v1141 = vpop.f32.mrb[0].mxu0
      %v1142 = vpop.f32.mrb[0].mxu0
      %v1143 = vadd.f32 0.0, %v1142
      %v1144 = vpop.f32.mrb[0].mxu0
      %1145 = vdwg.mxu0
      %v1146 = vadd.f32 %v976, %v1116
      %v1147 = vadd.f32 %v977, %v1119
      %v1148 = vadd.f32 %v978, %v1124
      %v1149 = vadd.f32 %v979, %v1127
      %v1150 = vadd.f32 %v980, %v1132
      %v1151 = vadd.f32 %v981, %v1135
      %v1152 = vadd.f32 %v982, %v1140
      %v1153 = vadd.f32 %v983, %v1143
      %v1154 = vld [vmem:[%s165 + $0x18] sm:$0xf]
      %v1155 = vld [vmem:[%s165 + $0x1c] sm:$0xf]
      %v1156 = vld [vmem:[%s165 + $0x20] sm:$0xf]
      %v1157 = vld [vmem:[%s165 + $0x24] sm:$0xf]
      %v1158 = vld [vmem:[%s165 + $0x28] sm:$0xf]
      %v1159 = vld [vmem:[%s165 + $0x2c] sm:$0xf]
      %v1160 = vld [vmem:[%s165 + $0x30] sm:$0xf]
      %v1161 = vld [vmem:[%s165 + $0x34] sm:$0xf]
      %s1162 = scalar_lea.vmem %s1, 384
      %v1163 = vld [vmem:[%s1162] sm:$0xf]
      %v1164 = vld [vmem:[%s1162 + $0x4] sm:$0xf]
      %v1165 = vld [vmem:[%s1162 + $0x8] sm:$0xf]
      %v1166 = vld [vmem:[%s1162 + $0xc] sm:$0xf]
      %v1167 = vld [vmem:[%s1162 + $0x10] sm:$0xf]
      %v1168 = vld [vmem:[%s1162 + $0x14] sm:$0xf]
      %v1169 = vld [vmem:[%s1162 + $0x18] sm:$0xf]
      %v1170 = vld [vmem:[%s1162 + $0x1c] sm:$0xf]
      %v1171 = vld [vmem:[%s1162 + $0x20] sm:$0xf]
      %v1172 = vld [vmem:[%s1162 + $0x24] sm:$0xf]
      %v1173 = vld [vmem:[%s1162 + $0x28] sm:$0xf]
      %v1174 = vld [vmem:[%s1162 + $0x2c] sm:$0xf]
      %v1175 = vld [vmem:[%s1162 + $0x30] sm:$0xf]
      %v1176 = vld [vmem:[%s1162 + $0x34] sm:$0xf]
      %v1177 = vld [vmem:[%s1162 + $0x38] sm:$0xf]
      %v1178 = vld [vmem:[%s1162 + $0x3c] sm:$0xf]
      %v1187 = vunpack.c.l.b16 %v1154
      %v1188 = vunpack.c.l.b16 %v1155
      %v1189 = vunpack.c.l.b16 %v1156
      %v1190 = vunpack.c.l.b16 %v1157
      %v1191 = vunpack.c.l.b16 %v1158
      %v1192 = vunpack.c.l.b16 %v1159
      %v1193 = vunpack.c.l.b16 %v1160
      %v1194 = vunpack.c.l.b16 %v1161
      %v1195 = vpack.c.b16 %v1188, %v1187
      %v1196 = vpack.c.b16 %v1190, %v1189
      %v1197 = vpack.c.b16 %v1192, %v1191
      %v1198 = vpack.c.b16 %v1194, %v1193
      %v1219 = vunpack.c.l.b16 %v1163
      %v1220 = vunpack.c.l.b16 %v1164
      %v1221 = vunpack.c.l.b16 %v1165
      %v1222 = vunpack.c.l.b16 %v1166
      %v1223 = vunpack.c.l.b16 %v1167
      %v1224 = vunpack.c.l.b16 %v1168
      %v1225 = vunpack.c.l.b16 %v1169
      %v1226 = vunpack.c.l.b16 %v1170
      %v1227 = vunpack.c.l.b16 %v1171
      %v1228 = vunpack.c.l.b16 %v1172
      %v1229 = vunpack.c.l.b16 %v1173
      %v1230 = vunpack.c.l.b16 %v1174
      %v1231 = vunpack.c.l.b16 %v1175
      %v1232 = vunpack.c.l.b16 %v1176
      %v1233 = vunpack.c.l.b16 %v1177
      %v1234 = vunpack.c.l.b16 %v1178
      %v1235 = vpack.c.b16 %v1220, %v1219
      %v1236 = vpack.c.b16 %v1222, %v1221
      %v1237 = vpack.c.b16 %v1224, %v1223
      %v1238 = vpack.c.b16 %v1226, %v1225
      %v1239 = vpack.c.b16 %v1228, %v1227
      %v1240 = vpack.c.b16 %v1230, %v1229
      %v1241 = vpack.c.b16 %v1232, %v1231
      %v1242 = vpack.c.b16 %v1234, %v1233
      %1251 = vmatprep.subr.bf16.mxu0 0
      %1252 = vmatpush1.bf16.msra.mxu0 %v1235
      %1253 = vmatprep.subr.bf16.mxu0 0
      %1254 = vmatpush1.bf16.msra.mxu0 %v1236
      %1255 = vmatprep.subr.bf16.mxu0 0
      %1256 = vmatpush1.bf16.msra.mxu0 %v1237
      %1257 = vmatprep.subr.bf16.mxu0 0
      %1258 = vmatpush1.bf16.msra.mxu0 %v1238
      %1259 = vmatprep.subr.bf16.mxu0 0
      %1260 = vmatpush1.bf16.msra.mxu0 %v1239
      %1261 = vmatprep.subr.bf16.mxu0 0
      %1262 = vmatpush1.bf16.msra.mxu0 %v1240
      %1263 = vmatprep.subr.bf16.mxu0 0
      %1264 = vmatpush1.bf16.msra.mxu0 %v1241
      %1265 = vmatprep.subr.bf16.mxu0 0
      %1266 = vmatpush1.bf16.msra.mxu0 %v1242
      %1267 = vmatprep.subr.bf16.mxu0 0
      %1268 = vmatpush1.bf16.msra.mxu0 0
      %1269 = vmatprep.subr.bf16.mxu0 0
      %1270 = vmatpush1.bf16.msra.mxu0 0
      %1271 = vmatprep.subr.bf16.mxu0 0
      %1272 = vmatpush1.bf16.msra.mxu0 0
      %1273 = vmatprep.subr.bf16.mxu0 0
      %1274 = vmatpush1.bf16.msra.mxu0 0
      %1275 = vmatprep.subr.bf16.mxu0 0
      %1276 = vmatpush1.bf16.msra.mxu0 0
      %1277 = vmatprep.subr.bf16.mxu0 0
      %1278 = vmatpush1.bf16.msra.mxu0 0
      %1279 = vmatprep.subr.bf16.mxu0 0
      %1280 = vmatpush1.bf16.msra.mxu0 0
      %1281 = vmatprep.subr.bf16.mxu0 0
      %1282 = vmatpush1.bf16.msra.mxu0 0
      %1283 = vmatprep.mubr.bf16.mxu0 0
      %1284 = vmatmul.mubr.bf16.gmra.mrb[0].mxu0 %v1195
      %v1285 = vpop.f32.mrb[0].mxu0
      %v1286 = vadd.f32 0.0, %v1285
      %v1287 = vpop.f32.mrb[0].mxu0
      %v1288 = vpop.f32.mrb[0].mxu0
      %v1289 = vadd.f32 0.0, %v1288
      %v1290 = vpop.f32.mrb[0].mxu0
      %1291 = vmatprep.mubr.bf16.mxu0 0
      %1292 = vmatmul.mubr.bf16.gmra.mrb[0].mxu0 %v1196
      %v1293 = vpop.f32.mrb[0].mxu0
      %v1294 = vadd.f32 0.0, %v1293
      %v1295 = vpop.f32.mrb[0].mxu0
      %v1296 = vpop.f32.mrb[0].mxu0
      %v1297 = vadd.f32 0.0, %v1296
      %v1298 = vpop.f32.mrb[0].mxu0
      %1299 = vmatprep.mubr.bf16.mxu0 0
      %1300 = vmatmul.mubr.bf16.gmra.mrb[0].mxu0 %v1197
      %v1301 = vpop.f32.mrb[0].mxu0
      %v1302 = vadd.f32 0.0, %v1301
      %v1303 = vpop.f32.mrb[0].mxu0
      %v1304 = vpop.f32.mrb[0].mxu0
      %v1305 = vadd.f32 0.0, %v1304
      %v1306 = vpop.f32.mrb[0].mxu0
      %1307 = vmatprep.mubr.bf16.mxu0 0
      %1308 = vmatmul.mubr.bf16.gmra.mrb[0].mxu0 %v1198
      %v1309 = vpop.f32.mrb[0].mxu0
      %v1310 = vadd.f32 0.0, %v1309
      %v1311 = vpop.f32.mrb[0].mxu0
      %v1312 = vpop.f32.mrb[0].mxu0
      %v1313 = vadd.f32 0.0, %v1312
      %v1314 = vpop.f32.mrb[0].mxu0
      %1315 = vdwg.mxu0
      %v1316 = vadd.f32 %v1146, %v1286
      %v1317 = vadd.f32 %v1147, %v1289
      %v1318 = vadd.f32 %v1148, %v1294
      %v1319 = vadd.f32 %v1149, %v1297
      %v1320 = vadd.f32 %v1150, %v1302
      %v1321 = vadd.f32 %v1151, %v1305
      %v1322 = vadd.f32 %v1152, %v1310
      %v1323 = vadd.f32 %v1153, %v1313
      %v1324 = vld [vmem:[%s2] sm:$0x1]
      %v1326 = vlaneseq
      %v1327 = vshrl.u32 %v1326, 7
      %v1328 = vsub.s32 0, %v1327
      %v1329 = vrot.slane %v1324, %v1328
      %v1331 = vadd.f32 %v1316, %v1329
      %v1332 = vadd.f32 %v1317, %v1329
      %v1333 = vadd.f32 %v1318, %v1329
      %v1334 = vadd.f32 %v1319, %v1329
      %v1335 = vadd.f32 %v1320, %v1329
      %v1336 = vadd.f32 %v1321, %v1329
      %v1337 = vadd.f32 %v1322, %v1329
      %v1338 = vadd.f32 %v1323, %v1329
      %v1339 = vmax.f32 %v1331, 0.0
      %v1340 = vmax.f32 %v1332, 0.0
      %v1341 = vmax.f32 %v1333, 0.0
      %v1342 = vmax.f32 %v1334, 0.0
      %v1343 = vmax.f32 %v1335, 0.0
      %v1344 = vmax.f32 %v1336, 0.0
      %v1345 = vmax.f32 %v1337, 0.0
      %v1346 = vmax.f32 %v1338, 0.0
      %v1347 = vpack.c.bf16 %v1340, %v1339
      %v1348 = vpack.c.bf16 %v1342, %v1341
      %v1349 = vpack.c.bf16 %v1344, %v1343
      %v1350 = vpack.c.bf16 %v1346, %v1345
      %v1355 = vunpack.c.l.b16 %v1347
      %v1356 = vunpack.c.h.b16 %v1347
      %v1357 = vunpack.c.l.b16 %v1348
      %v1358 = vunpack.c.h.b16 %v1348
      %v1359 = vunpack.c.l.b16 %v1349
      %v1360 = vunpack.c.h.b16 %v1349
      %v1361 = vunpack.c.l.b16 %v1350
      %v1362 = vunpack.c.h.b16 %v1350
      %v1363 = vpack.c.b16 %v1355, %v1355
      %v1364 = vpack.c.b16 %v1356, %v1356
      %v1365 = vpack.c.b16 %v1357, %v1357
      %v1366 = vpack.c.b16 %v1358, %v1358
      %v1367 = vpack.c.b16 %v1359, %v1359
      %v1368 = vpack.c.b16 %v1360, %v1360
      %v1369 = vpack.c.b16 %v1361, %v1361
      %v1370 = vpack.c.b16 %v1362, %v1362
      %1379 = vst [vmem:[%s170] sm:$0xf] %v1363
      %1380 = vst [vmem:[%s170 + $0x4] sm:$0xf] %v1364
      %1381 = vst [vmem:[%s170 + $0x8] sm:$0xf] %v1365
      %1382 = vst [vmem:[%s170 + $0xc] sm:$0xf] %v1366
      %1383 = vst [vmem:[%s170 + $0x10] sm:$0xf] %v1367
      %1384 = vst [vmem:[%s170 + $0x14] sm:$0xf] %v1368
      %1385 = vst [vmem:[%s170 + $0x18] sm:$0xf] %v1369
      %1386 = vst [vmem:[%s170 + $0x1c] sm:$0xf] %v1370
      %p1387 = scmp.lt.s32.totalorder %s14, 1
      %s1388 = scalar_select %p1387, %s14, 1
      %s1389 = smul.addr %s1388, 8
      %s1390 = smul.addr %s1389, 4
      %s1391 = scalar_lea.vmem %s3, %s1390
      // Predicated region
      $region33: #{inception_c_forward.9} parent=31 // pred_check
        %p1392 = pneg %p100
      $region34: #{inception_c_forward.9} parent=31 // pred_check_branch
        %1394 = sbr.rel (%p1392) target = $region36
      $region35: #{inception_c_forward.9} parent=31 // pred_region
        _
      $region36: #{inception_c_forward.9} parent=31 // pred_fallthru
        _
    $region32: #{inception_c_forward.9} parent=5 // pred_fallthru
      _
    %p1395 = scmp.le.s32.totalorder 2, %s9
    // Predicated region
    $region37: #{inception_c_forward.9} parent=5 // pred_check
      %p1396 = pneg %p1395
    $region38: #{inception_c_forward.9} parent=5 // pred_check_branch
      %1398 = sbr.rel (%p1396) target = $region40
    $region39: #{inception_c_forward.9} parent=5 // pred_region
      %s1399 = ssub.s32 %s9, 2
      // Predicated region
      $region41: #{inception_c_forward.9} parent=39 // pred_check
        %p1400 = pneg %p106
      $region42: #{inception_c_forward.9} parent=39 // pred_check_branch
        %1402 = sbr.rel (%p1400) target = $region44
      $region43: #{inception_c_forward.9} parent=39 // pred_region
        %p1403 = scmp.lt.s32.totalorder %s15, 1
        %s1404 = scalar_select %p1403, %s15, 1
        %s1405 = smul.addr %s1404, 8
        %s1406 = smul.addr %s1405, 4
        %s1407 = scalar_lea.vmem %s3, %s1406
      $region44: #{inception_c_forward.9} parent=39 // pred_fallthru
        _
    $region40: #{inception_c_forward.9} parent=5 // pred_fallthru
      _
  $region6: #{inception_c_forward.9} parent=0 // loop_footer
    %s13 = sadd.s32 1, %s9
  $region7: #{inception_c_forward.9} parent=0 // loop_footer_branch
    %8 = sbr.rel target = $region3
  $region8: #{inception_c_forward.9} parent=0 // loop_exit
    _

</llo_original>
